<compile_context>
chip_gen: v5e
topology: v5e:2x2
jax: 0.10.0
libtpu: 0.0.40
codegen_flags: <defaults>
</compile_context>

<pallas_src>
import functools
import numpy as np
import jax
import jax.numpy as jnp
from jax.experimental import pallas as pl
from jax.experimental.pallas import tpu as pltpu

SEQ = 34                 # Conv1d input length implied by Linear(80*17, 80)
POOLED = 17              # after AvgPool1d(2)
CIN, COUT, KW, PAD = 4, 80, 5, 2
KIN = CIN * SEQ + 1      # 137: raw sequence (channel-major) + ones column for conv bias
HFLAT = SEQ * COUT       # 2720: conv output flattened as l*80 + o
CHUNK = 256              # hidden-axis chunk (lane-tile aligned)
NCHUNK = -(-HFLAT // CHUNK)          # 11
HPAD = NCHUNK * CHUNK                # 2816 (zero-padded columns/rows contribute nothing)


def _round_up(n, m):
    return -(-n // m) * m


def _choose_tb(B):
    if B <= 128:
        return _round_up(max(B, 1), 8)           # whole (8-padded) batch, single step
    # >= 2 grid steps so both v7x TensorCores get work; 128-aligned tiles, capped at 512
    return min(512, _round_up(-(-B // 2), 128))


def deepcpf1_kernel(xrow_ref, ca_ref,
                    wconv_ref, w1_ref, b1_ref,
                    w2_ref, b2_ref, w3_ref, b3_ref,
                    wca_ref, bca_ref,
                    wouta_ref, woutb_ref, bout_ref,
                    out_ref):
    f32, bf16 = jnp.float32, jnp.bfloat16
    xrow = xrow_ref[...]                                   # (TB, 137) bf16
    tb = xrow.shape[0]

    # --- layer1 (Conv1d+bias+ReLU) fused with AvgPool-folded Linear(1360,80), chunked
    # over the 2816-wide hidden axis so no (TB, 2816) temporary is ever materialized.
    # Accumulator starts from the Linear1 bias (saves the epilogue add).
    acc0 = jnp.broadcast_to(b1_ref[...], (tb, 80)).astype(f32)

    def body(i, acc):
        off = pl.multiple_of(i * CHUNK, CHUNK)
        h = jnp.dot(xrow, wconv_ref[:, pl.ds(off, CHUNK)],
                    preferred_element_type=f32)            # conv (+bias via ones col)
        h = jnp.maximum(h, 0.0).astype(bf16)               # (TB, CHUNK)
        return acc + jnp.dot(h, w1_ref[pl.ds(off, CHUNK), :],
                             preferred_element_type=f32)   # avg-pool folded Linear1

    z1 = jnp.maximum(jax.lax.fori_loop(0, NCHUNK, body, acc0, unroll=True), 0.0)

    # --- layer2 tail: Linear(80,40)+ReLU, Linear(40,40)+ReLU
    z2 = jnp.maximum(jnp.dot(z1.astype(bf16), w2_ref[...],
                             preferred_element_type=f32) + b2_ref[...], 0.0)   # (TB, 40)
    z3 = jnp.maximum(jnp.dot(z2.astype(bf16), w3_ref[...],
                             preferred_element_type=f32) + b3_ref[...], 0.0)   # (TB, 40)

    # --- ca branch: Linear(1 -> 40) + ReLU as a broadcast multiply (K = 1, pure VPU).
    caf = jnp.maximum(ca_ref[...] * wca_ref[...] + bca_ref[...], 0.0)          # (TB, 40)

    # --- output: Linear(80 -> 1) on concat([z3, caf]) + Sigmoid.  N=1 MXU matmuls
    # replaced by VPU multiplies + XLU lane reduces (f32 end to end).
    logit = (jnp.sum(z3 * wouta_ref[...], axis=-1, keepdims=True)
             + jnp.sum(caf * woutb_ref[...], axis=-1, keepdims=True)
             + bout_ref[...])                                                  # (TB, 1)
    out_ref[...] = 1.0 / (1.0 + jnp.exp(-logit))


def init_params(key):
    """Deterministic synthetic parameters, stored in PyTorch conventions."""
    ks = jax.random.split(key, 12)
    s = 0.1
    return {
        'Wc':   s * jax.random.normal(ks[0],  (COUT, CIN, KW), jnp.float32),   # Conv1d (O, I, K)
        'bc':   s * jax.random.normal(ks[1],  (COUT,),          jnp.float32),
        'W1':   s * jax.random.normal(ks[2],  (80, 80 * POOLED), jnp.float32), # Linear: (out, in)
        'b1':   s * jax.random.normal(ks[3],  (80,),             jnp.float32),
        'W2':   s * jax.random.normal(ks[4],  (40, 80),          jnp.float32),
        'b2':   s * jax.random.normal(ks[5],  (40,),             jnp.float32),
        'W3':   s * jax.random.normal(ks[6],  (40, 40),          jnp.float32),
        'b3':   s * jax.random.normal(ks[7],  (40,),             jnp.float32),
        'Wca':  s * jax.random.normal(ks[8],  (40, 1),           jnp.float32),
        'bca':  s * jax.random.normal(ks[9],  (40,),             jnp.float32),
        'Wout': s * jax.random.normal(ks[10], (1, 80),           jnp.float32),
        'bout': s * jax.random.normal(ks[11], (1,),              jnp.float32),
    }


def fold_params(p):
    """One-time weight folding (hoisted out of the per-call path).

    Conv1d(4,80,5,pad=2) -> (137, 2816) bf16 matrix over UN-padded positions, with the
    conv bias as the last row (paired with a ones column in xrow).  AvgPool1d(2) is
    folded into Linear(80*17, 80) -> (2816, 80) bf16.  Padded rows/cols are zero.
    """
    # sel[q, l, k] = 1 iff un-padded position q equals output position l + k - PAD
    q = np.arange(SEQ)[:, None, None]
    l = np.arange(SEQ)[None, :, None]
    k = np.arange(KW)[None, None, :]
    sel = jnp.asarray((q + PAD == l + k).astype(np.float32))                  # (34, 34, 5)
    wconv = jnp.einsum('qlk,ock->cqlo', sel, p['Wc']).reshape(CIN * SEQ, HFLAT)
    bias_row = jnp.tile(p['bc'], (SEQ,)).reshape(1, HFLAT)                    # row for ones column
    wconv = jnp.concatenate([wconv, bias_row], axis=0)                        # (137, 2720)
    wconv = jnp.pad(wconv, ((0, 0), (0, HPAD - HFLAT))).astype(jnp.bfloat16)  # (137, 2816)

    # torch flat index of pooled (80,17) is c*17+lp; pooled value = 0.5*(h[2lp]+h[2lp+1]);
    # h is flattened as l*80 + c in the kernel.
    w1 = 0.5 * jnp.transpose(p['W1'].reshape(80, 80, POOLED), (2, 1, 0))      # (17, c, j)
    w1 = jnp.repeat(w1, 2, axis=0).reshape(HFLAT, 80)                         # row l*80 + c
    w1 = jnp.pad(w1, ((0, HPAD - HFLAT), (0, 0))).astype(jnp.bfloat16)        # (2816, 80)

    return {
        'wconv': wconv,
        'w1': w1,
        'b1': p['b1'].reshape(1, 80).astype(jnp.float32),
        'w2': p['W2'].T.astype(jnp.bfloat16),
        'b2': p['b2'].reshape(1, 40).astype(jnp.float32),
        'w3': p['W3'].T.astype(jnp.bfloat16),
        'b3': p['b3'].reshape(1, 40).astype(jnp.float32),
        'wca': p['Wca'].T.astype(jnp.float32),            # (1, 40)
        'bca': p['bca'].reshape(1, 40).astype(jnp.float32),
        'wouta': p['Wout'][:, :40].astype(jnp.float32),   # (1, 40), acts on z3 lanes
        'woutb': p['Wout'][:, 40:].astype(jnp.float32),   # (1, 40), acts on ca lanes
        'bout': p['bout'].reshape(1, 1).astype(jnp.float32),
    }


@functools.partial(jax.jit, static_argnames=("tb",))
def deepcpf1_forward(x, ca, w, *, tb=None):
    """x: (B, 4, 34) NCW float32, ca: (B, 1) float32, w: fold_params(...) -> (B, 1) f32."""
    B = x.shape[0]
    if tb is None:
        tb = _choose_tb(B)
    b_pad = _round_up(B, tb)
    grid = (b_pad // tb,)

    # Minimal wrapper work: contiguous reshape + ones column (for the folded conv bias),
    # batch pad, bf16 cast.  No sequence zero-padding, no (B,4,38) intermediate.
    ones = jnp.ones((B, 1), x.dtype)
    xrow = jnp.concatenate([x.reshape(B, CIN * SEQ), ones], axis=1)           # (B, 137)
    xrow = jnp.pad(xrow, ((0, b_pad - B), (0, 0))).astype(jnp.bfloat16)       # (Bp, 137)
    ca_p = jnp.pad(ca.astype(jnp.float32), ((0, b_pad - B), (0, 0)))          # (Bp, 1)

    weights = (w['wconv'], w['w1'], w['b1'], w['w2'], w['b2'], w['w3'], w['b3'],
               w['wca'], w['bca'], w['wouta'], w['woutb'], w['bout'])

    def _batch_map(i):
        return (i, 0)

    def _const_map(i):
        return (0, 0)

    in_specs = [
        pl.BlockSpec((tb, KIN), _batch_map),       # xrow: batch-tiled
        pl.BlockSpec((tb, 1), _batch_map),         # ca:   batch-tiled
    ] + [pl.BlockSpec(ww.shape, _const_map) for ww in weights]   # weights: DMA'd once

    out = pl.pallas_call(
        deepcpf1_kernel,
        out_shape=jax.ShapeDtypeStruct((b_pad, 1), jnp.float32),
        grid=grid,
        in_specs=in_specs,
        out_specs=pl.BlockSpec((tb, 1), _batch_map),
        compiler_params=pltpu.CompilerParams(dimension_semantics=("parallel",)),
    )(xrow, ca_p, *weights)
    return out[:B]


def reference_forward(x, ca, p):
    """Pure-JAX reference mirroring the PyTorch forward (Dropout = identity in eval)."""
    B = x.shape[0]
    y = jax.lax.conv_general_dilated(
        x, p['Wc'], window_strides=(1,), padding=[(PAD, PAD)],
        dimension_numbers=('NCH', 'OIH', 'NCH'))
    y = jnp.maximum(y + p['bc'][None, :, None], 0.0)                    # (B, 80, 34)
    y = y.reshape(B, COUT, POOLED, 2).mean(axis=3)                      # AvgPool1d(2) -> (B, 80, 17)
    flat = y.reshape(B, COUT * POOLED)                                  # torch x.view(B, -1)
    relu = lambda v: jnp.maximum(v, 0.0)
    z1 = relu(flat @ p['W1'].T + p['b1'])
    z2 = relu(z1 @ p['W2'].T + p['b2'])
    z3 = relu(z2 @ p['W3'].T + p['b3'])
    caf = relu(ca @ p['Wca'].T + p['bca'])
    cat = jnp.concatenate([z3, caf], axis=1)
    return jax.nn.sigmoid(cat @ p['Wout'].T + p['bout'])


if __name__ == "__main__":
    key = jax.random.PRNGKey(0)
    kx, kca, kp = jax.random.split(key, 3)
    B = 2
    x = jax.random.normal(kx, (B, CIN, SEQ), jnp.float32)   # NCW, as PyTorch Conv1d expects
    ca = jax.random.uniform(kca, (B, 1), jnp.float32)
    params = init_params(kp)
    folded = jax.block_until_ready(fold_params(params))     # folded once at "model load"

    out = jax.block_until_ready(deepcpf1_forward(x, ca, folded))
    ref = jax.block_until_ready(reference_forward(x, ca, params))

    assert out.shape == (B, 1) and out.dtype == jnp.float32
    if not np.allclose(np.asarray(out), np.asarray(ref), rtol=2e-2, atol=2e-2):
        raise AssertionError(f"mismatch:\nkernel={out}\nref={ref}")
    print("KERNEL_OK")
</pallas_src>

<mosaic_0001>
module attributes {stable_mosaic.version = 11 : i64} {
  func.func @deepcpf1_kernel(%arg0: i32, %arg1: memref<8x137xbf16, #tpu.memory_space<vmem>>, %arg2: memref<8x1xf32, #tpu.memory_space<vmem>>, %arg3: memref<137x2816xbf16, #tpu.memory_space<vmem>>, %arg4: memref<2816x80xbf16, #tpu.memory_space<vmem>>, %arg5: memref<1x80xf32, #tpu.memory_space<vmem>>, %arg6: memref<80x40xbf16, #tpu.memory_space<vmem>>, %arg7: memref<1x40xf32, #tpu.memory_space<vmem>>, %arg8: memref<40x40xbf16, #tpu.memory_space<vmem>>, %arg9: memref<1x40xf32, #tpu.memory_space<vmem>>, %arg10: memref<1x40xf32, #tpu.memory_space<vmem>>, %arg11: memref<1x40xf32, #tpu.memory_space<vmem>>, %arg12: memref<1x40xf32, #tpu.memory_space<vmem>>, %arg13: memref<1x40xf32, #tpu.memory_space<vmem>>, %arg14: memref<1x1xf32, #tpu.memory_space<vmem>>, %arg15: memref<8x1xf32, #tpu.memory_space<vmem>>) attributes {dimension_semantics = [#tpu.dimension_semantics<parallel>], iteration_bounds = array<i64: 1>, scalar_prefetch = 0 : i64, scratch_operands = 0 : i64, tpu.core_type = #tpu.core_type<tc>, window_params = [{transform_indices = @transform_0, window_bounds = array<i64: 8, 137>}, {transform_indices = @transform_1, window_bounds = array<i64: 8, 1>}, {pipeline_mode = #tpu.pipeline_mode<synchronous>, transform_indices = @transform_2, window_bounds = array<i64: 137, 2816>}, {pipeline_mode = #tpu.pipeline_mode<synchronous>, transform_indices = @transform_3, window_bounds = array<i64: 2816, 80>}, {pipeline_mode = #tpu.pipeline_mode<synchronous>, transform_indices = @transform_4, window_bounds = array<i64: 1, 80>}, {pipeline_mode = #tpu.pipeline_mode<synchronous>, transform_indices = @transform_5, window_bounds = array<i64: 80, 40>}, {pipeline_mode = #tpu.pipeline_mode<synchronous>, transform_indices = @transform_6, window_bounds = array<i64: 1, 40>}, {pipeline_mode = #tpu.pipeline_mode<synchronous>, transform_indices = @transform_7, window_bounds = array<i64: 40, 40>}, {pipeline_mode = #tpu.pipeline_mode<synchronous>, transform_indices = @transform_8, window_bounds = array<i64: 1, 40>}, {pipeline_mode = #tpu.pipeline_mode<synchronous>, transform_indices = @transform_9, window_bounds = array<i64: 1, 40>}, {pipeline_mode = #tpu.pipeline_mode<synchronous>, transform_indices = @transform_10, window_bounds = array<i64: 1, 40>}, {pipeline_mode = #tpu.pipeline_mode<synchronous>, transform_indices = @transform_11, window_bounds = array<i64: 1, 40>}, {pipeline_mode = #tpu.pipeline_mode<synchronous>, transform_indices = @transform_12, window_bounds = array<i64: 1, 40>}, {pipeline_mode = #tpu.pipeline_mode<synchronous>, transform_indices = @transform_13, window_bounds = array<i64: 1, 1>}, {transform_indices = @transform_14, window_bounds = array<i64: 8, 1>}]} {
    %c0 = arith.constant 0 : index
    %c0_0 = arith.constant 0 : index
    %0 = vector.load %arg1[%c0, %c0_0] : memref<8x137xbf16, #tpu.memory_space<vmem>>, vector<8x137xbf16>
    %c0_1 = arith.constant 0 : index
    %c0_2 = arith.constant 0 : index
    %1 = vector.load %arg5[%c0_1, %c0_2] : memref<1x80xf32, #tpu.memory_space<vmem>>, vector<1x80xf32>
    %2 = vector.shape_cast %1 : vector<1x80xf32> to vector<1x80xf32>
    %3 = vector.broadcast %2 : vector<1x80xf32> to vector<8x80xf32>
    %c0_i32 = arith.constant 0 : i32
    %c256_i32 = arith.constant 256 : i32
    %4 = arith.muli %c0_i32, %c256_i32 : i32
    %5 = tpu.assume_multiple %4, 256 : i32
    %c0_3 = arith.constant 0 : index
    %6 = arith.index_cast %5 : i32 to index
    %7 = vector.load %arg3[%c0_3, %6] : memref<137x2816xbf16, #tpu.memory_space<vmem>>, vector<137x256xbf16>
    %cst = arith.constant dense<0.000000e+00> : vector<8x256xf32>
    %8 = tpu.matmul %0, %7, %cst {dimension_numbers = #tpu.dot_dimension_numbers<[1], [0], [0], [1], [0, 0, 1, 1], [], []>} : vector<8x137xbf16>, vector<137x256xbf16>, vector<8x256xf32> -> vector<8x256xf32>
    %cst_4 = arith.constant 0.000000e+00 : f32
    %9 = vector.broadcast %cst_4 : f32 to vector<8x256xf32>
    %10 = arith.maximumf %8, %9 : vector<8x256xf32>
    %11 = arith.truncf %10 : vector<8x256xf32> to vector<8x256xbf16>
    %12 = arith.index_cast %5 : i32 to index
    %c0_5 = arith.constant 0 : index
    %13 = vector.load %arg4[%12, %c0_5] : memref<2816x80xbf16, #tpu.memory_space<vmem>>, vector<256x80xbf16>
    %cst_6 = arith.constant dense<0.000000e+00> : vector<8x80xf32>
    %14 = tpu.matmul %11, %13, %cst_6 {dimension_numbers = #tpu.dot_dimension_numbers<[1], [0], [0], [1], [0, 0, 1, 1], [], []>} : vector<8x256xbf16>, vector<256x80xbf16>, vector<8x80xf32> -> vector<8x80xf32>
    %15 = arith.addf %3, %14 : vector<8x80xf32>
    %c1_i32 = arith.constant 1 : i32
    %c256_i32_7 = arith.constant 256 : i32
    %16 = arith.muli %c1_i32, %c256_i32_7 : i32
    %17 = tpu.assume_multiple %16, 256 : i32
    %c0_8 = arith.constant 0 : index
    %18 = arith.index_cast %17 : i32 to index
    %19 = vector.load %arg3[%c0_8, %18] : memref<137x2816xbf16, #tpu.memory_space<vmem>>, vector<137x256xbf16>
    %cst_9 = arith.constant dense<0.000000e+00> : vector<8x256xf32>
    %20 = tpu.matmul %0, %19, %cst_9 {dimension_numbers = #tpu.dot_dimension_numbers<[1], [0], [0], [1], [0, 0, 1, 1], [], []>} : vector<8x137xbf16>, vector<137x256xbf16>, vector<8x256xf32> -> vector<8x256xf32>
    %cst_10 = arith.constant 0.000000e+00 : f32
    %21 = vector.broadcast %cst_10 : f32 to vector<8x256xf32>
    %22 = arith.maximumf %20, %21 : vector<8x256xf32>
    %23 = arith.truncf %22 : vector<8x256xf32> to vector<8x256xbf16>
    %24 = arith.index_cast %17 : i32 to index
    %c0_11 = arith.constant 0 : index
    %25 = vector.load %arg4[%24, %c0_11] : memref<2816x80xbf16, #tpu.memory_space<vmem>>, vector<256x80xbf16>
    %cst_12 = arith.constant dense<0.000000e+00> : vector<8x80xf32>
    %26 = tpu.matmul %23, %25, %cst_12 {dimension_numbers = #tpu.dot_dimension_numbers<[1], [0], [0], [1], [0, 0, 1, 1], [], []>} : vector<8x256xbf16>, vector<256x80xbf16>, vector<8x80xf32> -> vector<8x80xf32>
    %27 = arith.addf %15, %26 : vector<8x80xf32>
    %c2_i32 = arith.constant 2 : i32
    %c256_i32_13 = arith.constant 256 : i32
    %28 = arith.muli %c2_i32, %c256_i32_13 : i32
    %29 = tpu.assume_multiple %28, 256 : i32
    %c0_14 = arith.constant 0 : index
    %30 = arith.index_cast %29 : i32 to index
    %31 = vector.load %arg3[%c0_14, %30] : memref<137x2816xbf16, #tpu.memory_space<vmem>>, vector<137x256xbf16>
    %cst_15 = arith.constant dense<0.000000e+00> : vector<8x256xf32>
    %32 = tpu.matmul %0, %31, %cst_15 {dimension_numbers = #tpu.dot_dimension_numbers<[1], [0], [0], [1], [0, 0, 1, 1], [], []>} : vector<8x137xbf16>, vector<137x256xbf16>, vector<8x256xf32> -> vector<8x256xf32>
    %cst_16 = arith.constant 0.000000e+00 : f32
    %33 = vector.broadcast %cst_16 : f32 to vector<8x256xf32>
    %34 = arith.maximumf %32, %33 : vector<8x256xf32>
    %35 = arith.truncf %34 : vector<8x256xf32> to vector<8x256xbf16>
    %36 = arith.index_cast %29 : i32 to index
    %c0_17 = arith.constant 0 : index
    %37 = vector.load %arg4[%36, %c0_17] : memref<2816x80xbf16, #tpu.memory_space<vmem>>, vector<256x80xbf16>
    %cst_18 = arith.constant dense<0.000000e+00> : vector<8x80xf32>
    %38 = tpu.matmul %35, %37, %cst_18 {dimension_numbers = #tpu.dot_dimension_numbers<[1], [0], [0], [1], [0, 0, 1, 1], [], []>} : vector<8x256xbf16>, vector<256x80xbf16>, vector<8x80xf32> -> vector<8x80xf32>
    %39 = arith.addf %27, %38 : vector<8x80xf32>
    %c3_i32 = arith.constant 3 : i32
    %c256_i32_19 = arith.constant 256 : i32
    %40 = arith.muli %c3_i32, %c256_i32_19 : i32
    %41 = tpu.assume_multiple %40, 256 : i32
    %c0_20 = arith.constant 0 : index
    %42 = arith.index_cast %41 : i32 to index
    %43 = vector.load %arg3[%c0_20, %42] : memref<137x2816xbf16, #tpu.memory_space<vmem>>, vector<137x256xbf16>
    %cst_21 = arith.constant dense<0.000000e+00> : vector<8x256xf32>
    %44 = tpu.matmul %0, %43, %cst_21 {dimension_numbers = #tpu.dot_dimension_numbers<[1], [0], [0], [1], [0, 0, 1, 1], [], []>} : vector<8x137xbf16>, vector<137x256xbf16>, vector<8x256xf32> -> vector<8x256xf32>
    %cst_22 = arith.constant 0.000000e+00 : f32
    %45 = vector.broadcast %cst_22 : f32 to vector<8x256xf32>
    %46 = arith.maximumf %44, %45 : vector<8x256xf32>
    %47 = arith.truncf %46 : vector<8x256xf32> to vector<8x256xbf16>
    %48 = arith.index_cast %41 : i32 to index
    %c0_23 = arith.constant 0 : index
    %49 = vector.load %arg4[%48, %c0_23] : memref<2816x80xbf16, #tpu.memory_space<vmem>>, vector<256x80xbf16>
    %cst_24 = arith.constant dense<0.000000e+00> : vector<8x80xf32>
    %50 = tpu.matmul %47, %49, %cst_24 {dimension_numbers = #tpu.dot_dimension_numbers<[1], [0], [0], [1], [0, 0, 1, 1], [], []>} : vector<8x256xbf16>, vector<256x80xbf16>, vector<8x80xf32> -> vector<8x80xf32>
    %51 = arith.addf %39, %50 : vector<8x80xf32>
    %c4_i32 = arith.constant 4 : i32
    %c256_i32_25 = arith.constant 256 : i32
    %52 = arith.muli %c4_i32, %c256_i32_25 : i32
    %53 = tpu.assume_multiple %52, 256 : i32
    %c0_26 = arith.constant 0 : index
    %54 = arith.index_cast %53 : i32 to index
    %55 = vector.load %arg3[%c0_26, %54] : memref<137x2816xbf16, #tpu.memory_space<vmem>>, vector<137x256xbf16>
    %cst_27 = arith.constant dense<0.000000e+00> : vector<8x256xf32>
    %56 = tpu.matmul %0, %55, %cst_27 {dimension_numbers = #tpu.dot_dimension_numbers<[1], [0], [0], [1], [0, 0, 1, 1], [], []>} : vector<8x137xbf16>, vector<137x256xbf16>, vector<8x256xf32> -> vector<8x256xf32>
    %cst_28 = arith.constant 0.000000e+00 : f32
    %57 = vector.broadcast %cst_28 : f32 to vector<8x256xf32>
    %58 = arith.maximumf %56, %57 : vector<8x256xf32>
    %59 = arith.truncf %58 : vector<8x256xf32> to vector<8x256xbf16>
    %60 = arith.index_cast %53 : i32 to index
    %c0_29 = arith.constant 0 : index
    %61 = vector.load %arg4[%60, %c0_29] : memref<2816x80xbf16, #tpu.memory_space<vmem>>, vector<256x80xbf16>
    %cst_30 = arith.constant dense<0.000000e+00> : vector<8x80xf32>
    %62 = tpu.matmul %59, %61, %cst_30 {dimension_numbers = #tpu.dot_dimension_numbers<[1], [0], [0], [1], [0, 0, 1, 1], [], []>} : vector<8x256xbf16>, vector<256x80xbf16>, vector<8x80xf32> -> vector<8x80xf32>
    %63 = arith.addf %51, %62 : vector<8x80xf32>
    %c5_i32 = arith.constant 5 : i32
    %c256_i32_31 = arith.constant 256 : i32
    %64 = arith.muli %c5_i32, %c256_i32_31 : i32
    %65 = tpu.assume_multiple %64, 256 : i32
    %c0_32 = arith.constant 0 : index
    %66 = arith.index_cast %65 : i32 to index
    %67 = vector.load %arg3[%c0_32, %66] : memref<137x2816xbf16, #tpu.memory_space<vmem>>, vector<137x256xbf16>
    %cst_33 = arith.constant dense<0.000000e+00> : vector<8x256xf32>
    %68 = tpu.matmul %0, %67, %cst_33 {dimension_numbers = #tpu.dot_dimension_numbers<[1], [0], [0], [1], [0, 0, 1, 1], [], []>} : vector<8x137xbf16>, vector<137x256xbf16>, vector<8x256xf32> -> vector<8x256xf32>
    %cst_34 = arith.constant 0.000000e+00 : f32
    %69 = vector.broadcast %cst_34 : f32 to vector<8x256xf32>
    %70 = arith.maximumf %68, %69 : vector<8x256xf32>
    %71 = arith.truncf %70 : vector<8x256xf32> to vector<8x256xbf16>
    %72 = arith.index_cast %65 : i32 to index
    %c0_35 = arith.constant 0 : index
    %73 = vector.load %arg4[%72, %c0_35] : memref<2816x80xbf16, #tpu.memory_space<vmem>>, vector<256x80xbf16>
    %cst_36 = arith.constant dense<0.000000e+00> : vector<8x80xf32>
    %74 = tpu.matmul %71, %73, %cst_36 {dimension_numbers = #tpu.dot_dimension_numbers<[1], [0], [0], [1], [0, 0, 1, 1], [], []>} : vector<8x256xbf16>, vector<256x80xbf16>, vector<8x80xf32> -> vector<8x80xf32>
    %75 = arith.addf %63, %74 : vector<8x80xf32>
    %c6_i32 = arith.constant 6 : i32
    %c256_i32_37 = arith.constant 256 : i32
    %76 = arith.muli %c6_i32, %c256_i32_37 : i32
    %77 = tpu.assume_multiple %76, 256 : i32
    %c0_38 = arith.constant 0 : index
    %78 = arith.index_cast %77 : i32 to index
    %79 = vector.load %arg3[%c0_38, %78] : memref<137x2816xbf16, #tpu.memory_space<vmem>>, vector<137x256xbf16>
    %cst_39 = arith.constant dense<0.000000e+00> : vector<8x256xf32>
    %80 = tpu.matmul %0, %79, %cst_39 {dimension_numbers = #tpu.dot_dimension_numbers<[1], [0], [0], [1], [0, 0, 1, 1], [], []>} : vector<8x137xbf16>, vector<137x256xbf16>, vector<8x256xf32> -> vector<8x256xf32>
    %cst_40 = arith.constant 0.000000e+00 : f32
    %81 = vector.broadcast %cst_40 : f32 to vector<8x256xf32>
    %82 = arith.maximumf %80, %81 : vector<8x256xf32>
    %83 = arith.truncf %82 : vector<8x256xf32> to vector<8x256xbf16>
    %84 = arith.index_cast %77 : i32 to index
    %c0_41 = arith.constant 0 : index
    %85 = vector.load %arg4[%84, %c0_41] : memref<2816x80xbf16, #tpu.memory_space<vmem>>, vector<256x80xbf16>
    %cst_42 = arith.constant dense<0.000000e+00> : vector<8x80xf32>
    %86 = tpu.matmul %83, %85, %cst_42 {dimension_numbers = #tpu.dot_dimension_numbers<[1], [0], [0], [1], [0, 0, 1, 1], [], []>} : vector<8x256xbf16>, vector<256x80xbf16>, vector<8x80xf32> -> vector<8x80xf32>
    %87 = arith.addf %75, %86 : vector<8x80xf32>
    %c7_i32 = arith.constant 7 : i32
    %c256_i32_43 = arith.constant 256 : i32
    %88 = arith.muli %c7_i32, %c256_i32_43 : i32
    %89 = tpu.assume_multiple %88, 256 : i32
    %c0_44 = arith.constant 0 : index
    %90 = arith.index_cast %89 : i32 to index
    %91 = vector.load %arg3[%c0_44, %90] : memref<137x2816xbf16, #tpu.memory_space<vmem>>, vector<137x256xbf16>
    %cst_45 = arith.constant dense<0.000000e+00> : vector<8x256xf32>
    %92 = tpu.matmul %0, %91, %cst_45 {dimension_numbers = #tpu.dot_dimension_numbers<[1], [0], [0], [1], [0, 0, 1, 1], [], []>} : vector<8x137xbf16>, vector<137x256xbf16>, vector<8x256xf32> -> vector<8x256xf32>
    %cst_46 = arith.constant 0.000000e+00 : f32
    %93 = vector.broadcast %cst_46 : f32 to vector<8x256xf32>
    %94 = arith.maximumf %92, %93 : vector<8x256xf32>
    %95 = arith.truncf %94 : vector<8x256xf32> to vector<8x256xbf16>
    %96 = arith.index_cast %89 : i32 to index
    %c0_47 = arith.constant 0 : index
    %97 = vector.load %arg4[%96, %c0_47] : memref<2816x80xbf16, #tpu.memory_space<vmem>>, vector<256x80xbf16>
    %cst_48 = arith.constant dense<0.000000e+00> : vector<8x80xf32>
    %98 = tpu.matmul %95, %97, %cst_48 {dimension_numbers = #tpu.dot_dimension_numbers<[1], [0], [0], [1], [0, 0, 1, 1], [], []>} : vector<8x256xbf16>, vector<256x80xbf16>, vector<8x80xf32> -> vector<8x80xf32>
    %99 = arith.addf %87, %98 : vector<8x80xf32>
    %c8_i32 = arith.constant 8 : i32
    %c256_i32_49 = arith.constant 256 : i32
    %100 = arith.muli %c8_i32, %c256_i32_49 : i32
    %101 = tpu.assume_multiple %100, 256 : i32
    %c0_50 = arith.constant 0 : index
    %102 = arith.index_cast %101 : i32 to index
    %103 = vector.load %arg3[%c0_50, %102] : memref<137x2816xbf16, #tpu.memory_space<vmem>>, vector<137x256xbf16>
    %cst_51 = arith.constant dense<0.000000e+00> : vector<8x256xf32>
    %104 = tpu.matmul %0, %103, %cst_51 {dimension_numbers = #tpu.dot_dimension_numbers<[1], [0], [0], [1], [0, 0, 1, 1], [], []>} : vector<8x137xbf16>, vector<137x256xbf16>, vector<8x256xf32> -> vector<8x256xf32>
    %cst_52 = arith.constant 0.000000e+00 : f32
    %105 = vector.broadcast %cst_52 : f32 to vector<8x256xf32>
    %106 = arith.maximumf %104, %105 : vector<8x256xf32>
    %107 = arith.truncf %106 : vector<8x256xf32> to vector<8x256xbf16>
    %108 = arith.index_cast %101 : i32 to index
    %c0_53 = arith.constant 0 : index
    %109 = vector.load %arg4[%108, %c0_53] : memref<2816x80xbf16, #tpu.memory_space<vmem>>, vector<256x80xbf16>
    %cst_54 = arith.constant dense<0.000000e+00> : vector<8x80xf32>
    %110 = tpu.matmul %107, %109, %cst_54 {dimension_numbers = #tpu.dot_dimension_numbers<[1], [0], [0], [1], [0, 0, 1, 1], [], []>} : vector<8x256xbf16>, vector<256x80xbf16>, vector<8x80xf32> -> vector<8x80xf32>
    %111 = arith.addf %99, %110 : vector<8x80xf32>
    %c9_i32 = arith.constant 9 : i32
    %c256_i32_55 = arith.constant 256 : i32
    %112 = arith.muli %c9_i32, %c256_i32_55 : i32
    %113 = tpu.assume_multiple %112, 256 : i32
    %c0_56 = arith.constant 0 : index
    %114 = arith.index_cast %113 : i32 to index
    %115 = vector.load %arg3[%c0_56, %114] : memref<137x2816xbf16, #tpu.memory_space<vmem>>, vector<137x256xbf16>
    %cst_57 = arith.constant dense<0.000000e+00> : vector<8x256xf32>
    %116 = tpu.matmul %0, %115, %cst_57 {dimension_numbers = #tpu.dot_dimension_numbers<[1], [0], [0], [1], [0, 0, 1, 1], [], []>} : vector<8x137xbf16>, vector<137x256xbf16>, vector<8x256xf32> -> vector<8x256xf32>
    %cst_58 = arith.constant 0.000000e+00 : f32
    %117 = vector.broadcast %cst_58 : f32 to vector<8x256xf32>
    %118 = arith.maximumf %116, %117 : vector<8x256xf32>
    %119 = arith.truncf %118 : vector<8x256xf32> to vector<8x256xbf16>
    %120 = arith.index_cast %113 : i32 to index
    %c0_59 = arith.constant 0 : index
    %121 = vector.load %arg4[%120, %c0_59] : memref<2816x80xbf16, #tpu.memory_space<vmem>>, vector<256x80xbf16>
    %cst_60 = arith.constant dense<0.000000e+00> : vector<8x80xf32>
    %122 = tpu.matmul %119, %121, %cst_60 {dimension_numbers = #tpu.dot_dimension_numbers<[1], [0], [0], [1], [0, 0, 1, 1], [], []>} : vector<8x256xbf16>, vector<256x80xbf16>, vector<8x80xf32> -> vector<8x80xf32>
    %123 = arith.addf %111, %122 : vector<8x80xf32>
    %c10_i32 = arith.constant 10 : i32
    %c256_i32_61 = arith.constant 256 : i32
    %124 = arith.muli %c10_i32, %c256_i32_61 : i32
    %125 = tpu.assume_multiple %124, 256 : i32
    %c0_62 = arith.constant 0 : index
    %126 = arith.index_cast %125 : i32 to index
    %127 = vector.load %arg3[%c0_62, %126] : memref<137x2816xbf16, #tpu.memory_space<vmem>>, vector<137x256xbf16>
    %cst_63 = arith.constant dense<0.000000e+00> : vector<8x256xf32>
    %128 = tpu.matmul %0, %127, %cst_63 {dimension_numbers = #tpu.dot_dimension_numbers<[1], [0], [0], [1], [0, 0, 1, 1], [], []>} : vector<8x137xbf16>, vector<137x256xbf16>, vector<8x256xf32> -> vector<8x256xf32>
    %cst_64 = arith.constant 0.000000e+00 : f32
    %129 = vector.broadcast %cst_64 : f32 to vector<8x256xf32>
    %130 = arith.maximumf %128, %129 : vector<8x256xf32>
    %131 = arith.truncf %130 : vector<8x256xf32> to vector<8x256xbf16>
    %132 = arith.index_cast %125 : i32 to index
    %c0_65 = arith.constant 0 : index
    %133 = vector.load %arg4[%132, %c0_65] : memref<2816x80xbf16, #tpu.memory_space<vmem>>, vector<256x80xbf16>
    %cst_66 = arith.constant dense<0.000000e+00> : vector<8x80xf32>
    %134 = tpu.matmul %131, %133, %cst_66 {dimension_numbers = #tpu.dot_dimension_numbers<[1], [0], [0], [1], [0, 0, 1, 1], [], []>} : vector<8x256xbf16>, vector<256x80xbf16>, vector<8x80xf32> -> vector<8x80xf32>
    %135 = arith.addf %123, %134 : vector<8x80xf32>
    %c11_i32 = arith.constant 11 : i32
    %cst_67 = arith.constant 0.000000e+00 : f32
    %136 = vector.broadcast %cst_67 : f32 to vector<8x80xf32>
    %137 = arith.maximumf %135, %136 : vector<8x80xf32>
    %138 = arith.truncf %137 : vector<8x80xf32> to vector<8x80xbf16>
    %c0_68 = arith.constant 0 : index
    %c0_69 = arith.constant 0 : index
    %139 = vector.load %arg6[%c0_68, %c0_69] : memref<80x40xbf16, #tpu.memory_space<vmem>>, vector<80x40xbf16>
    %cst_70 = arith.constant dense<0.000000e+00> : vector<8x40xf32>
    %140 = tpu.matmul %138, %139, %cst_70 {dimension_numbers = #tpu.dot_dimension_numbers<[1], [0], [0], [1], [0, 0, 1, 1], [], []>} : vector<8x80xbf16>, vector<80x40xbf16>, vector<8x40xf32> -> vector<8x40xf32>
    %c0_71 = arith.constant 0 : index
    %c0_72 = arith.constant 0 : index
    %141 = vector.load %arg7[%c0_71, %c0_72] : memref<1x40xf32, #tpu.memory_space<vmem>>, vector<1x40xf32>
    %142 = vector.broadcast %141 : vector<1x40xf32> to vector<8x40xf32>
    %143 = arith.addf %140, %142 : vector<8x40xf32>
    %cst_73 = arith.constant 0.000000e+00 : f32
    %144 = vector.broadcast %cst_73 : f32 to vector<8x40xf32>
    %145 = arith.maximumf %143, %144 : vector<8x40xf32>
    %146 = arith.truncf %145 : vector<8x40xf32> to vector<8x40xbf16>
    %c0_74 = arith.constant 0 : index
    %c0_75 = arith.constant 0 : index
    %147 = vector.load %arg8[%c0_74, %c0_75] : memref<40x40xbf16, #tpu.memory_space<vmem>>, vector<40x40xbf16>
    %cst_76 = arith.constant dense<0.000000e+00> : vector<8x40xf32>
    %148 = tpu.matmul %146, %147, %cst_76 {dimension_numbers = #tpu.dot_dimension_numbers<[1], [0], [0], [1], [0, 0, 1, 1], [], []>} : vector<8x40xbf16>, vector<40x40xbf16>, vector<8x40xf32> -> vector<8x40xf32>
    %c0_77 = arith.constant 0 : index
    %c0_78 = arith.constant 0 : index
    %149 = vector.load %arg9[%c0_77, %c0_78] : memref<1x40xf32, #tpu.memory_space<vmem>>, vector<1x40xf32>
    %150 = vector.broadcast %149 : vector<1x40xf32> to vector<8x40xf32>
    %151 = arith.addf %148, %150 : vector<8x40xf32>
    %cst_79 = arith.constant 0.000000e+00 : f32
    %152 = vector.broadcast %cst_79 : f32 to vector<8x40xf32>
    %153 = arith.maximumf %151, %152 : vector<8x40xf32>
    %c0_80 = arith.constant 0 : index
    %c0_81 = arith.constant 0 : index
    %154 = vector.load %arg2[%c0_80, %c0_81] : memref<8x1xf32, #tpu.memory_space<vmem>>, vector<8x1xf32>
    %c0_82 = arith.constant 0 : index
    %c0_83 = arith.constant 0 : index
    %155 = vector.load %arg10[%c0_82, %c0_83] : memref<1x40xf32, #tpu.memory_space<vmem>>, vector<1x40xf32>
    %156 = vector.broadcast %154 : vector<8x1xf32> to vector<8x40xf32>
    %157 = vector.broadcast %155 : vector<1x40xf32> to vector<8x40xf32>
    %158 = arith.mulf %156, %157 : vector<8x40xf32>
    %c0_84 = arith.constant 0 : index
    %c0_85 = arith.constant 0 : index
    %159 = vector.load %arg11[%c0_84, %c0_85] : memref<1x40xf32, #tpu.memory_space<vmem>>, vector<1x40xf32>
    %160 = vector.broadcast %159 : vector<1x40xf32> to vector<8x40xf32>
    %161 = arith.addf %158, %160 : vector<8x40xf32>
    %cst_86 = arith.constant 0.000000e+00 : f32
    %162 = vector.broadcast %cst_86 : f32 to vector<8x40xf32>
    %163 = arith.maximumf %161, %162 : vector<8x40xf32>
    %c0_87 = arith.constant 0 : index
    %c0_88 = arith.constant 0 : index
    %164 = vector.load %arg12[%c0_87, %c0_88] : memref<1x40xf32, #tpu.memory_space<vmem>>, vector<1x40xf32>
    %165 = vector.broadcast %164 : vector<1x40xf32> to vector<8x40xf32>
    %166 = arith.mulf %153, %165 : vector<8x40xf32>
    %cst_89 = arith.constant dense<0.000000e+00> : vector<8xf32>
    %167 = vector.multi_reduction <add>, %166, %cst_89 [1] : vector<8x40xf32> to vector<8xf32>
    %168 = vector.shape_cast %167 : vector<8xf32> to vector<8x1xf32>
    %c0_90 = arith.constant 0 : index
    %c0_91 = arith.constant 0 : index
    %169 = vector.load %arg13[%c0_90, %c0_91] : memref<1x40xf32, #tpu.memory_space<vmem>>, vector<1x40xf32>
    %170 = vector.broadcast %169 : vector<1x40xf32> to vector<8x40xf32>
    %171 = arith.mulf %163, %170 : vector<8x40xf32>
    %cst_92 = arith.constant dense<0.000000e+00> : vector<8xf32>
    %172 = vector.multi_reduction <add>, %171, %cst_92 [1] : vector<8x40xf32> to vector<8xf32>
    %173 = vector.shape_cast %172 : vector<8xf32> to vector<8x1xf32>
    %174 = arith.addf %168, %173 : vector<8x1xf32>
    %c0_93 = arith.constant 0 : index
    %c0_94 = arith.constant 0 : index
    %175 = vector.load %arg14[%c0_93, %c0_94] : memref<1x1xf32, #tpu.memory_space<vmem>>, vector<1x1xf32>
    %176 = vector.broadcast %175 : vector<1x1xf32> to vector<8x1xf32>
    %177 = arith.addf %174, %176 : vector<8x1xf32>
    %cst_95 = arith.constant 0.000000e+00 : f32
    %178 = vector.broadcast %cst_95 : f32 to vector<8x1xf32>
    %179 = arith.subf %178, %177 : vector<8x1xf32>
    %180 = math.exp %179 : vector<8x1xf32>
    %cst_96 = arith.constant 1.000000e+00 : f32
    %181 = vector.broadcast %cst_96 : f32 to vector<8x1xf32>
    %182 = arith.addf %181, %180 : vector<8x1xf32>
    %cst_97 = arith.constant 1.000000e+00 : f32
    %183 = vector.broadcast %cst_97 : f32 to vector<8x1xf32>
    %184 = arith.divf %183, %182 : vector<8x1xf32>
    %c0_98 = arith.constant 0 : index
    %c0_99 = arith.constant 0 : index
    %185 = vector.load %arg15[%c0_98, %c0_99] : memref<8x1xf32, #tpu.memory_space<vmem>>, vector<8x1xf32>
    tpu.vector_store %arg15[%c0_98, %c0_99], %184 {strides = array<i32>} : memref<8x1xf32, #tpu.memory_space<vmem>>, vector<8x1xf32>,
    return
  }
  func.func @transform_0(%arg0: i32) -> (i32, i32) {
    %c0_i32 = arith.constant 0 : i32
    %c0_i32_0 = arith.constant 0 : i32
    return %arg0, %c0_i32 : i32, i32
  }
  func.func @transform_1(%arg0: i32) -> (i32, i32) {
    %c0_i32 = arith.constant 0 : i32
    %c0_i32_0 = arith.constant 0 : i32
    return %arg0, %c0_i32 : i32, i32
  }
  func.func @transform_2(%arg0: i32) -> (i32, i32) {
    %c0_i32 = arith.constant 0 : i32
    %c0_i32_0 = arith.constant 0 : i32
    %c0_i32_1 = arith.constant 0 : i32
    return %c0_i32, %c0_i32_0 : i32, i32
  }
  func.func @transform_3(%arg0: i32) -> (i32, i32) {
    %c0_i32 = arith.constant 0 : i32
    %c0_i32_0 = arith.constant 0 : i32
    %c0_i32_1 = arith.constant 0 : i32
    return %c0_i32, %c0_i32_0 : i32, i32
  }
  func.func @transform_4(%arg0: i32) -> (i32, i32) {
    %c0_i32 = arith.constant 0 : i32
    %c0_i32_0 = arith.constant 0 : i32
    %c0_i32_1 = arith.constant 0 : i32
    return %c0_i32, %c0_i32_0 : i32, i32
  }
  func.func @transform_5(%arg0: i32) -> (i32, i32) {
    %c0_i32 = arith.constant 0 : i32
    %c0_i32_0 = arith.constant 0 : i32
    %c0_i32_1 = arith.constant 0 : i32
    return %c0_i32, %c0_i32_0 : i32, i32
  }
  func.func @transform_6(%arg0: i32) -> (i32, i32) {
    %c0_i32 = arith.constant 0 : i32
    %c0_i32_0 = arith.constant 0 : i32
    %c0_i32_1 = arith.constant 0 : i32
    return %c0_i32, %c0_i32_0 : i32, i32
  }
  func.func @transform_7(%arg0: i32) -> (i32, i32) {
    %c0_i32 = arith.constant 0 : i32
    %c0_i32_0 = arith.constant 0 : i32
    %c0_i32_1 = arith.constant 0 : i32
    return %c0_i32, %c0_i32_0 : i32, i32
  }
  func.func @transform_8(%arg0: i32) -> (i32, i32) {
    %c0_i32 = arith.constant 0 : i32
    %c0_i32_0 = arith.constant 0 : i32
    %c0_i32_1 = arith.constant 0 : i32
    return %c0_i32, %c0_i32_0 : i32, i32
  }
  func.func @transform_9(%arg0: i32) -> (i32, i32) {
    %c0_i32 = arith.constant 0 : i32
    %c0_i32_0 = arith.constant 0 : i32
    %c0_i32_1 = arith.constant 0 : i32
    return %c0_i32, %c0_i32_0 : i32, i32
  }
  func.func @transform_10(%arg0: i32) -> (i32, i32) {
    %c0_i32 = arith.constant 0 : i32
    %c0_i32_0 = arith.constant 0 : i32
    %c0_i32_1 = arith.constant 0 : i32
    return %c0_i32, %c0_i32_0 : i32, i32
  }
  func.func @transform_11(%arg0: i32) -> (i32, i32) {
    %c0_i32 = arith.constant 0 : i32
    %c0_i32_0 = arith.constant 0 : i32
    %c0_i32_1 = arith.constant 0 : i32
    return %c0_i32, %c0_i32_0 : i32, i32
  }
  func.func @transform_12(%arg0: i32) -> (i32, i32) {
    %c0_i32 = arith.constant 0 : i32
    %c0_i32_0 = arith.constant 0 : i32
    %c0_i32_1 = arith.constant 0 : i32
    return %c0_i32, %c0_i32_0 : i32, i32
  }
  func.func @transform_13(%arg0: i32) -> (i32, i32) {
    %c0_i32 = arith.constant 0 : i32
    %c0_i32_0 = arith.constant 0 : i32
    %c0_i32_1 = arith.constant 0 : i32
    return %c0_i32, %c0_i32_0 : i32, i32
  }
  func.func @transform_14(%arg0: i32) -> (i32, i32) {
    %c0_i32 = arith.constant 0 : i32
    %c0_i32_0 = arith.constant 0 : i32
    return %arg0, %c0_i32 : i32, i32
  }
}

</mosaic_0001>

<llo_original>
// kernel: deepcpf1_forward.1
$region0: #{deepcpf1_forward.1}
  #allocation0 [shape = 'u32[]', space=smem, size = 0x4, offset = 0x4, fixed_abs, tag = 'smem constant byte address 0x4 - core index']
  #allocation1 [shape = 'u32[72,128]{1,0:T(1,128)}', space=vmem, size = 0x9000, scoped, tag = 'internal scratch']
  #allocation2 [shape = 'f32[1,1]{1,0:T(1,128)S(1)}', space=vmem, size = 0x200, scoped, tag = 'scoped memory for deepcpf1_forward.1']
  %s0 = inlined_call_operand.vmem [shape: bf16[8,137], index: 0, kind: input, shape index: {}]
  %s1 = inlined_call_operand.vmem [shape: f32[8,1], index: 1, kind: input, shape index: {}]
  %s2 = inlined_call_operand.vmem [shape: bf16[137,2816], index: 2, kind: input, shape index: {}]
  %s3 = inlined_call_operand.vmem [shape: bf16[2816,80], index: 3, kind: input, shape index: {}]
  %s4 = inlined_call_operand.vmem [shape: f32[1,80], index: 4, kind: input, shape index: {}]
  %s5 = inlined_call_operand.vmem [shape: bf16[80,40], index: 5, kind: input, shape index: {}]
  %s6 = inlined_call_operand.vmem [shape: f32[1,40], index: 6, kind: input, shape index: {}]
  %s7 = inlined_call_operand.vmem [shape: bf16[40,40], index: 7, kind: input, shape index: {}]
  %s8 = inlined_call_operand.vmem [shape: f32[1,40], index: 8, kind: input, shape index: {}]
  %s9 = inlined_call_operand.vmem [shape: f32[1,40], index: 9, kind: input, shape index: {}]
  %s10 = inlined_call_operand.vmem [shape: f32[1,40], index: 10, kind: input, shape index: {}]
  %s11 = inlined_call_operand.vmem [shape: f32[1,40], index: 11, kind: input, shape index: {}]
  %s12 = inlined_call_operand.vmem [shape: f32[1,40], index: 12, kind: input, shape index: {}]
  %s13 = inlined_call_operand.<no memory space> [shape: f32[1,1], index: 13, kind: input, shape index: {}]
  %s14 = inlined_call_operand.vmem [shape: f32[8,1], index: 14, kind: output, shape index: {}]
  %s15 = sld [smem:[#allocation0]]
  $region66: #{deepcpf1_forward.1} parent=0
    _
  %s17 = ssub.s32 1, %s15
  %s18 = scalar_select 0, %s17, %s15
  %v19 = vstv %s13
  %20 = vst [vmem:[#allocation2] sm:$0x1] %v19
  // Predicated region
  $region2: #{deepcpf1_forward.1} parent=0 // pred_check
    _
  $region3: #{deepcpf1_forward.1} parent=0 // pred_check_branch
    %22 = sbr.rel (0) target = $region5
  $region4: #{deepcpf1_forward.1} parent=0 // pred_region
    _
  $region5: #{deepcpf1_forward.1} parent=0 // pred_fallthru
    _
  // Predicated region
  $region6: #{deepcpf1_forward.1} parent=0 // pred_check
    _
  $region7: #{deepcpf1_forward.1} parent=0 // pred_check_branch
    %24 = sbr.rel (0) target = $region9
  $region8: #{deepcpf1_forward.1} parent=0 // pred_region
    _
  $region9: #{deepcpf1_forward.1} parent=0 // pred_fallthru
    _
  // Predicated region
  $region10: #{deepcpf1_forward.1} parent=0 // pred_check
    _
  $region11: #{deepcpf1_forward.1} parent=0 // pred_check_branch
    %26 = sbr.rel (0) target = $region13
  $region12: #{deepcpf1_forward.1} parent=0 // pred_region
    _
  $region13: #{deepcpf1_forward.1} parent=0 // pred_fallthru
    _
  // Predicated region
  $region14: #{deepcpf1_forward.1} parent=0 // pred_check
    _
  $region15: #{deepcpf1_forward.1} parent=0 // pred_check_branch
    %28 = sbr.rel (0) target = $region17
  $region16: #{deepcpf1_forward.1} parent=0 // pred_region
    _
  $region17: #{deepcpf1_forward.1} parent=0 // pred_fallthru
    _
  // Predicated region
  $region18: #{deepcpf1_forward.1} parent=0 // pred_check
    _
  $region19: #{deepcpf1_forward.1} parent=0 // pred_check_branch
    %30 = sbr.rel (0) target = $region21
  $region20: #{deepcpf1_forward.1} parent=0 // pred_region
    _
  $region21: #{deepcpf1_forward.1} parent=0 // pred_fallthru
    _
  // Predicated region
  $region22: #{deepcpf1_forward.1} parent=0 // pred_check
    _
  $region23: #{deepcpf1_forward.1} parent=0 // pred_check_branch
    %32 = sbr.rel (0) target = $region25
  $region24: #{deepcpf1_forward.1} parent=0 // pred_region
    _
  $region25: #{deepcpf1_forward.1} parent=0 // pred_fallthru
    _
  // Predicated region
  $region26: #{deepcpf1_forward.1} parent=0 // pred_check
    _
  $region27: #{deepcpf1_forward.1} parent=0 // pred_check_branch
    %34 = sbr.rel (0) target = $region29
  $region28: #{deepcpf1_forward.1} parent=0 // pred_region
    _
  $region29: #{deepcpf1_forward.1} parent=0 // pred_fallthru
    _
  // Predicated region
  $region30: #{deepcpf1_forward.1} parent=0 // pred_check
    _
  $region31: #{deepcpf1_forward.1} parent=0 // pred_check_branch
    %36 = sbr.rel (0) target = $region33
  $region32: #{deepcpf1_forward.1} parent=0 // pred_region
    _
  $region33: #{deepcpf1_forward.1} parent=0 // pred_fallthru
    _
  // Predicated region
  $region34: #{deepcpf1_forward.1} parent=0 // pred_check
    _
  $region35: #{deepcpf1_forward.1} parent=0 // pred_check_branch
    %38 = sbr.rel (0) target = $region37
  $region36: #{deepcpf1_forward.1} parent=0 // pred_region
    _
  $region37: #{deepcpf1_forward.1} parent=0 // pred_fallthru
    _
  // Predicated region
  $region38: #{deepcpf1_forward.1} parent=0 // pred_check
    _
  $region39: #{deepcpf1_forward.1} parent=0 // pred_check_branch
    %40 = sbr.rel (0) target = $region41
  $region40: #{deepcpf1_forward.1} parent=0 // pred_region
    _
  $region41: #{deepcpf1_forward.1} parent=0 // pred_fallthru
    _
  // Predicated region
  $region42: #{deepcpf1_forward.1} parent=0 // pred_check
    _
  $region43: #{deepcpf1_forward.1} parent=0 // pred_check_branch
    %42 = sbr.rel (0) target = $region45
  $region44: #{deepcpf1_forward.1} parent=0 // pred_region
    _
  $region45: #{deepcpf1_forward.1} parent=0 // pred_fallthru
    _
  // Predicated region
  $region46: #{deepcpf1_forward.1} parent=0 // pred_check
    _
  $region47: #{deepcpf1_forward.1} parent=0 // pred_check_branch
    %44 = sbr.rel (0) target = $region49
  $region48: #{deepcpf1_forward.1} parent=0 // pred_region
    _
  $region49: #{deepcpf1_forward.1} parent=0 // pred_fallthru
    _
  // Predicated region
  $region50: #{deepcpf1_forward.1} parent=0 // pred_check
    _
  $region51: #{deepcpf1_forward.1} parent=0 // pred_check_branch
    %46 = sbr.rel (0) target = $region53
  $region52: #{deepcpf1_forward.1} parent=0 // pred_region
    _
  $region53: #{deepcpf1_forward.1} parent=0 // pred_fallthru
    _
  // Predicated region
  $region54: #{deepcpf1_forward.1} parent=0 // pred_check
    _
  $region55: #{deepcpf1_forward.1} parent=0 // pred_check_branch
    %48 = sbr.rel (0) target = $region57
  $region56: #{deepcpf1_forward.1} parent=0 // pred_region
    _
  $region57: #{deepcpf1_forward.1} parent=0 // pred_fallthru
    _
  %v50 = vld [vmem:[%s0] sm:$0xff]
  %v51 = vld [vmem:[%s4] sm:$0x1]
  %v53 = vperm.slane %v51, 0
  %v55 = vld [vmem:[%s2] sm:$0xff]
  %v56 = vld [vmem:[%s2 + $0x58] sm:$0xff]
  %v57 = vld [vmem:[%s2 + $0xb0] sm:$0xff]
  %v58 = vld [vmem:[%s2 + $0x108] sm:$0xff]
  %v59 = vld [vmem:[%s2 + $0x160] sm:$0xff]
  %v60 = vld [vmem:[%s2 + $0x1b8] sm:$0xff]
  %v61 = vld [vmem:[%s2 + $0x210] sm:$0xff]
  %v62 = vld [vmem:[%s2 + $0x268] sm:$0xff]
  %v63 = vld [vmem:[%s2 + $0x2c0] sm:$0xff]
  %v64 = vld [vmem:[%s2 + $0x318] sm:$0xff]
  %v65 = vld [vmem:[%s2 + $0x370] sm:$0xff]
  %v66 = vld [vmem:[%s2 + $0x3c8] sm:$0xff]
  %v67 = vld [vmem:[%s2 + $0x420] sm:$0xff]
  %v68 = vld [vmem:[%s2 + $0x478] sm:$0xff]
  %v69 = vld [vmem:[%s2 + $0x4d0] sm:$0xff]
  %v70 = vld [vmem:[%s2 + $0x528] sm:$0xff]
  %v71 = vld [vmem:[%s2 + $0x580] sm:$0xff]
  %v72 = vld [vmem:[%s2 + $0x5d8] sm:$0x11]
  %v74 = vunpack.c.l.b16 %v50
  %v75 = vunpack.c.h.b16 %v50
  %v76 = vpack.c.b16 %v74, %v74
  %v77 = vpack.c.b16 %v75, %v75
  %v97 = vunpack.c.l.b16 %v55
  %v98 = vunpack.c.h.b16 %v55
  %v99 = vunpack.c.l.b16 %v56
  %v100 = vunpack.c.h.b16 %v56
  %v101 = vunpack.c.l.b16 %v57
  %v102 = vunpack.c.h.b16 %v57
  %v103 = vunpack.c.l.b16 %v58
  %v104 = vunpack.c.h.b16 %v58
  %v105 = vunpack.c.l.b16 %v59
  %v106 = vunpack.c.h.b16 %v59
  %v107 = vunpack.c.l.b16 %v60
  %v108 = vunpack.c.h.b16 %v60
  %v109 = vunpack.c.l.b16 %v61
  %v110 = vunpack.c.h.b16 %v61
  %v111 = vunpack.c.l.b16 %v62
  %v112 = vunpack.c.h.b16 %v62
  %v113 = vunpack.c.l.b16 %v63
  %v114 = vunpack.c.h.b16 %v63
  %v115 = vunpack.c.l.b16 %v64
  %v116 = vunpack.c.h.b16 %v64
  %v117 = vunpack.c.l.b16 %v65
  %v118 = vunpack.c.h.b16 %v65
  %v119 = vunpack.c.l.b16 %v66
  %v120 = vunpack.c.h.b16 %v66
  %v121 = vunpack.c.l.b16 %v67
  %v122 = vunpack.c.h.b16 %v67
  %v123 = vunpack.c.l.b16 %v68
  %v124 = vunpack.c.h.b16 %v68
  %v125 = vunpack.c.l.b16 %v69
  %v126 = vunpack.c.h.b16 %v69
  %v127 = vunpack.c.l.b16 %v70
  %v128 = vunpack.c.h.b16 %v70
  %v129 = vunpack.c.l.b16 %v71
  %v130 = vunpack.c.h.b16 %v71
  %v131 = vunpack.c.l.b16 %v72
  %v132 = vunpack.c.h.b16 %v72
  %v133 = vpack.c.b16 %v99, %v97
  %v134 = vpack.c.b16 %v100, %v98
  %v135 = vpack.c.b16 %v103, %v101
  %v136 = vpack.c.b16 %v104, %v102
  %v137 = vpack.c.b16 %v107, %v105
  %v138 = vpack.c.b16 %v108, %v106
  %v139 = vpack.c.b16 %v111, %v109
  %v140 = vpack.c.b16 %v112, %v110
  %v141 = vpack.c.b16 %v115, %v113
  %v142 = vpack.c.b16 %v116, %v114
  %v143 = vpack.c.b16 %v119, %v117
  %v144 = vpack.c.b16 %v120, %v118
  %v145 = vpack.c.b16 %v123, %v121
  %v146 = vpack.c.b16 %v124, %v122
  %v147 = vpack.c.b16 %v127, %v125
  %v148 = vpack.c.b16 %v128, %v126
  %v149 = vpack.c.b16 %v131, %v129
  %v150 = vpack.c.b16 %v132, %v130
  %vm167 = vcmask 72704
  %v169 = vsel %vm167, %v77, 0
  %vm171 = vcmask 1043456
  %vm172 = vcmask 1044480
  %v173 = vsel %vm171, 4294967295, 65535
  %v174 = vsel %vm172, %v173, 0
  %v176 = vand.u32 %v149, %v174
  %v179 = vand.u32 %v150, %v174
  %181 = vmatpush.bf16.msra.mxu0 %v147
  %182 = vmatpush.bf16.msra.mxu0 %v145
  %183 = vmatpush.bf16.msra.mxu0 %v143
  %184 = vmatpush.bf16.msra.mxu0 %v141
  %185 = vmatpush.bf16.msra.mxu0 %v139
  %186 = vmatpush.bf16.msra.mxu0 %v137
  %187 = vmatpush.bf16.msra.mxu0 %v135
  %188 = vmatpush.bf16.msra.mxu0 %v133
  %189 = vmatmul.bf16.gmra.mxu0 %v76
  %v190 = vpop.f32.mrf.mxu0
  %v191 = vadd.f32 0.0, %v190
  %v192 = vpop.f32.mrf.mxu0
  %193 = vdwg.mxu0
  %194 = vmatpush.bf16.msra.mxu0 0
  %195 = vmatpush.bf16.msra.mxu0 0
  %196 = vmatpush.bf16.msra.mxu0 0
  %197 = vmatpush.bf16.msra.mxu0 0
  %198 = vmatpush.bf16.msra.mxu0 0
  %199 = vmatpush.bf16.msra.mxu0 0
  %200 = vmatpush.bf16.msra.mxu0 0
  %201 = vmatpush.bf16.msra.mxu0 %v176
  %202 = vmatmul.bf16.gmra.mxu0 %v169
  %v203 = vpop.f32.mrf.mxu0
  %v204 = vadd.f32 %v191, %v203
  %v205 = vpop.f32.mrf.mxu0
  %206 = vdwg.mxu0
  %207 = vmatpush.bf16.msra.mxu0 %v148
  %208 = vmatpush.bf16.msra.mxu0 %v146
  %209 = vmatpush.bf16.msra.mxu0 %v144
  %210 = vmatpush.bf16.msra.mxu0 %v142
  %211 = vmatpush.bf16.msra.mxu0 %v140
  %212 = vmatpush.bf16.msra.mxu0 %v138
  %213 = vmatpush.bf16.msra.mxu0 %v136
  %214 = vmatpush.bf16.msra.mxu0 %v134
  %215 = vmatmul.bf16.gmra.mxu0 %v76
  %v216 = vpop.f32.mrf.mxu0
  %v217 = vadd.f32 0.0, %v216
  %v218 = vpop.f32.mrf.mxu0
  %219 = vdwg.mxu0
  %220 = vmatpush.bf16.msra.mxu0 0
  %221 = vmatpush.bf16.msra.mxu0 0
  %222 = vmatpush.bf16.msra.mxu0 0
  %223 = vmatpush.bf16.msra.mxu0 0
  %224 = vmatpush.bf16.msra.mxu0 0
  %225 = vmatpush.bf16.msra.mxu0 0
  %226 = vmatpush.bf16.msra.mxu0 0
  %227 = vmatpush.bf16.msra.mxu0 %v179
  %228 = vmatmul.bf16.gmra.mxu0 %v169
  %v229 = vpop.f32.mrf.mxu0
  %v230 = vadd.f32 %v217, %v229
  %v231 = vpop.f32.mrf.mxu0
  %232 = vdwg.mxu0
  %v233 = vmax.f32 %v204, 0.0
  %v234 = vmax.f32 %v230, 0.0
  %v235 = vpack.c.bf16 %v233, %v233
  %v236 = vpack.c.bf16 %v234, %v234
  %v237 = vld [vmem:[%s3] sm:$0xf]
  %v238 = vld [vmem:[%s3 + $0x4] sm:$0xf]
  %v239 = vld [vmem:[%s3 + $0x8] sm:$0xf]
  %v240 = vld [vmem:[%s3 + $0xc] sm:$0xf]
  %v241 = vld [vmem:[%s3 + $0x10] sm:$0xf]
  %v242 = vld [vmem:[%s3 + $0x14] sm:$0xf]
  %v243 = vld [vmem:[%s3 + $0x18] sm:$0xf]
  %v244 = vld [vmem:[%s3 + $0x1c] sm:$0xf]
  %v245 = vld [vmem:[%s3 + $0x20] sm:$0xf]
  %v246 = vld [vmem:[%s3 + $0x24] sm:$0xf]
  %v247 = vld [vmem:[%s3 + $0x28] sm:$0xf]
  %v248 = vld [vmem:[%s3 + $0x2c] sm:$0xf]
  %v249 = vld [vmem:[%s3 + $0x30] sm:$0xf]
  %v250 = vld [vmem:[%s3 + $0x34] sm:$0xf]
  %v251 = vld [vmem:[%s3 + $0x38] sm:$0xf]
  %v252 = vld [vmem:[%s3 + $0x3c] sm:$0xf]
  %v253 = vld [vmem:[%s3 + $0x40] sm:$0xf]
  %v254 = vld [vmem:[%s3 + $0x44] sm:$0xf]
  %v255 = vld [vmem:[%s3 + $0x48] sm:$0xf]
  %v256 = vld [vmem:[%s3 + $0x4c] sm:$0xf]
  %v257 = vld [vmem:[%s3 + $0x50] sm:$0xf]
  %v258 = vld [vmem:[%s3 + $0x54] sm:$0xf]
  %v259 = vld [vmem:[%s3 + $0x58] sm:$0xf]
  %v260 = vld [vmem:[%s3 + $0x5c] sm:$0xf]
  %v261 = vld [vmem:[%s3 + $0x60] sm:$0xf]
  %v262 = vld [vmem:[%s3 + $0x64] sm:$0xf]
  %v263 = vld [vmem:[%s3 + $0x68] sm:$0xf]
  %v264 = vld [vmem:[%s3 + $0x6c] sm:$0xf]
  %v265 = vld [vmem:[%s3 + $0x70] sm:$0xf]
  %v266 = vld [vmem:[%s3 + $0x74] sm:$0xf]
  %v267 = vld [vmem:[%s3 + $0x78] sm:$0xf]
  %v268 = vld [vmem:[%s3 + $0x7c] sm:$0xf]
  %v301 = vunpack.c.l.b16 %v237
  %v302 = vunpack.c.l.b16 %v238
  %v303 = vunpack.c.l.b16 %v239
  %v304 = vunpack.c.l.b16 %v240
  %v305 = vunpack.c.l.b16 %v241
  %v306 = vunpack.c.l.b16 %v242
  %v307 = vunpack.c.l.b16 %v243
  %v308 = vunpack.c.l.b16 %v244
  %v309 = vunpack.c.l.b16 %v245
  %v310 = vunpack.c.l.b16 %v246
  %v311 = vunpack.c.l.b16 %v247
  %v312 = vunpack.c.l.b16 %v248
  %v313 = vunpack.c.l.b16 %v249
  %v314 = vunpack.c.l.b16 %v250
  %v315 = vunpack.c.l.b16 %v251
  %v316 = vunpack.c.l.b16 %v252
  %v317 = vunpack.c.l.b16 %v253
  %v318 = vunpack.c.l.b16 %v254
  %v319 = vunpack.c.l.b16 %v255
  %v320 = vunpack.c.l.b16 %v256
  %v321 = vunpack.c.l.b16 %v257
  %v322 = vunpack.c.l.b16 %v258
  %v323 = vunpack.c.l.b16 %v259
  %v324 = vunpack.c.l.b16 %v260
  %v325 = vunpack.c.l.b16 %v261
  %v326 = vunpack.c.l.b16 %v262
  %v327 = vunpack.c.l.b16 %v263
  %v328 = vunpack.c.l.b16 %v264
  %v329 = vunpack.c.l.b16 %v265
  %v330 = vunpack.c.l.b16 %v266
  %v331 = vunpack.c.l.b16 %v267
  %v332 = vunpack.c.l.b16 %v268
  %v333 = vpack.c.b16 %v302, %v301
  %v334 = vpack.c.b16 %v304, %v303
  %v335 = vpack.c.b16 %v306, %v305
  %v336 = vpack.c.b16 %v308, %v307
  %v337 = vpack.c.b16 %v310, %v309
  %v338 = vpack.c.b16 %v312, %v311
  %v339 = vpack.c.b16 %v314, %v313
  %v340 = vpack.c.b16 %v316, %v315
  %v341 = vpack.c.b16 %v318, %v317
  %v342 = vpack.c.b16 %v320, %v319
  %v343 = vpack.c.b16 %v322, %v321
  %v344 = vpack.c.b16 %v324, %v323
  %v345 = vpack.c.b16 %v326, %v325
  %v346 = vpack.c.b16 %v328, %v327
  %v347 = vpack.c.b16 %v330, %v329
  %v348 = vpack.c.b16 %v332, %v331
  %365 = vmatpush.bf16.msra.mxu0 %v340
  %366 = vmatpush.bf16.msra.mxu0 %v339
  %367 = vmatpush.bf16.msra.mxu0 %v338
  %368 = vmatpush.bf16.msra.mxu0 %v337
  %369 = vmatpush.bf16.msra.mxu0 %v336
  %370 = vmatpush.bf16.msra.mxu0 %v335
  %371 = vmatpush.bf16.msra.mxu0 %v334
  %372 = vmatpush.bf16.msra.mxu0 %v333
  %373 = vmatmul.bf16.gmra.mxu0 %v235
  %v374 = vpop.f32.mrf.mxu0
  %v375 = vadd.f32 0.0, %v374
  %v376 = vpop.f32.mrf.mxu0
  %377 = vdwg.mxu0
  %378 = vmatpush.bf16.msra.mxu0 %v348
  %379 = vmatpush.bf16.msra.mxu0 %v347
  %380 = vmatpush.bf16.msra.mxu0 %v346
  %381 = vmatpush.bf16.msra.mxu0 %v345
  %382 = vmatpush.bf16.msra.mxu0 %v344
  %383 = vmatpush.bf16.msra.mxu0 %v343
  %384 = vmatpush.bf16.msra.mxu0 %v342
  %385 = vmatpush.bf16.msra.mxu0 %v341
  %386 = vmatmul.bf16.gmra.mxu0 %v236
  %v387 = vpop.f32.mrf.mxu0
  %v388 = vadd.f32 %v375, %v387
  %v389 = vpop.f32.mrf.mxu0
  %390 = vdwg.mxu0
  %v391 = vadd.f32 %v53, %v388
  %s392 = scalar_lea.vmem %s2, 8
  %v393 = vld [vmem:[%s392] sm:$0xff]
  %v394 = vld [vmem:[%s392 + $0x58] sm:$0xff]
  %v395 = vld [vmem:[%s392 + $0xb0] sm:$0xff]
  %v396 = vld [vmem:[%s392 + $0x108] sm:$0xff]
  %v397 = vld [vmem:[%s392 + $0x160] sm:$0xff]
  %v398 = vld [vmem:[%s392 + $0x1b8] sm:$0xff]
  %v399 = vld [vmem:[%s392 + $0x210] sm:$0xff]
  %v400 = vld [vmem:[%s392 + $0x268] sm:$0xff]
  %v401 = vld [vmem:[%s392 + $0x2c0] sm:$0xff]
  %v402 = vld [vmem:[%s392 + $0x318] sm:$0xff]
  %v403 = vld [vmem:[%s392 + $0x370] sm:$0xff]
  %v404 = vld [vmem:[%s392 + $0x3c8] sm:$0xff]
  %v405 = vld [vmem:[%s392 + $0x420] sm:$0xff]
  %v406 = vld [vmem:[%s392 + $0x478] sm:$0xff]
  %v407 = vld [vmem:[%s392 + $0x4d0] sm:$0xff]
  %v408 = vld [vmem:[%s392 + $0x528] sm:$0xff]
  %v409 = vld [vmem:[%s392 + $0x580] sm:$0xff]
  %v410 = vld [vmem:[%s392 + $0x5d8] sm:$0x11]
  %v429 = vunpack.c.l.b16 %v393
  %v430 = vunpack.c.h.b16 %v393
  %v431 = vunpack.c.l.b16 %v394
  %v432 = vunpack.c.h.b16 %v394
  %v433 = vunpack.c.l.b16 %v395
  %v434 = vunpack.c.h.b16 %v395
  %v435 = vunpack.c.l.b16 %v396
  %v436 = vunpack.c.h.b16 %v396
  %v437 = vunpack.c.l.b16 %v397
  %v438 = vunpack.c.h.b16 %v397
  %v439 = vunpack.c.l.b16 %v398
  %v440 = vunpack.c.h.b16 %v398
  %v441 = vunpack.c.l.b16 %v399
  %v442 = vunpack.c.h.b16 %v399
  %v443 = vunpack.c.l.b16 %v400
  %v444 = vunpack.c.h.b16 %v400
  %v445 = vunpack.c.l.b16 %v401
  %v446 = vunpack.c.h.b16 %v401
  %v447 = vunpack.c.l.b16 %v402
  %v448 = vunpack.c.h.b16 %v402
  %v449 = vunpack.c.l.b16 %v403
  %v450 = vunpack.c.h.b16 %v403
  %v451 = vunpack.c.l.b16 %v404
  %v452 = vunpack.c.h.b16 %v404
  %v453 = vunpack.c.l.b16 %v405
  %v454 = vunpack.c.h.b16 %v405
  %v455 = vunpack.c.l.b16 %v406
  %v456 = vunpack.c.h.b16 %v406
  %v457 = vunpack.c.l.b16 %v407
  %v458 = vunpack.c.h.b16 %v407
  %v459 = vunpack.c.l.b16 %v408
  %v460 = vunpack.c.h.b16 %v408
  %v461 = vunpack.c.l.b16 %v409
  %v462 = vunpack.c.h.b16 %v409
  %v463 = vunpack.c.l.b16 %v410
  %v464 = vunpack.c.h.b16 %v410
  %v465 = vpack.c.b16 %v431, %v429
  %v466 = vpack.c.b16 %v432, %v430
  %v467 = vpack.c.b16 %v435, %v433
  %v468 = vpack.c.b16 %v436, %v434
  %v469 = vpack.c.b16 %v439, %v437
  %v470 = vpack.c.b16 %v440, %v438
  %v471 = vpack.c.b16 %v443, %v441
  %v472 = vpack.c.b16 %v444, %v442
  %v473 = vpack.c.b16 %v447, %v445
  %v474 = vpack.c.b16 %v448, %v446
  %v475 = vpack.c.b16 %v451, %v449
  %v476 = vpack.c.b16 %v452, %v450
  %v477 = vpack.c.b16 %v455, %v453
  %v478 = vpack.c.b16 %v456, %v454
  %v479 = vpack.c.b16 %v459, %v457
  %v480 = vpack.c.b16 %v460, %v458
  %v481 = vpack.c.b16 %v463, %v461
  %v482 = vpack.c.b16 %v464, %v462
  %v500 = vand.u32 %v481, %v174
  %v503 = vand.u32 %v482, %v174
  %505 = vmatpush.bf16.msra.mxu0 %v479
  %506 = vmatpush.bf16.msra.mxu0 %v477
  %507 = vmatpush.bf16.msra.mxu0 %v475
  %508 = vmatpush.bf16.msra.mxu0 %v473
  %509 = vmatpush.bf16.msra.mxu0 %v471
  %510 = vmatpush.bf16.msra.mxu0 %v469
  %511 = vmatpush.bf16.msra.mxu0 %v467
  %512 = vmatpush.bf16.msra.mxu0 %v465
  %513 = vmatmul.bf16.gmra.mxu0 %v76
  %v514 = vpop.f32.mrf.mxu0
  %v515 = vadd.f32 0.0, %v514
  %v516 = vpop.f32.mrf.mxu0
  %517 = vdwg.mxu0
  %518 = vmatpush.bf16.msra.mxu0 0
  %519 = vmatpush.bf16.msra.mxu0 0
  %520 = vmatpush.bf16.msra.mxu0 0
  %521 = vmatpush.bf16.msra.mxu0 0
  %522 = vmatpush.bf16.msra.mxu0 0
  %523 = vmatpush.bf16.msra.mxu0 0
  %524 = vmatpush.bf16.msra.mxu0 0
  %525 = vmatpush.bf16.msra.mxu0 %v500
  %526 = vmatmul.bf16.gmra.mxu0 %v169
  %v527 = vpop.f32.mrf.mxu0
  %v528 = vadd.f32 %v515, %v527
  %v529 = vpop.f32.mrf.mxu0
  %530 = vdwg.mxu0
  %531 = vmatpush.bf16.msra.mxu0 %v480
  %532 = vmatpush.bf16.msra.mxu0 %v478
  %533 = vmatpush.bf16.msra.mxu0 %v476
  %534 = vmatpush.bf16.msra.mxu0 %v474
  %535 = vmatpush.bf16.msra.mxu0 %v472
  %536 = vmatpush.bf16.msra.mxu0 %v470
  %537 = vmatpush.bf16.msra.mxu0 %v468
  %538 = vmatpush.bf16.msra.mxu0 %v466
  %539 = vmatmul.bf16.gmra.mxu0 %v76
  %v540 = vpop.f32.mrf.mxu0
  %v541 = vadd.f32 0.0, %v540
  %v542 = vpop.f32.mrf.mxu0
  %543 = vdwg.mxu0
  %544 = vmatpush.bf16.msra.mxu0 0
  %545 = vmatpush.bf16.msra.mxu0 0
  %546 = vmatpush.bf16.msra.mxu0 0
  %547 = vmatpush.bf16.msra.mxu0 0
  %548 = vmatpush.bf16.msra.mxu0 0
  %549 = vmatpush.bf16.msra.mxu0 0
  %550 = vmatpush.bf16.msra.mxu0 0
  %551 = vmatpush.bf16.msra.mxu0 %v503
  %552 = vmatmul.bf16.gmra.mxu0 %v169
  %v553 = vpop.f32.mrf.mxu0
  %v554 = vadd.f32 %v541, %v553
  %v555 = vpop.f32.mrf.mxu0
  %556 = vdwg.mxu0
  %v557 = vmax.f32 %v528, 0.0
  %v558 = vmax.f32 %v554, 0.0
  %v559 = vpack.c.bf16 %v557, %v557
  %v560 = vpack.c.bf16 %v558, %v558
  %s561 = scalar_lea.vmem %s3, 128
  %v562 = vld [vmem:[%s561] sm:$0xf]
  %v563 = vld [vmem:[%s561 + $0x4] sm:$0xf]
  %v564 = vld [vmem:[%s561 + $0x8] sm:$0xf]
  %v565 = vld [vmem:[%s561 + $0xc] sm:$0xf]
  %v566 = vld [vmem:[%s561 + $0x10] sm:$0xf]
  %v567 = vld [vmem:[%s561 + $0x14] sm:$0xf]
  %v568 = vld [vmem:[%s561 + $0x18] sm:$0xf]
  %v569 = vld [vmem:[%s561 + $0x1c] sm:$0xf]
  %v570 = vld [vmem:[%s561 + $0x20] sm:$0xf]
  %v571 = vld [vmem:[%s561 + $0x24] sm:$0xf]
  %v572 = vld [vmem:[%s561 + $0x28] sm:$0xf]
  %v573 = vld [vmem:[%s561 + $0x2c] sm:$0xf]
  %v574 = vld [vmem:[%s561 + $0x30] sm:$0xf]
  %v575 = vld [vmem:[%s561 + $0x34] sm:$0xf]
  %v576 = vld [vmem:[%s561 + $0x38] sm:$0xf]
  %v577 = vld [vmem:[%s561 + $0x3c] sm:$0xf]
  %v578 = vld [vmem:[%s561 + $0x40] sm:$0xf]
  %v579 = vld [vmem:[%s561 + $0x44] sm:$0xf]
  %v580 = vld [vmem:[%s561 + $0x48] sm:$0xf]
  %v581 = vld [vmem:[%s561 + $0x4c] sm:$0xf]
  %v582 = vld [vmem:[%s561 + $0x50] sm:$0xf]
  %v583 = vld [vmem:[%s561 + $0x54] sm:$0xf]
  %v584 = vld [vmem:[%s561 + $0x58] sm:$0xf]
  %v585 = vld [vmem:[%s561 + $0x5c] sm:$0xf]
  %v586 = vld [vmem:[%s561 + $0x60] sm:$0xf]
  %v587 = vld [vmem:[%s561 + $0x64] sm:$0xf]
  %v588 = vld [vmem:[%s561 + $0x68] sm:$0xf]
  %v589 = vld [vmem:[%s561 + $0x6c] sm:$0xf]
  %v590 = vld [vmem:[%s561 + $0x70] sm:$0xf]
  %v591 = vld [vmem:[%s561 + $0x74] sm:$0xf]
  %v592 = vld [vmem:[%s561 + $0x78] sm:$0xf]
  %v593 = vld [vmem:[%s561 + $0x7c] sm:$0xf]
  %v626 = vunpack.c.l.b16 %v562
  %v627 = vunpack.c.l.b16 %v563
  %v628 = vunpack.c.l.b16 %v564
  %v629 = vunpack.c.l.b16 %v565
  %v630 = vunpack.c.l.b16 %v566
  %v631 = vunpack.c.l.b16 %v567
  %v632 = vunpack.c.l.b16 %v568
  %v633 = vunpack.c.l.b16 %v569
  %v634 = vunpack.c.l.b16 %v570
  %v635 = vunpack.c.l.b16 %v571
  %v636 = vunpack.c.l.b16 %v572
  %v637 = vunpack.c.l.b16 %v573
  %v638 = vunpack.c.l.b16 %v574
  %v639 = vunpack.c.l.b16 %v575
  %v640 = vunpack.c.l.b16 %v576
  %v641 = vunpack.c.l.b16 %v577
  %v642 = vunpack.c.l.b16 %v578
  %v643 = vunpack.c.l.b16 %v579
  %v644 = vunpack.c.l.b16 %v580
  %v645 = vunpack.c.l.b16 %v581
  %v646 = vunpack.c.l.b16 %v582
  %v647 = vunpack.c.l.b16 %v583
  %v648 = vunpack.c.l.b16 %v584
  %v649 = vunpack.c.l.b16 %v585
  %v650 = vunpack.c.l.b16 %v586
  %v651 = vunpack.c.l.b16 %v587
  %v652 = vunpack.c.l.b16 %v588
  %v653 = vunpack.c.l.b16 %v589
  %v654 = vunpack.c.l.b16 %v590
  %v655 = vunpack.c.l.b16 %v591
  %v656 = vunpack.c.l.b16 %v592
  %v657 = vunpack.c.l.b16 %v593
  %v658 = vpack.c.b16 %v627, %v626
  %v659 = vpack.c.b16 %v629, %v628
  %v660 = vpack.c.b16 %v631, %v630
  %v661 = vpack.c.b16 %v633, %v632
  %v662 = vpack.c.b16 %v635, %v634
  %v663 = vpack.c.b16 %v637, %v636
  %v664 = vpack.c.b16 %v639, %v638
  %v665 = vpack.c.b16 %v641, %v640
  %v666 = vpack.c.b16 %v643, %v642
  %v667 = vpack.c.b16 %v645, %v644
  %v668 = vpack.c.b16 %v647, %v646
  %v669 = vpack.c.b16 %v649, %v648
  %v670 = vpack.c.b16 %v651, %v650
  %v671 = vpack.c.b16 %v653, %v652
  %v672 = vpack.c.b16 %v655, %v654
  %v673 = vpack.c.b16 %v657, %v656
  %690 = vmatpush.bf16.msra.mxu0 %v665
  %691 = vmatpush.bf16.msra.mxu0 %v664
  %692 = vmatpush.bf16.msra.mxu0 %v663
  %693 = vmatpush.bf16.msra.mxu0 %v662
  %694 = vmatpush.bf16.msra.mxu0 %v661
  %695 = vmatpush.bf16.msra.mxu0 %v660
  %696 = vmatpush.bf16.msra.mxu0 %v659
  %697 = vmatpush.bf16.msra.mxu0 %v658
  %698 = vmatmul.bf16.gmra.mxu0 %v559
  %v699 = vpop.f32.mrf.mxu0
  %v700 = vadd.f32 0.0, %v699
  %v701 = vpop.f32.mrf.mxu0
  %702 = vdwg.mxu0
  %703 = vmatpush.bf16.msra.mxu0 %v673
  %704 = vmatpush.bf16.msra.mxu0 %v672
  %705 = vmatpush.bf16.msra.mxu0 %v671
  %706 = vmatpush.bf16.msra.mxu0 %v670
  %707 = vmatpush.bf16.msra.mxu0 %v669
  %708 = vmatpush.bf16.msra.mxu0 %v668
  %709 = vmatpush.bf16.msra.mxu0 %v667
  %710 = vmatpush.bf16.msra.mxu0 %v666
  %711 = vmatmul.bf16.gmra.mxu0 %v560
  %v712 = vpop.f32.mrf.mxu0
  %v713 = vadd.f32 %v700, %v712
  %v714 = vpop.f32.mrf.mxu0
  %715 = vdwg.mxu0
  %v716 = vadd.f32 %v391, %v713
  %s717 = scalar_lea.vmem %s2, 16
  %v718 = vld [vmem:[%s717] sm:$0xff]
  %v719 = vld [vmem:[%s717 + $0x58] sm:$0xff]
  %v720 = vld [vmem:[%s717 + $0xb0] sm:$0xff]
  %v721 = vld [vmem:[%s717 + $0x108] sm:$0xff]
  %v722 = vld [vmem:[%s717 + $0x160] sm:$0xff]
  %v723 = vld [vmem:[%s717 + $0x1b8] sm:$0xff]
  %v724 = vld [vmem:[%s717 + $0x210] sm:$0xff]
  %v725 = vld [vmem:[%s717 + $0x268] sm:$0xff]
  %v726 = vld [vmem:[%s717 + $0x2c0] sm:$0xff]
  %v727 = vld [vmem:[%s717 + $0x318] sm:$0xff]
  %v728 = vld [vmem:[%s717 + $0x370] sm:$0xff]
  %v729 = vld [vmem:[%s717 + $0x3c8] sm:$0xff]
  %v730 = vld [vmem:[%s717 + $0x420] sm:$0xff]
  %v731 = vld [vmem:[%s717 + $0x478] sm:$0xff]
  %v732 = vld [vmem:[%s717 + $0x4d0] sm:$0xff]
  %v733 = vld [vmem:[%s717 + $0x528] sm:$0xff]
  %v734 = vld [vmem:[%s717 + $0x580] sm:$0xff]
  %v735 = vld [vmem:[%s717 + $0x5d8] sm:$0x11]
  %v754 = vunpack.c.l.b16 %v718
  %v755 = vunpack.c.h.b16 %v718
  %v756 = vunpack.c.l.b16 %v719
  %v757 = vunpack.c.h.b16 %v719
  %v758 = vunpack.c.l.b16 %v720
  %v759 = vunpack.c.h.b16 %v720
  %v760 = vunpack.c.l.b16 %v721
  %v761 = vunpack.c.h.b16 %v721
  %v762 = vunpack.c.l.b16 %v722
  %v763 = vunpack.c.h.b16 %v722
  %v764 = vunpack.c.l.b16 %v723
  %v765 = vunpack.c.h.b16 %v723
  %v766 = vunpack.c.l.b16 %v724
  %v767 = vunpack.c.h.b16 %v724
  %v768 = vunpack.c.l.b16 %v725
  %v769 = vunpack.c.h.b16 %v725
  %v770 = vunpack.c.l.b16 %v726
  %v771 = vunpack.c.h.b16 %v726
  %v772 = vunpack.c.l.b16 %v727
  %v773 = vunpack.c.h.b16 %v727
  %v774 = vunpack.c.l.b16 %v728
  %v775 = vunpack.c.h.b16 %v728
  %v776 = vunpack.c.l.b16 %v729
  %v777 = vunpack.c.h.b16 %v729
  %v778 = vunpack.c.l.b16 %v730
  %v779 = vunpack.c.h.b16 %v730
  %v780 = vunpack.c.l.b16 %v731
  %v781 = vunpack.c.h.b16 %v731
  %v782 = vunpack.c.l.b16 %v732
  %v783 = vunpack.c.h.b16 %v732
  %v784 = vunpack.c.l.b16 %v733
  %v785 = vunpack.c.h.b16 %v733
  %v786 = vunpack.c.l.b16 %v734
  %v787 = vunpack.c.h.b16 %v734
  %v788 = vunpack.c.l.b16 %v735
  %v789 = vunpack.c.h.b16 %v735
  %v790 = vpack.c.b16 %v756, %v754
  %v791 = vpack.c.b16 %v757, %v755
  %v792 = vpack.c.b16 %v760, %v758
  %v793 = vpack.c.b16 %v761, %v759
  %v794 = vpack.c.b16 %v764, %v762
  %v795 = vpack.c.b16 %v765, %v763
  %v796 = vpack.c.b16 %v768, %v766
  %v797 = vpack.c.b16 %v769, %v767
  %v798 = vpack.c.b16 %v772, %v770
  %v799 = vpack.c.b16 %v773, %v771
  %v800 = vpack.c.b16 %v776, %v774
  %v801 = vpack.c.b16 %v777, %v775
  %v802 = vpack.c.b16 %v780, %v778
  %v803 = vpack.c.b16 %v781, %v779
  %v804 = vpack.c.b16 %v784, %v782
  %v805 = vpack.c.b16 %v785, %v783
  %v806 = vpack.c.b16 %v788, %v786
  %v807 = vpack.c.b16 %v789, %v787
  %v825 = vand.u32 %v806, %v174
  %v828 = vand.u32 %v807, %v174
  %830 = vmatpush.bf16.msra.mxu0 %v804
  %831 = vmatpush.bf16.msra.mxu0 %v802
  %832 = vmatpush.bf16.msra.mxu0 %v800
  %833 = vmatpush.bf16.msra.mxu0 %v798
  %834 = vmatpush.bf16.msra.mxu0 %v796
  %835 = vmatpush.bf16.msra.mxu0 %v794
  %836 = vmatpush.bf16.msra.mxu0 %v792
  %837 = vmatpush.bf16.msra.mxu0 %v790
  %838 = vmatmul.bf16.gmra.mxu0 %v76
  %v839 = vpop.f32.mrf.mxu0
  %v840 = vadd.f32 0.0, %v839
  %v841 = vpop.f32.mrf.mxu0
  %842 = vdwg.mxu0
  %843 = vmatpush.bf16.msra.mxu0 0
  %844 = vmatpush.bf16.msra.mxu0 0
  %845 = vmatpush.bf16.msra.mxu0 0
  %846 = vmatpush.bf16.msra.mxu0 0
  %847 = vmatpush.bf16.msra.mxu0 0
  %848 = vmatpush.bf16.msra.mxu0 0
  %849 = vmatpush.bf16.msra.mxu0 0
  %850 = vmatpush.bf16.msra.mxu0 %v825
  %851 = vmatmul.bf16.gmra.mxu0 %v169
  %v852 = vpop.f32.mrf.mxu0
  %v853 = vadd.f32 %v840, %v852
  %v854 = vpop.f32.mrf.mxu0
  %855 = vdwg.mxu0
  %856 = vmatpush.bf16.msra.mxu0 %v805
  %857 = vmatpush.bf16.msra.mxu0 %v803
  %858 = vmatpush.bf16.msra.mxu0 %v801
  %859 = vmatpush.bf16.msra.mxu0 %v799
  %860 = vmatpush.bf16.msra.mxu0 %v797
  %861 = vmatpush.bf16.msra.mxu0 %v795
  %862 = vmatpush.bf16.msra.mxu0 %v793
  %863 = vmatpush.bf16.msra.mxu0 %v791
  %864 = vmatmul.bf16.gmra.mxu0 %v76
  %v865 = vpop.f32.mrf.mxu0
  %v866 = vadd.f32 0.0, %v865
  %v867 = vpop.f32.mrf.mxu0
  %868 = vdwg.mxu0
  %869 = vmatpush.bf16.msra.mxu0 0
  %870 = vmatpush.bf16.msra.mxu0 0
  %871 = vmatpush.bf16.msra.mxu0 0
  %872 = vmatpush.bf16.msra.mxu0 0
  %873 = vmatpush.bf16.msra.mxu0 0
  %874 = vmatpush.bf16.msra.mxu0 0
  %875 = vmatpush.bf16.msra.mxu0 0
  %876 = vmatpush.bf16.msra.mxu0 %v828
  %877 = vmatmul.bf16.gmra.mxu0 %v169
  %v878 = vpop.f32.mrf.mxu0
  %v879 = vadd.f32 %v866, %v878
  %v880 = vpop.f32.mrf.mxu0
  %881 = vdwg.mxu0
  %v882 = vmax.f32 %v853, 0.0
  %v883 = vmax.f32 %v879, 0.0
  %v884 = vpack.c.bf16 %v882, %v882
  %v885 = vpack.c.bf16 %v883, %v883
  %s886 = scalar_lea.vmem %s3, 256
  %v887 = vld [vmem:[%s886] sm:$0xf]
  %v888 = vld [vmem:[%s886 + $0x4] sm:$0xf]
  %v889 = vld [vmem:[%s886 + $0x8] sm:$0xf]
  %v890 = vld [vmem:[%s886 + $0xc] sm:$0xf]
  %v891 = vld [vmem:[%s886 + $0x10] sm:$0xf]
  %v892 = vld [vmem:[%s886 + $0x14] sm:$0xf]
  %v893 = vld [vmem:[%s886 + $0x18] sm:$0xf]
  %v894 = vld [vmem:[%s886 + $0x1c] sm:$0xf]
  %v895 = vld [vmem:[%s886 + $0x20] sm:$0xf]
  %v896 = vld [vmem:[%s886 + $0x24] sm:$0xf]
  %v897 = vld [vmem:[%s886 + $0x28] sm:$0xf]
  %v898 = vld [vmem:[%s886 + $0x2c] sm:$0xf]
  %v899 = vld [vmem:[%s886 + $0x30] sm:$0xf]
  %v900 = vld [vmem:[%s886 + $0x34] sm:$0xf]
  %v901 = vld [vmem:[%s886 + $0x38] sm:$0xf]
  %v902 = vld [vmem:[%s886 + $0x3c] sm:$0xf]
  %v903 = vld [vmem:[%s886 + $0x40] sm:$0xf]
  %v904 = vld [vmem:[%s886 + $0x44] sm:$0xf]
  %v905 = vld [vmem:[%s886 + $0x48] sm:$0xf]
  %v906 = vld [vmem:[%s886 + $0x4c] sm:$0xf]
  %v907 = vld [vmem:[%s886 + $0x50] sm:$0xf]
  %v908 = vld [vmem:[%s886 + $0x54] sm:$0xf]
  %v909 = vld [vmem:[%s886 + $0x58] sm:$0xf]
  %v910 = vld [vmem:[%s886 + $0x5c] sm:$0xf]
  %v911 = vld [vmem:[%s886 + $0x60] sm:$0xf]
  %v912 = vld [vmem:[%s886 + $0x64] sm:$0xf]
  %v913 = vld [vmem:[%s886 + $0x68] sm:$0xf]
  %v914 = vld [vmem:[%s886 + $0x6c] sm:$0xf]
  %v915 = vld [vmem:[%s886 + $0x70] sm:$0xf]
  %v916 = vld [vmem:[%s886 + $0x74] sm:$0xf]
  %v917 = vld [vmem:[%s886 + $0x78] sm:$0xf]
  %v918 = vld [vmem:[%s886 + $0x7c] sm:$0xf]
  %v951 = vunpack.c.l.b16 %v887
  %v952 = vunpack.c.l.b16 %v888
  %v953 = vunpack.c.l.b16 %v889
  %v954 = vunpack.c.l.b16 %v890
  %v955 = vunpack.c.l.b16 %v891
  %v956 = vunpack.c.l.b16 %v892
  %v957 = vunpack.c.l.b16 %v893
  %v958 = vunpack.c.l.b16 %v894
  %v959 = vunpack.c.l.b16 %v895
  %v960 = vunpack.c.l.b16 %v896
  %v961 = vunpack.c.l.b16 %v897
  %v962 = vunpack.c.l.b16 %v898
  %v963 = vunpack.c.l.b16 %v899
  %v964 = vunpack.c.l.b16 %v900
  %v965 = vunpack.c.l.b16 %v901
  %v966 = vunpack.c.l.b16 %v902
  %v967 = vunpack.c.l.b16 %v903
  %v968 = vunpack.c.l.b16 %v904
  %v969 = vunpack.c.l.b16 %v905
  %v970 = vunpack.c.l.b16 %v906
  %v971 = vunpack.c.l.b16 %v907
  %v972 = vunpack.c.l.b16 %v908
  %v973 = vunpack.c.l.b16 %v909
  %v974 = vunpack.c.l.b16 %v910
  %v975 = vunpack.c.l.b16 %v911
  %v976 = vunpack.c.l.b16 %v912
  %v977 = vunpack.c.l.b16 %v913
  %v978 = vunpack.c.l.b16 %v914
  %v979 = vunpack.c.l.b16 %v915
  %v980 = vunpack.c.l.b16 %v916
  %v981 = vunpack.c.l.b16 %v917
  %v982 = vunpack.c.l.b16 %v918
  %v983 = vpack.c.b16 %v952, %v951
  %v984 = vpack.c.b16 %v954, %v953
  %v985 = vpack.c.b16 %v956, %v955
  %v986 = vpack.c.b16 %v958, %v957
  %v987 = vpack.c.b16 %v960, %v959
  %v988 = vpack.c.b16 %v962, %v961
  %v989 = vpack.c.b16 %v964, %v963
  %v990 = vpack.c.b16 %v966, %v965
  %v991 = vpack.c.b16 %v968, %v967
  %v992 = vpack.c.b16 %v970, %v969
  %v993 = vpack.c.b16 %v972, %v971
  %v994 = vpack.c.b16 %v974, %v973
  %v995 = vpack.c.b16 %v976, %v975
  %v996 = vpack.c.b16 %v978, %v977
  %v997 = vpack.c.b16 %v980, %v979
  %v998 = vpack.c.b16 %v982, %v981
  %1015 = vmatpush.bf16.msra.mxu0 %v990
  %1016 = vmatpush.bf16.msra.mxu0 %v989
  %1017 = vmatpush.bf16.msra.mxu0 %v988
  %1018 = vmatpush.bf16.msra.mxu0 %v987
  %1019 = vmatpush.bf16.msra.mxu0 %v986
  %1020 = vmatpush.bf16.msra.mxu0 %v985
  %1021 = vmatpush.bf16.msra.mxu0 %v984
  %1022 = vmatpush.bf16.msra.mxu0 %v983
  %1023 = vmatmul.bf16.gmra.mxu0 %v884
  %v1024 = vpop.f32.mrf.mxu0
  %v1025 = vadd.f32 0.0, %v1024
  %v1026 = vpop.f32.mrf.mxu0
  %1027 = vdwg.mxu0
  %1028 = vmatpush.bf16.msra.mxu0 %v998
  %1029 = vmatpush.bf16.msra.mxu0 %v997
  %1030 = vmatpush.bf16.msra.mxu0 %v996
  %1031 = vmatpush.bf16.msra.mxu0 %v995
  %1032 = vmatpush.bf16.msra.mxu0 %v994
  %1033 = vmatpush.bf16.msra.mxu0 %v993
  %1034 = vmatpush.bf16.msra.mxu0 %v992
  %1035 = vmatpush.bf16.msra.mxu0 %v991
  %1036 = vmatmul.bf16.gmra.mxu0 %v885
  %v1037 = vpop.f32.mrf.mxu0
  %v1038 = vadd.f32 %v1025, %v1037
  %v1039 = vpop.f32.mrf.mxu0
  %1040 = vdwg.mxu0
  %v1041 = vadd.f32 %v716, %v1038
  %s1042 = scalar_lea.vmem %s2, 24
  %v1043 = vld [vmem:[%s1042] sm:$0xff]
  %v1044 = vld [vmem:[%s1042 + $0x58] sm:$0xff]
  %v1045 = vld [vmem:[%s1042 + $0xb0] sm:$0xff]
  %v1046 = vld [vmem:[%s1042 + $0x108] sm:$0xff]
  %v1047 = vld [vmem:[%s1042 + $0x160] sm:$0xff]
  %v1048 = vld [vmem:[%s1042 + $0x1b8] sm:$0xff]
  %v1049 = vld [vmem:[%s1042 + $0x210] sm:$0xff]
  %v1050 = vld [vmem:[%s1042 + $0x268] sm:$0xff]
  %v1051 = vld [vmem:[%s1042 + $0x2c0] sm:$0xff]
  %v1052 = vld [vmem:[%s1042 + $0x318] sm:$0xff]
  %v1053 = vld [vmem:[%s1042 + $0x370] sm:$0xff]
  %v1054 = vld [vmem:[%s1042 + $0x3c8] sm:$0xff]
  %v1055 = vld [vmem:[%s1042 + $0x420] sm:$0xff]
  %v1056 = vld [vmem:[%s1042 + $0x478] sm:$0xff]
  %v1057 = vld [vmem:[%s1042 + $0x4d0] sm:$0xff]
  %v1058 = vld [vmem:[%s1042 + $0x528] sm:$0xff]
  %v1059 = vld [vmem:[%s1042 + $0x580] sm:$0xff]
  %v1060 = vld [vmem:[%s1042 + $0x5d8] sm:$0x11]
  %v1079 = vunpack.c.l.b16 %v1043
  %v1080 = vunpack.c.h.b16 %v1043
  %v1081 = vunpack.c.l.b16 %v1044
  %v1082 = vunpack.c.h.b16 %v1044
  %v1083 = vunpack.c.l.b16 %v1045
  %v1084 = vunpack.c.h.b16 %v1045
  %v1085 = vunpack.c.l.b16 %v1046
  %v1086 = vunpack.c.h.b16 %v1046
  %v1087 = vunpack.c.l.b16 %v1047
  %v1088 = vunpack.c.h.b16 %v1047
  %v1089 = vunpack.c.l.b16 %v1048
  %v1090 = vunpack.c.h.b16 %v1048
  %v1091 = vunpack.c.l.b16 %v1049
  %v1092 = vunpack.c.h.b16 %v1049
  %v1093 = vunpack.c.l.b16 %v1050
  %v1094 = vunpack.c.h.b16 %v1050
  %v1095 = vunpack.c.l.b16 %v1051
  %v1096 = vunpack.c.h.b16 %v1051
  %v1097 = vunpack.c.l.b16 %v1052
  %v1098 = vunpack.c.h.b16 %v1052
  %v1099 = vunpack.c.l.b16 %v1053
  %v1100 = vunpack.c.h.b16 %v1053
  %v1101 = vunpack.c.l.b16 %v1054
  %v1102 = vunpack.c.h.b16 %v1054
  %v1103 = vunpack.c.l.b16 %v1055
  %v1104 = vunpack.c.h.b16 %v1055
  %v1105 = vunpack.c.l.b16 %v1056
  %v1106 = vunpack.c.h.b16 %v1056
  %v1107 = vunpack.c.l.b16 %v1057
  %v1108 = vunpack.c.h.b16 %v1057
  %v1109 = vunpack.c.l.b16 %v1058
  %v1110 = vunpack.c.h.b16 %v1058
  %v1111 = vunpack.c.l.b16 %v1059
  %v1112 = vunpack.c.h.b16 %v1059
  %v1113 = vunpack.c.l.b16 %v1060
  %v1114 = vunpack.c.h.b16 %v1060
  %v1115 = vpack.c.b16 %v1081, %v1079
  %v1116 = vpack.c.b16 %v1082, %v1080
  %v1117 = vpack.c.b16 %v1085, %v1083
  %v1118 = vpack.c.b16 %v1086, %v1084
  %v1119 = vpack.c.b16 %v1089, %v1087
  %v1120 = vpack.c.b16 %v1090, %v1088
  %v1121 = vpack.c.b16 %v1093, %v1091
  %v1122 = vpack.c.b16 %v1094, %v1092
  %v1123 = vpack.c.b16 %v1097, %v1095
  %v1124 = vpack.c.b16 %v1098, %v1096
  %v1125 = vpack.c.b16 %v1101, %v1099
  %v1126 = vpack.c.b16 %v1102, %v1100
  %v1127 = vpack.c.b16 %v1105, %v1103
  %v1128 = vpack.c.b16 %v1106, %v1104
  %v1129 = vpack.c.b16 %v1109, %v1107
  %v1130 = vpack.c.b16 %v1110, %v1108
  %v1131 = vpack.c.b16 %v1113, %v1111
  %v1132 = vpack.c.b16 %v1114, %v1112
  %v1150 = vand.u32 %v1131, %v174
  %v1153 = vand.u32 %v1132, %v174
  %1155 = vmatpush.bf16.msra.mxu0 %v1129
  %1156 = vmatpush.bf16.msra.mxu0 %v1127
  %1157 = vmatpush.bf16.msra.mxu0 %v1125
  %1158 = vmatpush.bf16.msra.mxu0 %v1123
  %1159 = vmatpush.bf16.msra.mxu0 %v1121
  %1160 = vmatpush.bf16.msra.mxu0 %v1119
  %1161 = vmatpush.bf16.msra.mxu0 %v1117
  %1162 = vmatpush.bf16.msra.mxu0 %v1115
  %1163 = vmatmul.bf16.gmra.mxu0 %v76
  %v1164 = vpop.f32.mrf.mxu0
  %v1165 = vadd.f32 0.0, %v1164
  %v1166 = vpop.f32.mrf.mxu0
  %1167 = vdwg.mxu0
  %1168 = vmatpush.bf16.msra.mxu0 0
  %1169 = vmatpush.bf16.msra.mxu0 0
  %1170 = vmatpush.bf16.msra.mxu0 0
  %1171 = vmatpush.bf16.msra.mxu0 0
  %1172 = vmatpush.bf16.msra.mxu0 0
  %1173 = vmatpush.bf16.msra.mxu0 0
  %1174 = vmatpush.bf16.msra.mxu0 0
  %1175 = vmatpush.bf16.msra.mxu0 %v1150
  %1176 = vmatmul.bf16.gmra.mxu0 %v169
  %v1177 = vpop.f32.mrf.mxu0
  %v1178 = vadd.f32 %v1165, %v1177
  %v1179 = vpop.f32.mrf.mxu0
  %1180 = vdwg.mxu0
  %1181 = vmatpush.bf16.msra.mxu0 %v1130
  %1182 = vmatpush.bf16.msra.mxu0 %v1128
  %1183 = vmatpush.bf16.msra.mxu0 %v1126
  %1184 = vmatpush.bf16.msra.mxu0 %v1124
  %1185 = vmatpush.bf16.msra.mxu0 %v1122
  %1186 = vmatpush.bf16.msra.mxu0 %v1120
  %1187 = vmatpush.bf16.msra.mxu0 %v1118
  %1188 = vmatpush.bf16.msra.mxu0 %v1116
  %1189 = vmatmul.bf16.gmra.mxu0 %v76
  %v1190 = vpop.f32.mrf.mxu0
  %v1191 = vadd.f32 0.0, %v1190
  %v1192 = vpop.f32.mrf.mxu0
  %1193 = vdwg.mxu0
  %1194 = vmatpush.bf16.msra.mxu0 0
  %1195 = vmatpush.bf16.msra.mxu0 0
  %1196 = vmatpush.bf16.msra.mxu0 0
  %1197 = vmatpush.bf16.msra.mxu0 0
  %1198 = vmatpush.bf16.msra.mxu0 0
  %1199 = vmatpush.bf16.msra.mxu0 0
  %1200 = vmatpush.bf16.msra.mxu0 0
  %1201 = vmatpush.bf16.msra.mxu0 %v1153
  %1202 = vmatmul.bf16.gmra.mxu0 %v169
  %v1203 = vpop.f32.mrf.mxu0
  %v1204 = vadd.f32 %v1191, %v1203
  %v1205 = vpop.f32.mrf.mxu0
  %1206 = vdwg.mxu0
  %v1207 = vmax.f32 %v1178, 0.0
  %v1208 = vmax.f32 %v1204, 0.0
  %v1209 = vpack.c.bf16 %v1207, %v1207
  %v1210 = vpack.c.bf16 %v1208, %v1208
  %s1211 = scalar_lea.vmem %s3, 384
  %v1212 = vld [vmem:[%s1211] sm:$0xf]
  %v1213 = vld [vmem:[%s1211 + $0x4] sm:$0xf]
  %v1214 = vld [vmem:[%s1211 + $0x8] sm:$0xf]
  %v1215 = vld [vmem:[%s1211 + $0xc] sm:$0xf]
  %v1216 = vld [vmem:[%s1211 + $0x10] sm:$0xf]
  %v1217 = vld [vmem:[%s1211 + $0x14] sm:$0xf]
  %v1218 = vld [vmem:[%s1211 + $0x18] sm:$0xf]
  %v1219 = vld [vmem:[%s1211 + $0x1c] sm:$0xf]
  %v1220 = vld [vmem:[%s1211 + $0x20] sm:$0xf]
  %v1221 = vld [vmem:[%s1211 + $0x24] sm:$0xf]
  %v1222 = vld [vmem:[%s1211 + $0x28] sm:$0xf]
  %v1223 = vld [vmem:[%s1211 + $0x2c] sm:$0xf]
  %v1224 = vld [vmem:[%s1211 + $0x30] sm:$0xf]
  %v1225 = vld [vmem:[%s1211 + $0x34] sm:$0xf]
  %v1226 = vld [vmem:[%s1211 + $0x38] sm:$0xf]
  %v1227 = vld [vmem:[%s1211 + $0x3c] sm:$0xf]
  %v1228 = vld [vmem:[%s1211 + $0x40] sm:$0xf]
  %v1229 = vld [vmem:[%s1211 + $0x44] sm:$0xf]
  %v1230 = vld [vmem:[%s1211 + $0x48] sm:$0xf]
  %v1231 = vld [vmem:[%s1211 + $0x4c] sm:$0xf]
  %v1232 = vld [vmem:[%s1211 + $0x50] sm:$0xf]
  %v1233 = vld [vmem:[%s1211 + $0x54] sm:$0xf]
  %v1234 = vld [vmem:[%s1211 + $0x58] sm:$0xf]
  %v1235 = vld [vmem:[%s1211 + $0x5c] sm:$0xf]
  %v1236 = vld [vmem:[%s1211 + $0x60] sm:$0xf]
  %v1237 = vld [vmem:[%s1211 + $0x64] sm:$0xf]
  %v1238 = vld [vmem:[%s1211 + $0x68] sm:$0xf]
  %v1239 = vld [vmem:[%s1211 + $0x6c] sm:$0xf]
  %v1240 = vld [vmem:[%s1211 + $0x70] sm:$0xf]
  %v1241 = vld [vmem:[%s1211 + $0x74] sm:$0xf]
  %v1242 = vld [vmem:[%s1211 + $0x78] sm:$0xf]
  %v1243 = vld [vmem:[%s1211 + $0x7c] sm:$0xf]
  %v1276 = vunpack.c.l.b16 %v1212
  %v1277 = vunpack.c.l.b16 %v1213
  %v1278 = vunpack.c.l.b16 %v1214
  %v1279 = vunpack.c.l.b16 %v1215
  %v1280 = vunpack.c.l.b16 %v1216
  %v1281 = vunpack.c.l.b16 %v1217
  %v1282 = vunpack.c.l.b16 %v1218
  %v1283 = vunpack.c.l.b16 %v1219
  %v1284 = vunpack.c.l.b16 %v1220
  %v1285 = vunpack.c.l.b16 %v1221
  %v1286 = vunpack.c.l.b16 %v1222
  %v1287 = vunpack.c.l.b16 %v1223
  %v1288 = vunpack.c.l.b16 %v1224
  %v1289 = vunpack.c.l.b16 %v1225
  %v1290 = vunpack.c.l.b16 %v1226
  %v1291 = vunpack.c.l.b16 %v1227
  %v1292 = vunpack.c.l.b16 %v1228
  %v1293 = vunpack.c.l.b16 %v1229
  %v1294 = vunpack.c.l.b16 %v1230
  %v1295 = vunpack.c.l.b16 %v1231
  %v1296 = vunpack.c.l.b16 %v1232
  %v1297 = vunpack.c.l.b16 %v1233
  %v1298 = vunpack.c.l.b16 %v1234
  %v1299 = vunpack.c.l.b16 %v1235
  %v1300 = vunpack.c.l.b16 %v1236
  %v1301 = vunpack.c.l.b16 %v1237
  %v1302 = vunpack.c.l.b16 %v1238
  %v1303 = vunpack.c.l.b16 %v1239
  %v1304 = vunpack.c.l.b16 %v1240
  %v1305 = vunpack.c.l.b16 %v1241
  %v1306 = vunpack.c.l.b16 %v1242
  %v1307 = vunpack.c.l.b16 %v1243
  %v1308 = vpack.c.b16 %v1277, %v1276
  %v1309 = vpack.c.b16 %v1279, %v1278
  %v1310 = vpack.c.b16 %v1281, %v1280
  %v1311 = vpack.c.b16 %v1283, %v1282
  %v1312 = vpack.c.b16 %v1285, %v1284
  %v1313 = vpack.c.b16 %v1287, %v1286
  %v1314 = vpack.c.b16 %v1289, %v1288
  %v1315 = vpack.c.b16 %v1291, %v1290
  %v1316 = vpack.c.b16 %v1293, %v1292
  %v1317 = vpack.c.b16 %v1295, %v1294
  %v1318 = vpack.c.b16 %v1297, %v1296
  %v1319 = vpack.c.b16 %v1299, %v1298
  %v1320 = vpack.c.b16 %v1301, %v1300
  %v1321 = vpack.c.b16 %v1303, %v1302
  %v1322 = vpack.c.b16 %v1305, %v1304
  %v1323 = vpack.c.b16 %v1307, %v1306
  %1340 = vmatpush.bf16.msra.mxu0 %v1315
  %1341 = vmatpush.bf16.msra.mxu0 %v1314
  %1342 = vmatpush.bf16.msra.mxu0 %v1313
  %1343 = vmatpush.bf16.msra.mxu0 %v1312
  %1344 = vmatpush.bf16.msra.mxu0 %v1311
  %1345 = vmatpush.bf16.msra.mxu0 %v1310
  %1346 = vmatpush.bf16.msra.mxu0 %v1309
  %1347 = vmatpush.bf16.msra.mxu0 %v1308
  %1348 = vmatmul.bf16.gmra.mxu0 %v1209
  %v1349 = vpop.f32.mrf.mxu0
  %v1350 = vadd.f32 0.0, %v1349
  %v1351 = vpop.f32.mrf.mxu0
  %1352 = vdwg.mxu0
  %1353 = vmatpush.bf16.msra.mxu0 %v1323
  %1354 = vmatpush.bf16.msra.mxu0 %v1322
  %1355 = vmatpush.bf16.msra.mxu0 %v1321
  %1356 = vmatpush.bf16.msra.mxu0 %v1320
  %1357 = vmatpush.bf16.msra.mxu0 %v1319
  %1358 = vmatpush.bf16.msra.mxu0 %v1318
  %1359 = vmatpush.bf16.msra.mxu0 %v1317
  %1360 = vmatpush.bf16.msra.mxu0 %v1316
  %1361 = vmatmul.bf16.gmra.mxu0 %v1210
  %v1362 = vpop.f32.mrf.mxu0
  %v1363 = vadd.f32 %v1350, %v1362
  %v1364 = vpop.f32.mrf.mxu0
  %1365 = vdwg.mxu0
  %v1366 = vadd.f32 %v1041, %v1363
  %s1367 = scalar_lea.vmem %s2, 32
  %v1368 = vld [vmem:[%s1367] sm:$0xff]
  %v1369 = vld [vmem:[%s1367 + $0x58] sm:$0xff]
  %v1370 = vld [vmem:[%s1367 + $0xb0] sm:$0xff]
  %v1371 = vld [vmem:[%s1367 + $0x108] sm:$0xff]
  %v1372 = vld [vmem:[%s1367 + $0x160] sm:$0xff]
  %v1373 = vld [vmem:[%s1367 + $0x1b8] sm:$0xff]
  %v1374 = vld [vmem:[%s1367 + $0x210] sm:$0xff]
  %v1375 = vld [vmem:[%s1367 + $0x268] sm:$0xff]
  %v1376 = vld [vmem:[%s1367 + $0x2c0] sm:$0xff]
  %v1377 = vld [vmem:[%s1367 + $0x318] sm:$0xff]
  %v1378 = vld [vmem:[%s1367 + $0x370] sm:$0xff]
  %v1379 = vld [vmem:[%s1367 + $0x3c8] sm:$0xff]
  %v1380 = vld [vmem:[%s1367 + $0x420] sm:$0xff]
  %v1381 = vld [vmem:[%s1367 + $0x478] sm:$0xff]
  %v1382 = vld [vmem:[%s1367 + $0x4d0] sm:$0xff]
  %v1383 = vld [vmem:[%s1367 + $0x528] sm:$0xff]
  %v1384 = vld [vmem:[%s1367 + $0x580] sm:$0xff]
  %v1385 = vld [vmem:[%s1367 + $0x5d8] sm:$0x11]
  %v1404 = vunpack.c.l.b16 %v1368
  %v1405 = vunpack.c.h.b16 %v1368
  %v1406 = vunpack.c.l.b16 %v1369
  %v1407 = vunpack.c.h.b16 %v1369
  %v1408 = vunpack.c.l.b16 %v1370
  %v1409 = vunpack.c.h.b16 %v1370
  %v1410 = vunpack.c.l.b16 %v1371
  %v1411 = vunpack.c.h.b16 %v1371
  %v1412 = vunpack.c.l.b16 %v1372
  %v1413 = vunpack.c.h.b16 %v1372
  %v1414 = vunpack.c.l.b16 %v1373
  %v1415 = vunpack.c.h.b16 %v1373
  %v1416 = vunpack.c.l.b16 %v1374
  %v1417 = vunpack.c.h.b16 %v1374
  %v1418 = vunpack.c.l.b16 %v1375
  %v1419 = vunpack.c.h.b16 %v1375
  %v1420 = vunpack.c.l.b16 %v1376
  %v1421 = vunpack.c.h.b16 %v1376
  %v1422 = vunpack.c.l.b16 %v1377
  %v1423 = vunpack.c.h.b16 %v1377
  %v1424 = vunpack.c.l.b16 %v1378
  %v1425 = vunpack.c.h.b16 %v1378
  %v1426 = vunpack.c.l.b16 %v1379
  %v1427 = vunpack.c.h.b16 %v1379
  %v1428 = vunpack.c.l.b16 %v1380
  %v1429 = vunpack.c.h.b16 %v1380
  %v1430 = vunpack.c.l.b16 %v1381
  %v1431 = vunpack.c.h.b16 %v1381
  %v1432 = vunpack.c.l.b16 %v1382
  %v1433 = vunpack.c.h.b16 %v1382
  %v1434 = vunpack.c.l.b16 %v1383
  %v1435 = vunpack.c.h.b16 %v1383
  %v1436 = vunpack.c.l.b16 %v1384
  %v1437 = vunpack.c.h.b16 %v1384
  %v1438 = vunpack.c.l.b16 %v1385
  %v1439 = vunpack.c.h.b16 %v1385
  %v1440 = vpack.c.b16 %v1406, %v1404
  %v1441 = vpack.c.b16 %v1407, %v1405
  %v1442 = vpack.c.b16 %v1410, %v1408
  %v1443 = vpack.c.b16 %v1411, %v1409
  %v1444 = vpack.c.b16 %v1414, %v1412
  %v1445 = vpack.c.b16 %v1415, %v1413
  %v1446 = vpack.c.b16 %v1418, %v1416
  %v1447 = vpack.c.b16 %v1419, %v1417
  %v1448 = vpack.c.b16 %v1422, %v1420
  %v1449 = vpack.c.b16 %v1423, %v1421
  %v1450 = vpack.c.b16 %v1426, %v1424
  %v1451 = vpack.c.b16 %v1427, %v1425
  %v1452 = vpack.c.b16 %v1430, %v1428
  %v1453 = vpack.c.b16 %v1431, %v1429
  %v1454 = vpack.c.b16 %v1434, %v1432
  %v1455 = vpack.c.b16 %v1435, %v1433
  %v1456 = vpack.c.b16 %v1438, %v1436
  %v1457 = vpack.c.b16 %v1439, %v1437
  %v1475 = vand.u32 %v1456, %v174
  %v1478 = vand.u32 %v1457, %v174
  %1480 = vmatpush.bf16.msra.mxu0 %v1454
  %1481 = vmatpush.bf16.msra.mxu0 %v1452
  %1482 = vmatpush.bf16.msra.mxu0 %v1450
  %1483 = vmatpush.bf16.msra.mxu0 %v1448
  %1484 = vmatpush.bf16.msra.mxu0 %v1446
  %1485 = vmatpush.bf16.msra.mxu0 %v1444
  %1486 = vmatpush.bf16.msra.mxu0 %v1442
  %1487 = vmatpush.bf16.msra.mxu0 %v1440
  %1488 = vmatmul.bf16.gmra.mxu0 %v76
  %v1489 = vpop.f32.mrf.mxu0
  %v1490 = vadd.f32 0.0, %v1489
  %v1491 = vpop.f32.mrf.mxu0
  %1492 = vdwg.mxu0
  %1493 = vmatpush.bf16.msra.mxu0 0
  %1494 = vmatpush.bf16.msra.mxu0 0
  %1495 = vmatpush.bf16.msra.mxu0 0
  %1496 = vmatpush.bf16.msra.mxu0 0
  %1497 = vmatpush.bf16.msra.mxu0 0
  %1498 = vmatpush.bf16.msra.mxu0 0
  %1499 = vmatpush.bf16.msra.mxu0 0
  %1500 = vmatpush.bf16.msra.mxu0 %v1475
  %1501 = vmatmul.bf16.gmra.mxu0 %v169
  %v1502 = vpop.f32.mrf.mxu0
  %v1503 = vadd.f32 %v1490, %v1502
  %v1504 = vpop.f32.mrf.mxu0
  %1505 = vdwg.mxu0
  %1506 = vmatpush.bf16.msra.mxu0 %v1455
  %1507 = vmatpush.bf16.msra.mxu0 %v1453
  %1508 = vmatpush.bf16.msra.mxu0 %v1451
  %1509 = vmatpush.bf16.msra.mxu0 %v1449
  %1510 = vmatpush.bf16.msra.mxu0 %v1447
  %1511 = vmatpush.bf16.msra.mxu0 %v1445
  %1512 = vmatpush.bf16.msra.mxu0 %v1443
  %1513 = vmatpush.bf16.msra.mxu0 %v1441
  %1514 = vmatmul.bf16.gmra.mxu0 %v76
  %v1515 = vpop.f32.mrf.mxu0
  %v1516 = vadd.f32 0.0, %v1515
  %v1517 = vpop.f32.mrf.mxu0
  %1518 = vdwg.mxu0
  %1519 = vmatpush.bf16.msra.mxu0 0
  %1520 = vmatpush.bf16.msra.mxu0 0
  %1521 = vmatpush.bf16.msra.mxu0 0
  %1522 = vmatpush.bf16.msra.mxu0 0
  %1523 = vmatpush.bf16.msra.mxu0 0
  %1524 = vmatpush.bf16.msra.mxu0 0
  %1525 = vmatpush.bf16.msra.mxu0 0
  %1526 = vmatpush.bf16.msra.mxu0 %v1478
  %1527 = vmatmul.bf16.gmra.mxu0 %v169
  %v1528 = vpop.f32.mrf.mxu0
  %v1529 = vadd.f32 %v1516, %v1528
  %v1530 = vpop.f32.mrf.mxu0
  %1531 = vdwg.mxu0
  %v1532 = vmax.f32 %v1503, 0.0
  %v1533 = vmax.f32 %v1529, 0.0
  %v1534 = vpack.c.bf16 %v1532, %v1532
  %v1535 = vpack.c.bf16 %v1533, %v1533
  %s1536 = scalar_lea.vmem %s3, 512
  %v1537 = vld [vmem:[%s1536] sm:$0xf]
  %v1538 = vld [vmem:[%s1536 + $0x4] sm:$0xf]
  %v1539 = vld [vmem:[%s1536 + $0x8] sm:$0xf]
  %v1540 = vld [vmem:[%s1536 + $0xc] sm:$0xf]
  %v1541 = vld [vmem:[%s1536 + $0x10] sm:$0xf]
  %v1542 = vld [vmem:[%s1536 + $0x14] sm:$0xf]
  %v1543 = vld [vmem:[%s1536 + $0x18] sm:$0xf]
  %v1544 = vld [vmem:[%s1536 + $0x1c] sm:$0xf]
  %v1545 = vld [vmem:[%s1536 + $0x20] sm:$0xf]
  %v1546 = vld [vmem:[%s1536 + $0x24] sm:$0xf]
  %v1547 = vld [vmem:[%s1536 + $0x28] sm:$0xf]
  %v1548 = vld [vmem:[%s1536 + $0x2c] sm:$0xf]
  %v1549 = vld [vmem:[%s1536 + $0x30] sm:$0xf]
  %v1550 = vld [vmem:[%s1536 + $0x34] sm:$0xf]
  %v1551 = vld [vmem:[%s1536 + $0x38] sm:$0xf]
  %v1552 = vld [vmem:[%s1536 + $0x3c] sm:$0xf]
  %v1553 = vld [vmem:[%s1536 + $0x40] sm:$0xf]
  %v1554 = vld [vmem:[%s1536 + $0x44] sm:$0xf]
  %v1555 = vld [vmem:[%s1536 + $0x48] sm:$0xf]
  %v1556 = vld [vmem:[%s1536 + $0x4c] sm:$0xf]
  %v1557 = vld [vmem:[%s1536 + $0x50] sm:$0xf]
  %v1558 = vld [vmem:[%s1536 + $0x54] sm:$0xf]
  %v1559 = vld [vmem:[%s1536 + $0x58] sm:$0xf]
  %v1560 = vld [vmem:[%s1536 + $0x5c] sm:$0xf]
  %v1561 = vld [vmem:[%s1536 + $0x60] sm:$0xf]
  %v1562 = vld [vmem:[%s1536 + $0x64] sm:$0xf]
  %v1563 = vld [vmem:[%s1536 + $0x68] sm:$0xf]
  %v1564 = vld [vmem:[%s1536 + $0x6c] sm:$0xf]
  %v1565 = vld [vmem:[%s1536 + $0x70] sm:$0xf]
  %v1566 = vld [vmem:[%s1536 + $0x74] sm:$0xf]
  %v1567 = vld [vmem:[%s1536 + $0x78] sm:$0xf]
  %v1568 = vld [vmem:[%s1536 + $0x7c] sm:$0xf]
  %v1601 = vunpack.c.l.b16 %v1537
  %v1602 = vunpack.c.l.b16 %v1538
  %v1603 = vunpack.c.l.b16 %v1539
  %v1604 = vunpack.c.l.b16 %v1540
  %v1605 = vunpack.c.l.b16 %v1541
  %v1606 = vunpack.c.l.b16 %v1542
  %v1607 = vunpack.c.l.b16 %v1543
  %v1608 = vunpack.c.l.b16 %v1544
  %v1609 = vunpack.c.l.b16 %v1545
  %v1610 = vunpack.c.l.b16 %v1546
  %v1611 = vunpack.c.l.b16 %v1547
  %v1612 = vunpack.c.l.b16 %v1548
  %v1613 = vunpack.c.l.b16 %v1549
  %v1614 = vunpack.c.l.b16 %v1550
  %v1615 = vunpack.c.l.b16 %v1551
  %v1616 = vunpack.c.l.b16 %v1552
  %v1617 = vunpack.c.l.b16 %v1553
  %v1618 = vunpack.c.l.b16 %v1554
  %v1619 = vunpack.c.l.b16 %v1555
  %v1620 = vunpack.c.l.b16 %v1556
  %v1621 = vunpack.c.l.b16 %v1557
  %v1622 = vunpack.c.l.b16 %v1558
  %v1623 = vunpack.c.l.b16 %v1559
  %v1624 = vunpack.c.l.b16 %v1560
  %v1625 = vunpack.c.l.b16 %v1561
  %v1626 = vunpack.c.l.b16 %v1562
  %v1627 = vunpack.c.l.b16 %v1563
  %v1628 = vunpack.c.l.b16 %v1564
  %v1629 = vunpack.c.l.b16 %v1565
  %v1630 = vunpack.c.l.b16 %v1566
  %v1631 = vunpack.c.l.b16 %v1567
  %v1632 = vunpack.c.l.b16 %v1568
  %v1633 = vpack.c.b16 %v1602, %v1601
  %v1634 = vpack.c.b16 %v1604, %v1603
  %v1635 = vpack.c.b16 %v1606, %v1605
  %v1636 = vpack.c.b16 %v1608, %v1607
  %v1637 = vpack.c.b16 %v1610, %v1609
  %v1638 = vpack.c.b16 %v1612, %v1611
  %v1639 = vpack.c.b16 %v1614, %v1613
  %v1640 = vpack.c.b16 %v1616, %v1615
  %v1641 = vpack.c.b16 %v1618, %v1617
  %v1642 = vpack.c.b16 %v1620, %v1619
  %v1643 = vpack.c.b16 %v1622, %v1621
  %v1644 = vpack.c.b16 %v1624, %v1623
  %v1645 = vpack.c.b16 %v1626, %v1625
  %v1646 = vpack.c.b16 %v1628, %v1627
  %v1647 = vpack.c.b16 %v1630, %v1629
  %v1648 = vpack.c.b16 %v1632, %v1631
  %1665 = vmatpush.bf16.msra.mxu0 %v1640
  %1666 = vmatpush.bf16.msra.mxu0 %v1639
  %1667 = vmatpush.bf16.msra.mxu0 %v1638
  %1668 = vmatpush.bf16.msra.mxu0 %v1637
  %1669 = vmatpush.bf16.msra.mxu0 %v1636
  %1670 = vmatpush.bf16.msra.mxu0 %v1635
  %1671 = vmatpush.bf16.msra.mxu0 %v1634
  %1672 = vmatpush.bf16.msra.mxu0 %v1633
  %1673 = vmatmul.bf16.gmra.mxu0 %v1534
  %v1674 = vpop.f32.mrf.mxu0
  %v1675 = vadd.f32 0.0, %v1674
  %v1676 = vpop.f32.mrf.mxu0
  %1677 = vdwg.mxu0
  %1678 = vmatpush.bf16.msra.mxu0 %v1648
  %1679 = vmatpush.bf16.msra.mxu0 %v1647
  %1680 = vmatpush.bf16.msra.mxu0 %v1646
  %1681 = vmatpush.bf16.msra.mxu0 %v1645
  %1682 = vmatpush.bf16.msra.mxu0 %v1644
  %1683 = vmatpush.bf16.msra.mxu0 %v1643
  %1684 = vmatpush.bf16.msra.mxu0 %v1642
  %1685 = vmatpush.bf16.msra.mxu0 %v1641
  %1686 = vmatmul.bf16.gmra.mxu0 %v1535
  %v1687 = vpop.f32.mrf.mxu0
  %v1688 = vadd.f32 %v1675, %v1687
  %v1689 = vpop.f32.mrf.mxu0
  %1690 = vdwg.mxu0
  %v1691 = vadd.f32 %v1366, %v1688
  %s1692 = scalar_lea.vmem %s2, 40
  %v1693 = vld [vmem:[%s1692] sm:$0xff]
  %v1694 = vld [vmem:[%s1692 + $0x58] sm:$0xff]
  %v1695 = vld [vmem:[%s1692 + $0xb0] sm:$0xff]
  %v1696 = vld [vmem:[%s1692 + $0x108] sm:$0xff]
  %v1697 = vld [vmem:[%s1692 + $0x160] sm:$0xff]
  %v1698 = vld [vmem:[%s1692 + $0x1b8] sm:$0xff]
  %v1699 = vld [vmem:[%s1692 + $0x210] sm:$0xff]
  %v1700 = vld [vmem:[%s1692 + $0x268] sm:$0xff]
  %v1701 = vld [vmem:[%s1692 + $0x2c0] sm:$0xff]
  %v1702 = vld [vmem:[%s1692 + $0x318] sm:$0xff]
  %v1703 = vld [vmem:[%s1692 + $0x370] sm:$0xff]
  %v1704 = vld [vmem:[%s1692 + $0x3c8] sm:$0xff]
  %v1705 = vld [vmem:[%s1692 + $0x420] sm:$0xff]
  %v1706 = vld [vmem:[%s1692 + $0x478] sm:$0xff]
  %v1707 = vld [vmem:[%s1692 + $0x4d0] sm:$0xff]
  %v1708 = vld [vmem:[%s1692 + $0x528] sm:$0xff]
  %v1709 = vld [vmem:[%s1692 + $0x580] sm:$0xff]
  %v1710 = vld [vmem:[%s1692 + $0x5d8] sm:$0x11]
  %v1729 = vunpack.c.l.b16 %v1693
  %v1730 = vunpack.c.h.b16 %v1693
  %v1731 = vunpack.c.l.b16 %v1694
  %v1732 = vunpack.c.h.b16 %v1694
  %v1733 = vunpack.c.l.b16 %v1695
  %v1734 = vunpack.c.h.b16 %v1695
  %v1735 = vunpack.c.l.b16 %v1696
  %v1736 = vunpack.c.h.b16 %v1696
  %v1737 = vunpack.c.l.b16 %v1697
  %v1738 = vunpack.c.h.b16 %v1697
  %v1739 = vunpack.c.l.b16 %v1698
  %v1740 = vunpack.c.h.b16 %v1698
  %v1741 = vunpack.c.l.b16 %v1699
  %v1742 = vunpack.c.h.b16 %v1699
  %v1743 = vunpack.c.l.b16 %v1700
  %v1744 = vunpack.c.h.b16 %v1700
  %v1745 = vunpack.c.l.b16 %v1701
  %v1746 = vunpack.c.h.b16 %v1701
  %v1747 = vunpack.c.l.b16 %v1702
  %v1748 = vunpack.c.h.b16 %v1702
  %v1749 = vunpack.c.l.b16 %v1703
  %v1750 = vunpack.c.h.b16 %v1703
  %v1751 = vunpack.c.l.b16 %v1704
  %v1752 = vunpack.c.h.b16 %v1704
  %v1753 = vunpack.c.l.b16 %v1705
  %v1754 = vunpack.c.h.b16 %v1705
  %v1755 = vunpack.c.l.b16 %v1706
  %v1756 = vunpack.c.h.b16 %v1706
  %v1757 = vunpack.c.l.b16 %v1707
  %v1758 = vunpack.c.h.b16 %v1707
  %v1759 = vunpack.c.l.b16 %v1708
  %v1760 = vunpack.c.h.b16 %v1708
  %v1761 = vunpack.c.l.b16 %v1709
  %v1762 = vunpack.c.h.b16 %v1709
  %v1763 = vunpack.c.l.b16 %v1710
  %v1764 = vunpack.c.h.b16 %v1710
  %v1765 = vpack.c.b16 %v1731, %v1729
  %v1766 = vpack.c.b16 %v1732, %v1730
  %v1767 = vpack.c.b16 %v1735, %v1733
  %v1768 = vpack.c.b16 %v1736, %v1734
  %v1769 = vpack.c.b16 %v1739, %v1737
  %v1770 = vpack.c.b16 %v1740, %v1738
  %v1771 = vpack.c.b16 %v1743, %v1741
  %v1772 = vpack.c.b16 %v1744, %v1742
  %v1773 = vpack.c.b16 %v1747, %v1745
  %v1774 = vpack.c.b16 %v1748, %v1746
  %v1775 = vpack.c.b16 %v1751, %v1749
  %v1776 = vpack.c.b16 %v1752, %v1750
  %v1777 = vpack.c.b16 %v1755, %v1753
  %v1778 = vpack.c.b16 %v1756, %v1754
  %v1779 = vpack.c.b16 %v1759, %v1757
  %v1780 = vpack.c.b16 %v1760, %v1758
  %v1781 = vpack.c.b16 %v1763, %v1761
  %v1782 = vpack.c.b16 %v1764, %v1762
  %v1800 = vand.u32 %v1781, %v174
  %v1803 = vand.u32 %v1782, %v174
  %1805 = vmatpush.bf16.msra.mxu0 %v1779
  %1806 = vmatpush.bf16.msra.mxu0 %v1777
  %1807 = vmatpush.bf16.msra.mxu0 %v1775
  %1808 = vmatpush.bf16.msra.mxu0 %v1773
  %1809 = vmatpush.bf16.msra.mxu0 %v1771
  %1810 = vmatpush.bf16.msra.mxu0 %v1769
  %1811 = vmatpush.bf16.msra.mxu0 %v1767
  %1812 = vmatpush.bf16.msra.mxu0 %v1765
  %1813 = vmatmul.bf16.gmra.mxu0 %v76
  %v1814 = vpop.f32.mrf.mxu0
  %v1815 = vadd.f32 0.0, %v1814
  %v1816 = vpop.f32.mrf.mxu0
  %1817 = vdwg.mxu0
  %1818 = vmatpush.bf16.msra.mxu0 0
  %1819 = vmatpush.bf16.msra.mxu0 0
  %1820 = vmatpush.bf16.msra.mxu0 0
  %1821 = vmatpush.bf16.msra.mxu0 0
  %1822 = vmatpush.bf16.msra.mxu0 0
  %1823 = vmatpush.bf16.msra.mxu0 0
  %1824 = vmatpush.bf16.msra.mxu0 0
  %1825 = vmatpush.bf16.msra.mxu0 %v1800
  %1826 = vmatmul.bf16.gmra.mxu0 %v169
  %v1827 = vpop.f32.mrf.mxu0
  %v1828 = vadd.f32 %v1815, %v1827
  %v1829 = vpop.f32.mrf.mxu0
  %1830 = vdwg.mxu0
  %1831 = vmatpush.bf16.msra.mxu0 %v1780
  %1832 = vmatpush.bf16.msra.mxu0 %v1778
  %1833 = vmatpush.bf16.msra.mxu0 %v1776
  %1834 = vmatpush.bf16.msra.mxu0 %v1774
  %1835 = vmatpush.bf16.msra.mxu0 %v1772
  %1836 = vmatpush.bf16.msra.mxu0 %v1770
  %1837 = vmatpush.bf16.msra.mxu0 %v1768
  %1838 = vmatpush.bf16.msra.mxu0 %v1766
  %1839 = vmatmul.bf16.gmra.mxu0 %v76
  %v1840 = vpop.f32.mrf.mxu0
  %v1841 = vadd.f32 0.0, %v1840
  %v1842 = vpop.f32.mrf.mxu0
  %1843 = vdwg.mxu0
  %1844 = vmatpush.bf16.msra.mxu0 0
  %1845 = vmatpush.bf16.msra.mxu0 0
  %1846 = vmatpush.bf16.msra.mxu0 0
  %1847 = vmatpush.bf16.msra.mxu0 0
  %1848 = vmatpush.bf16.msra.mxu0 0
  %1849 = vmatpush.bf16.msra.mxu0 0
  %1850 = vmatpush.bf16.msra.mxu0 0
  %1851 = vmatpush.bf16.msra.mxu0 %v1803
  %1852 = vmatmul.bf16.gmra.mxu0 %v169
  %v1853 = vpop.f32.mrf.mxu0
  %v1854 = vadd.f32 %v1841, %v1853
  %v1855 = vpop.f32.mrf.mxu0
  %1856 = vdwg.mxu0
  %v1857 = vmax.f32 %v1828, 0.0
  %v1858 = vmax.f32 %v1854, 0.0
  %v1859 = vpack.c.bf16 %v1857, %v1857
  %v1860 = vpack.c.bf16 %v1858, %v1858
  %s1861 = scalar_lea.vmem %s3, 640
  %v1862 = vld [vmem:[%s1861] sm:$0xf]
  %v1863 = vld [vmem:[%s1861 + $0x4] sm:$0xf]
  %v1864 = vld [vmem:[%s1861 + $0x8] sm:$0xf]
  %v1865 = vld [vmem:[%s1861 + $0xc] sm:$0xf]
  %v1866 = vld [vmem:[%s1861 + $0x10] sm:$0xf]
  %v1867 = vld [vmem:[%s1861 + $0x14] sm:$0xf]
  %v1868 = vld [vmem:[%s1861 + $0x18] sm:$0xf]
  %v1869 = vld [vmem:[%s1861 + $0x1c] sm:$0xf]
  %v1870 = vld [vmem:[%s1861 + $0x20] sm:$0xf]
  %v1871 = vld [vmem:[%s1861 + $0x24] sm:$0xf]
  %v1872 = vld [vmem:[%s1861 + $0x28] sm:$0xf]
  %v1873 = vld [vmem:[%s1861 + $0x2c] sm:$0xf]
  %v1874 = vld [vmem:[%s1861 + $0x30] sm:$0xf]
  %v1875 = vld [vmem:[%s1861 + $0x34] sm:$0xf]
  %v1876 = vld [vmem:[%s1861 + $0x38] sm:$0xf]
  %v1877 = vld [vmem:[%s1861 + $0x3c] sm:$0xf]
  %v1878 = vld [vmem:[%s1861 + $0x40] sm:$0xf]
  %v1879 = vld [vmem:[%s1861 + $0x44] sm:$0xf]
  %v1880 = vld [vmem:[%s1861 + $0x48] sm:$0xf]
  %v1881 = vld [vmem:[%s1861 + $0x4c] sm:$0xf]
  %v1882 = vld [vmem:[%s1861 + $0x50] sm:$0xf]
  %v1883 = vld [vmem:[%s1861 + $0x54] sm:$0xf]
  %v1884 = vld [vmem:[%s1861 + $0x58] sm:$0xf]
  %v1885 = vld [vmem:[%s1861 + $0x5c] sm:$0xf]
  %v1886 = vld [vmem:[%s1861 + $0x60] sm:$0xf]
  %v1887 = vld [vmem:[%s1861 + $0x64] sm:$0xf]
  %v1888 = vld [vmem:[%s1861 + $0x68] sm:$0xf]
  %v1889 = vld [vmem:[%s1861 + $0x6c] sm:$0xf]
  %v1890 = vld [vmem:[%s1861 + $0x70] sm:$0xf]
  %v1891 = vld [vmem:[%s1861 + $0x74] sm:$0xf]
  %v1892 = vld [vmem:[%s1861 + $0x78] sm:$0xf]
  %v1893 = vld [vmem:[%s1861 + $0x7c] sm:$0xf]
  %v1926 = vunpack.c.l.b16 %v1862
  %v1927 = vunpack.c.l.b16 %v1863
  %v1928 = vunpack.c.l.b16 %v1864
  %v1929 = vunpack.c.l.b16 %v1865
  %v1930 = vunpack.c.l.b16 %v1866
  %v1931 = vunpack.c.l.b16 %v1867
  %v1932 = vunpack.c.l.b16 %v1868
  %v1933 = vunpack.c.l.b16 %v1869
  %v1934 = vunpack.c.l.b16 %v1870
  %v1935 = vunpack.c.l.b16 %v1871
  %v1936 = vunpack.c.l.b16 %v1872
  %v1937 = vunpack.c.l.b16 %v1873
  %v1938 = vunpack.c.l.b16 %v1874
  %v1939 = vunpack.c.l.b16 %v1875
  %v1940 = vunpack.c.l.b16 %v1876
  %v1941 = vunpack.c.l.b16 %v1877
  %v1942 = vunpack.c.l.b16 %v1878
  %v1943 = vunpack.c.l.b16 %v1879
  %v1944 = vunpack.c.l.b16 %v1880
  %v1945 = vunpack.c.l.b16 %v1881
  %v1946 = vunpack.c.l.b16 %v1882
  %v1947 = vunpack.c.l.b16 %v1883
  %v1948 = vunpack.c.l.b16 %v1884
  %v1949 = vunpack.c.l.b16 %v1885
  %v1950 = vunpack.c.l.b16 %v1886
  %v1951 = vunpack.c.l.b16 %v1887
  %v1952 = vunpack.c.l.b16 %v1888
  %v1953 = vunpack.c.l.b16 %v1889
  %v1954 = vunpack.c.l.b16 %v1890
  %v1955 = vunpack.c.l.b16 %v1891
  %v1956 = vunpack.c.l.b16 %v1892
  %v1957 = vunpack.c.l.b16 %v1893
  %v1958 = vpack.c.b16 %v1927, %v1926
  %v1959 = vpack.c.b16 %v1929, %v1928
  %v1960 = vpack.c.b16 %v1931, %v1930
  %v1961 = vpack.c.b16 %v1933, %v1932
  %v1962 = vpack.c.b16 %v1935, %v1934
  %v1963 = vpack.c.b16 %v1937, %v1936
  %v1964 = vpack.c.b16 %v1939, %v1938
  %v1965 = vpack.c.b16 %v1941, %v1940
  %v1966 = vpack.c.b16 %v1943, %v1942
  %v1967 = vpack.c.b16 %v1945, %v1944
  %v1968 = vpack.c.b16 %v1947, %v1946
  %v1969 = vpack.c.b16 %v1949, %v1948
  %v1970 = vpack.c.b16 %v1951, %v1950
  %v1971 = vpack.c.b16 %v1953, %v1952
  %v1972 = vpack.c.b16 %v1955, %v1954
  %v1973 = vpack.c.b16 %v1957, %v1956
  %1990 = vmatpush.bf16.msra.mxu0 %v1965
  %1991 = vmatpush.bf16.msra.mxu0 %v1964
  %1992 = vmatpush.bf16.msra.mxu0 %v1963
  %1993 = vmatpush.bf16.msra.mxu0 %v1962
  %1994 = vmatpush.bf16.msra.mxu0 %v1961
  %1995 = vmatpush.bf16.msra.mxu0 %v1960
  %1996 = vmatpush.bf16.msra.mxu0 %v1959
  %1997 = vmatpush.bf16.msra.mxu0 %v1958
  %1998 = vmatmul.bf16.gmra.mxu0 %v1859
  %v1999 = vpop.f32.mrf.mxu0
  %v2000 = vadd.f32 0.0, %v1999
  %v2001 = vpop.f32.mrf.mxu0
  %2002 = vdwg.mxu0
  %2003 = vmatpush.bf16.msra.mxu0 %v1973
  %2004 = vmatpush.bf16.msra.mxu0 %v1972
  %2005 = vmatpush.bf16.msra.mxu0 %v1971
  %2006 = vmatpush.bf16.msra.mxu0 %v1970
  %2007 = vmatpush.bf16.msra.mxu0 %v1969
  %2008 = vmatpush.bf16.msra.mxu0 %v1968
  %2009 = vmatpush.bf16.msra.mxu0 %v1967
  %2010 = vmatpush.bf16.msra.mxu0 %v1966
  %2011 = vmatmul.bf16.gmra.mxu0 %v1860
  %v2012 = vpop.f32.mrf.mxu0
  %v2013 = vadd.f32 %v2000, %v2012
  %v2014 = vpop.f32.mrf.mxu0
  %2015 = vdwg.mxu0
  %v2016 = vadd.f32 %v1691, %v2013
  %s2017 = scalar_lea.vmem %s2, 48
  %v2018 = vld [vmem:[%s2017] sm:$0xff]
  %v2019 = vld [vmem:[%s2017 + $0x58] sm:$0xff]
  %v2020 = vld [vmem:[%s2017 + $0xb0] sm:$0xff]
  %v2021 = vld [vmem:[%s2017 + $0x108] sm:$0xff]
  %v2022 = vld [vmem:[%s2017 + $0x160] sm:$0xff]
  %v2023 = vld [vmem:[%s2017 + $0x1b8] sm:$0xff]
  %v2024 = vld [vmem:[%s2017 + $0x210] sm:$0xff]
  %v2025 = vld [vmem:[%s2017 + $0x268] sm:$0xff]
  %v2026 = vld [vmem:[%s2017 + $0x2c0] sm:$0xff]
  %v2027 = vld [vmem:[%s2017 + $0x318] sm:$0xff]
  %v2028 = vld [vmem:[%s2017 + $0x370] sm:$0xff]
  %v2029 = vld [vmem:[%s2017 + $0x3c8] sm:$0xff]
  %v2030 = vld [vmem:[%s2017 + $0x420] sm:$0xff]
  %v2031 = vld [vmem:[%s2017 + $0x478] sm:$0xff]
  %v2032 = vld [vmem:[%s2017 + $0x4d0] sm:$0xff]
  %v2033 = vld [vmem:[%s2017 + $0x528] sm:$0xff]
  %v2034 = vld [vmem:[%s2017 + $0x580] sm:$0xff]
  %v2035 = vld [vmem:[%s2017 + $0x5d8] sm:$0x11]
  %v2054 = vunpack.c.l.b16 %v2018
  %v2055 = vunpack.c.h.b16 %v2018
  %v2056 = vunpack.c.l.b16 %v2019
  %v2057 = vunpack.c.h.b16 %v2019
  %v2058 = vunpack.c.l.b16 %v2020
  %v2059 = vunpack.c.h.b16 %v2020
  %v2060 = vunpack.c.l.b16 %v2021
  %v2061 = vunpack.c.h.b16 %v2021
  %v2062 = vunpack.c.l.b16 %v2022
  %v2063 = vunpack.c.h.b16 %v2022
  %v2064 = vunpack.c.l.b16 %v2023
  %v2065 = vunpack.c.h.b16 %v2023
  %v2066 = vunpack.c.l.b16 %v2024
  %v2067 = vunpack.c.h.b16 %v2024
  %v2068 = vunpack.c.l.b16 %v2025
  %v2069 = vunpack.c.h.b16 %v2025
  %v2070 = vunpack.c.l.b16 %v2026
  %v2071 = vunpack.c.h.b16 %v2026
  %v2072 = vunpack.c.l.b16 %v2027
  %v2073 = vunpack.c.h.b16 %v2027
  %v2074 = vunpack.c.l.b16 %v2028
  %v2075 = vunpack.c.h.b16 %v2028
  %v2076 = vunpack.c.l.b16 %v2029
  %v2077 = vunpack.c.h.b16 %v2029
  %v2078 = vunpack.c.l.b16 %v2030
  %v2079 = vunpack.c.h.b16 %v2030
  %v2080 = vunpack.c.l.b16 %v2031
  %v2081 = vunpack.c.h.b16 %v2031
  %v2082 = vunpack.c.l.b16 %v2032
  %v2083 = vunpack.c.h.b16 %v2032
  %v2084 = vunpack.c.l.b16 %v2033
  %v2085 = vunpack.c.h.b16 %v2033
  %v2086 = vunpack.c.l.b16 %v2034
  %v2087 = vunpack.c.h.b16 %v2034
  %v2088 = vunpack.c.l.b16 %v2035
  %v2089 = vunpack.c.h.b16 %v2035
  %v2090 = vpack.c.b16 %v2056, %v2054
  %v2091 = vpack.c.b16 %v2057, %v2055
  %v2092 = vpack.c.b16 %v2060, %v2058
  %v2093 = vpack.c.b16 %v2061, %v2059
  %v2094 = vpack.c.b16 %v2064, %v2062
  %v2095 = vpack.c.b16 %v2065, %v2063
  %v2096 = vpack.c.b16 %v2068, %v2066
  %v2097 = vpack.c.b16 %v2069, %v2067
  %v2098 = vpack.c.b16 %v2072, %v2070
  %v2099 = vpack.c.b16 %v2073, %v2071
  %v2100 = vpack.c.b16 %v2076, %v2074
  %v2101 = vpack.c.b16 %v2077, %v2075
  %v2102 = vpack.c.b16 %v2080, %v2078
  %v2103 = vpack.c.b16 %v2081, %v2079
  %v2104 = vpack.c.b16 %v2084, %v2082
  %v2105 = vpack.c.b16 %v2085, %v2083
  %v2106 = vpack.c.b16 %v2088, %v2086
  %v2107 = vpack.c.b16 %v2089, %v2087
  %v2125 = vand.u32 %v2106, %v174
  %v2128 = vand.u32 %v2107, %v174
  %2130 = vmatpush.bf16.msra.mxu0 %v2104
  %2131 = vmatpush.bf16.msra.mxu0 %v2102
  %2132 = vmatpush.bf16.msra.mxu0 %v2100
  %2133 = vmatpush.bf16.msra.mxu0 %v2098
  %2134 = vmatpush.bf16.msra.mxu0 %v2096
  %2135 = vmatpush.bf16.msra.mxu0 %v2094
  %2136 = vmatpush.bf16.msra.mxu0 %v2092
  %2137 = vmatpush.bf16.msra.mxu0 %v2090
  %2138 = vmatmul.bf16.gmra.mxu0 %v76
  %v2139 = vpop.f32.mrf.mxu0
  %v2140 = vadd.f32 0.0, %v2139
  %v2141 = vpop.f32.mrf.mxu0
  %2142 = vdwg.mxu0
  %2143 = vmatpush.bf16.msra.mxu0 0
  %2144 = vmatpush.bf16.msra.mxu0 0
  %2145 = vmatpush.bf16.msra.mxu0 0
  %2146 = vmatpush.bf16.msra.mxu0 0
  %2147 = vmatpush.bf16.msra.mxu0 0
  %2148 = vmatpush.bf16.msra.mxu0 0
  %2149 = vmatpush.bf16.msra.mxu0 0
  %2150 = vmatpush.bf16.msra.mxu0 %v2125
  %2151 = vmatmul.bf16.gmra.mxu0 %v169
  %v2152 = vpop.f32.mrf.mxu0
  %v2153 = vadd.f32 %v2140, %v2152
  %v2154 = vpop.f32.mrf.mxu0
  %2155 = vdwg.mxu0
  %2156 = vmatpush.bf16.msra.mxu0 %v2105
  %2157 = vmatpush.bf16.msra.mxu0 %v2103
  %2158 = vmatpush.bf16.msra.mxu0 %v2101
  %2159 = vmatpush.bf16.msra.mxu0 %v2099
  %2160 = vmatpush.bf16.msra.mxu0 %v2097
  %2161 = vmatpush.bf16.msra.mxu0 %v2095
  %2162 = vmatpush.bf16.msra.mxu0 %v2093
  %2163 = vmatpush.bf16.msra.mxu0 %v2091
  %2164 = vmatmul.bf16.gmra.mxu0 %v76
  %v2165 = vpop.f32.mrf.mxu0
  %v2166 = vadd.f32 0.0, %v2165
  %v2167 = vpop.f32.mrf.mxu0
  %2168 = vdwg.mxu0
  %2169 = vmatpush.bf16.msra.mxu0 0
  %2170 = vmatpush.bf16.msra.mxu0 0
  %2171 = vmatpush.bf16.msra.mxu0 0
  %2172 = vmatpush.bf16.msra.mxu0 0
  %2173 = vmatpush.bf16.msra.mxu0 0
  %2174 = vmatpush.bf16.msra.mxu0 0
  %2175 = vmatpush.bf16.msra.mxu0 0
  %2176 = vmatpush.bf16.msra.mxu0 %v2128
  %2177 = vmatmul.bf16.gmra.mxu0 %v169
  %v2178 = vpop.f32.mrf.mxu0
  %v2179 = vadd.f32 %v2166, %v2178
  %v2180 = vpop.f32.mrf.mxu0
  %2181 = vdwg.mxu0
  %v2182 = vmax.f32 %v2153, 0.0
  %v2183 = vmax.f32 %v2179, 0.0
  %v2184 = vpack.c.bf16 %v2182, %v2182
  %v2185 = vpack.c.bf16 %v2183, %v2183
  %s2186 = scalar_lea.vmem %s3, 768
  %v2187 = vld [vmem:[%s2186] sm:$0xf]
  %v2188 = vld [vmem:[%s2186 + $0x4] sm:$0xf]
  %v2189 = vld [vmem:[%s2186 + $0x8] sm:$0xf]
  %v2190 = vld [vmem:[%s2186 + $0xc] sm:$0xf]
  %v2191 = vld [vmem:[%s2186 + $0x10] sm:$0xf]
  %v2192 = vld [vmem:[%s2186 + $0x14] sm:$0xf]
  %v2193 = vld [vmem:[%s2186 + $0x18] sm:$0xf]
  %v2194 = vld [vmem:[%s2186 + $0x1c] sm:$0xf]
  %v2195 = vld [vmem:[%s2186 + $0x20] sm:$0xf]
  %v2196 = vld [vmem:[%s2186 + $0x24] sm:$0xf]
  %v2197 = vld [vmem:[%s2186 + $0x28] sm:$0xf]
  %v2198 = vld [vmem:[%s2186 + $0x2c] sm:$0xf]
  %v2199 = vld [vmem:[%s2186 + $0x30] sm:$0xf]
  %v2200 = vld [vmem:[%s2186 + $0x34] sm:$0xf]
  %v2201 = vld [vmem:[%s2186 + $0x38] sm:$0xf]
  %v2202 = vld [vmem:[%s2186 + $0x3c] sm:$0xf]
  %v2203 = vld [vmem:[%s2186 + $0x40] sm:$0xf]
  %v2204 = vld [vmem:[%s2186 + $0x44] sm:$0xf]
  %v2205 = vld [vmem:[%s2186 + $0x48] sm:$0xf]
  %v2206 = vld [vmem:[%s2186 + $0x4c] sm:$0xf]
  %v2207 = vld [vmem:[%s2186 + $0x50] sm:$0xf]
  %v2208 = vld [vmem:[%s2186 + $0x54] sm:$0xf]
  %v2209 = vld [vmem:[%s2186 + $0x58] sm:$0xf]
  %v2210 = vld [vmem:[%s2186 + $0x5c] sm:$0xf]
  %v2211 = vld [vmem:[%s2186 + $0x60] sm:$0xf]
  %v2212 = vld [vmem:[%s2186 + $0x64] sm:$0xf]
  %v2213 = vld [vmem:[%s2186 + $0x68] sm:$0xf]
  %v2214 = vld [vmem:[%s2186 + $0x6c] sm:$0xf]
  %v2215 = vld [vmem:[%s2186 + $0x70] sm:$0xf]
  %v2216 = vld [vmem:[%s2186 + $0x74] sm:$0xf]
  %v2217 = vld [vmem:[%s2186 + $0x78] sm:$0xf]
  %v2218 = vld [vmem:[%s2186 + $0x7c] sm:$0xf]
  %v2251 = vunpack.c.l.b16 %v2187
  %v2252 = vunpack.c.l.b16 %v2188
  %v2253 = vunpack.c.l.b16 %v2189
  %v2254 = vunpack.c.l.b16 %v2190
  %v2255 = vunpack.c.l.b16 %v2191
  %v2256 = vunpack.c.l.b16 %v2192
  %v2257 = vunpack.c.l.b16 %v2193
  %v2258 = vunpack.c.l.b16 %v2194
  %v2259 = vunpack.c.l.b16 %v2195
  %v2260 = vunpack.c.l.b16 %v2196
  %v2261 = vunpack.c.l.b16 %v2197
  %v2262 = vunpack.c.l.b16 %v2198
  %v2263 = vunpack.c.l.b16 %v2199
  %v2264 = vunpack.c.l.b16 %v2200
  %v2265 = vunpack.c.l.b16 %v2201
  %v2266 = vunpack.c.l.b16 %v2202
  %v2267 = vunpack.c.l.b16 %v2203
  %v2268 = vunpack.c.l.b16 %v2204
  %v2269 = vunpack.c.l.b16 %v2205
  %v2270 = vunpack.c.l.b16 %v2206
  %v2271 = vunpack.c.l.b16 %v2207
  %v2272 = vunpack.c.l.b16 %v2208
  %v2273 = vunpack.c.l.b16 %v2209
  %v2274 = vunpack.c.l.b16 %v2210
  %v2275 = vunpack.c.l.b16 %v2211
  %v2276 = vunpack.c.l.b16 %v2212
  %v2277 = vunpack.c.l.b16 %v2213
  %v2278 = vunpack.c.l.b16 %v2214
  %v2279 = vunpack.c.l.b16 %v2215
  %v2280 = vunpack.c.l.b16 %v2216
  %v2281 = vunpack.c.l.b16 %v2217
  %v2282 = vunpack.c.l.b16 %v2218
  %v2283 = vpack.c.b16 %v2252, %v2251
  %v2284 = vpack.c.b16 %v2254, %v2253
  %v2285 = vpack.c.b16 %v2256, %v2255
  %v2286 = vpack.c.b16 %v2258, %v2257
  %v2287 = vpack.c.b16 %v2260, %v2259
  %v2288 = vpack.c.b16 %v2262, %v2261
  %v2289 = vpack.c.b16 %v2264, %v2263
  %v2290 = vpack.c.b16 %v2266, %v2265
  %v2291 = vpack.c.b16 %v2268, %v2267
  %v2292 = vpack.c.b16 %v2270, %v2269
  %v2293 = vpack.c.b16 %v2272, %v2271
  %v2294 = vpack.c.b16 %v2274, %v2273
  %v2295 = vpack.c.b16 %v2276, %v2275
  %v2296 = vpack.c.b16 %v2278, %v2277
  %v2297 = vpack.c.b16 %v2280, %v2279
  %v2298 = vpack.c.b16 %v2282, %v2281
  %2315 = vmatpush.bf16.msra.mxu0 %v2290
  %2316 = vmatpush.bf16.msra.mxu0 %v2289
  %2317 = vmatpush.bf16.msra.mxu0 %v2288
  %2318 = vmatpush.bf16.msra.mxu0 %v2287
  %2319 = vmatpush.bf16.msra.mxu0 %v2286
  %2320 = vmatpush.bf16.msra.mxu0 %v2285
  %2321 = vmatpush.bf16.msra.mxu0 %v2284
  %2322 = vmatpush.bf16.msra.mxu0 %v2283
  %2323 = vmatmul.bf16.gmra.mxu0 %v2184
  %v2324 = vpop.f32.mrf.mxu0
  %v2325 = vadd.f32 0.0, %v2324
  %v2326 = vpop.f32.mrf.mxu0
  %2327 = vdwg.mxu0
  %2328 = vmatpush.bf16.msra.mxu0 %v2298
  %2329 = vmatpush.bf16.msra.mxu0 %v2297
  %2330 = vmatpush.bf16.msra.mxu0 %v2296
  %2331 = vmatpush.bf16.msra.mxu0 %v2295
  %2332 = vmatpush.bf16.msra.mxu0 %v2294
  %2333 = vmatpush.bf16.msra.mxu0 %v2293
  %2334 = vmatpush.bf16.msra.mxu0 %v2292
  %2335 = vmatpush.bf16.msra.mxu0 %v2291
  %2336 = vmatmul.bf16.gmra.mxu0 %v2185
  %v2337 = vpop.f32.mrf.mxu0
  %v2338 = vadd.f32 %v2325, %v2337
  %v2339 = vpop.f32.mrf.mxu0
  %2340 = vdwg.mxu0
  %v2341 = vadd.f32 %v2016, %v2338
  %s2342 = scalar_lea.vmem %s2, 56
  %v2343 = vld [vmem:[%s2342] sm:$0xff]
  %v2344 = vld [vmem:[%s2342 + $0x58] sm:$0xff]
  %v2345 = vld [vmem:[%s2342 + $0xb0] sm:$0xff]
  %v2346 = vld [vmem:[%s2342 + $0x108] sm:$0xff]
  %v2347 = vld [vmem:[%s2342 + $0x160] sm:$0xff]
  %v2348 = vld [vmem:[%s2342 + $0x1b8] sm:$0xff]
  %v2349 = vld [vmem:[%s2342 + $0x210] sm:$0xff]
  %v2350 = vld [vmem:[%s2342 + $0x268] sm:$0xff]
  %v2351 = vld [vmem:[%s2342 + $0x2c0] sm:$0xff]
  %v2352 = vld [vmem:[%s2342 + $0x318] sm:$0xff]
  %v2353 = vld [vmem:[%s2342 + $0x370] sm:$0xff]
  %v2354 = vld [vmem:[%s2342 + $0x3c8] sm:$0xff]
  %v2355 = vld [vmem:[%s2342 + $0x420] sm:$0xff]
  %v2356 = vld [vmem:[%s2342 + $0x478] sm:$0xff]
  %v2357 = vld [vmem:[%s2342 + $0x4d0] sm:$0xff]
  %v2358 = vld [vmem:[%s2342 + $0x528] sm:$0xff]
  %v2359 = vld [vmem:[%s2342 + $0x580] sm:$0xff]
  %v2360 = vld [vmem:[%s2342 + $0x5d8] sm:$0x11]
  %v2379 = vunpack.c.l.b16 %v2343
  %v2380 = vunpack.c.h.b16 %v2343
  %v2381 = vunpack.c.l.b16 %v2344
  %v2382 = vunpack.c.h.b16 %v2344
  %v2383 = vunpack.c.l.b16 %v2345
  %v2384 = vunpack.c.h.b16 %v2345
  %v2385 = vunpack.c.l.b16 %v2346
  %v2386 = vunpack.c.h.b16 %v2346
  %v2387 = vunpack.c.l.b16 %v2347
  %v2388 = vunpack.c.h.b16 %v2347
  %v2389 = vunpack.c.l.b16 %v2348
  %v2390 = vunpack.c.h.b16 %v2348
  %v2391 = vunpack.c.l.b16 %v2349
  %v2392 = vunpack.c.h.b16 %v2349
  %v2393 = vunpack.c.l.b16 %v2350
  %v2394 = vunpack.c.h.b16 %v2350
  %v2395 = vunpack.c.l.b16 %v2351
  %v2396 = vunpack.c.h.b16 %v2351
  %v2397 = vunpack.c.l.b16 %v2352
  %v2398 = vunpack.c.h.b16 %v2352
  %v2399 = vunpack.c.l.b16 %v2353
  %v2400 = vunpack.c.h.b16 %v2353
  %v2401 = vunpack.c.l.b16 %v2354
  %v2402 = vunpack.c.h.b16 %v2354
  %v2403 = vunpack.c.l.b16 %v2355
  %v2404 = vunpack.c.h.b16 %v2355
  %v2405 = vunpack.c.l.b16 %v2356
  %v2406 = vunpack.c.h.b16 %v2356
  %v2407 = vunpack.c.l.b16 %v2357
  %v2408 = vunpack.c.h.b16 %v2357
  %v2409 = vunpack.c.l.b16 %v2358
  %v2410 = vunpack.c.h.b16 %v2358
  %v2411 = vunpack.c.l.b16 %v2359
  %v2412 = vunpack.c.h.b16 %v2359
  %v2413 = vunpack.c.l.b16 %v2360
  %v2414 = vunpack.c.h.b16 %v2360
  %v2415 = vpack.c.b16 %v2381, %v2379
  %v2416 = vpack.c.b16 %v2382, %v2380
  %v2417 = vpack.c.b16 %v2385, %v2383
  %v2418 = vpack.c.b16 %v2386, %v2384
  %v2419 = vpack.c.b16 %v2389, %v2387
  %v2420 = vpack.c.b16 %v2390, %v2388
  %v2421 = vpack.c.b16 %v2393, %v2391
  %v2422 = vpack.c.b16 %v2394, %v2392
  %v2423 = vpack.c.b16 %v2397, %v2395
  %v2424 = vpack.c.b16 %v2398, %v2396
  %v2425 = vpack.c.b16 %v2401, %v2399
  %v2426 = vpack.c.b16 %v2402, %v2400
  %v2427 = vpack.c.b16 %v2405, %v2403
  %v2428 = vpack.c.b16 %v2406, %v2404
  %v2429 = vpack.c.b16 %v2409, %v2407
  %v2430 = vpack.c.b16 %v2410, %v2408
  %v2431 = vpack.c.b16 %v2413, %v2411
  %v2432 = vpack.c.b16 %v2414, %v2412
  %v2450 = vand.u32 %v2431, %v174
  %v2453 = vand.u32 %v2432, %v174
  %2455 = vmatpush.bf16.msra.mxu0 %v2429
  %2456 = vmatpush.bf16.msra.mxu0 %v2427
  %2457 = vmatpush.bf16.msra.mxu0 %v2425
  %2458 = vmatpush.bf16.msra.mxu0 %v2423
  %2459 = vmatpush.bf16.msra.mxu0 %v2421
  %2460 = vmatpush.bf16.msra.mxu0 %v2419
  %2461 = vmatpush.bf16.msra.mxu0 %v2417
  %2462 = vmatpush.bf16.msra.mxu0 %v2415
  %2463 = vmatmul.bf16.gmra.mxu0 %v76
  %v2464 = vpop.f32.mrf.mxu0
  %v2465 = vadd.f32 0.0, %v2464
  %v2466 = vpop.f32.mrf.mxu0
  %2467 = vdwg.mxu0
  %2468 = vmatpush.bf16.msra.mxu0 0
  %2469 = vmatpush.bf16.msra.mxu0 0
  %2470 = vmatpush.bf16.msra.mxu0 0
  %2471 = vmatpush.bf16.msra.mxu0 0
  %2472 = vmatpush.bf16.msra.mxu0 0
  %2473 = vmatpush.bf16.msra.mxu0 0
  %2474 = vmatpush.bf16.msra.mxu0 0
  %2475 = vmatpush.bf16.msra.mxu0 %v2450
  %2476 = vmatmul.bf16.gmra.mxu0 %v169
  %v2477 = vpop.f32.mrf.mxu0
  %v2478 = vadd.f32 %v2465, %v2477
  %v2479 = vpop.f32.mrf.mxu0
  %2480 = vdwg.mxu0
  %2481 = vmatpush.bf16.msra.mxu0 %v2430
  %2482 = vmatpush.bf16.msra.mxu0 %v2428
  %2483 = vmatpush.bf16.msra.mxu0 %v2426
  %2484 = vmatpush.bf16.msra.mxu0 %v2424
  %2485 = vmatpush.bf16.msra.mxu0 %v2422
  %2486 = vmatpush.bf16.msra.mxu0 %v2420
  %2487 = vmatpush.bf16.msra.mxu0 %v2418
  %2488 = vmatpush.bf16.msra.mxu0 %v2416
  %2489 = vmatmul.bf16.gmra.mxu0 %v76
  %v2490 = vpop.f32.mrf.mxu0
  %v2491 = vadd.f32 0.0, %v2490
  %v2492 = vpop.f32.mrf.mxu0
  %2493 = vdwg.mxu0
  %2494 = vmatpush.bf16.msra.mxu0 0
  %2495 = vmatpush.bf16.msra.mxu0 0
  %2496 = vmatpush.bf16.msra.mxu0 0
  %2497 = vmatpush.bf16.msra.mxu0 0
  %2498 = vmatpush.bf16.msra.mxu0 0
  %2499 = vmatpush.bf16.msra.mxu0 0
  %2500 = vmatpush.bf16.msra.mxu0 0
  %2501 = vmatpush.bf16.msra.mxu0 %v2453
  %2502 = vmatmul.bf16.gmra.mxu0 %v169
  %v2503 = vpop.f32.mrf.mxu0
  %v2504 = vadd.f32 %v2491, %v2503
  %v2505 = vpop.f32.mrf.mxu0
  %2506 = vdwg.mxu0
  %v2507 = vmax.f32 %v2478, 0.0
  %v2508 = vmax.f32 %v2504, 0.0
  %v2509 = vpack.c.bf16 %v2507, %v2507
  %v2510 = vpack.c.bf16 %v2508, %v2508
  %s2511 = scalar_lea.vmem %s3, 896
  %v2512 = vld [vmem:[%s2511] sm:$0xf]
  %v2513 = vld [vmem:[%s2511 + $0x4] sm:$0xf]
  %v2514 = vld [vmem:[%s2511 + $0x8] sm:$0xf]
  %v2515 = vld [vmem:[%s2511 + $0xc] sm:$0xf]
  %v2516 = vld [vmem:[%s2511 + $0x10] sm:$0xf]
  %v2517 = vld [vmem:[%s2511 + $0x14] sm:$0xf]
  %v2518 = vld [vmem:[%s2511 + $0x18] sm:$0xf]
  %v2519 = vld [vmem:[%s2511 + $0x1c] sm:$0xf]
  %v2520 = vld [vmem:[%s2511 + $0x20] sm:$0xf]
  %v2521 = vld [vmem:[%s2511 + $0x24] sm:$0xf]
  %v2522 = vld [vmem:[%s2511 + $0x28] sm:$0xf]
  %v2523 = vld [vmem:[%s2511 + $0x2c] sm:$0xf]
  %v2524 = vld [vmem:[%s2511 + $0x30] sm:$0xf]
  %v2525 = vld [vmem:[%s2511 + $0x34] sm:$0xf]
  %v2526 = vld [vmem:[%s2511 + $0x38] sm:$0xf]
  %v2527 = vld [vmem:[%s2511 + $0x3c] sm:$0xf]
  %v2528 = vld [vmem:[%s2511 + $0x40] sm:$0xf]
  %v2529 = vld [vmem:[%s2511 + $0x44] sm:$0xf]
  %v2530 = vld [vmem:[%s2511 + $0x48] sm:$0xf]
  %v2531 = vld [vmem:[%s2511 + $0x4c] sm:$0xf]
  %v2532 = vld [vmem:[%s2511 + $0x50] sm:$0xf]
  %v2533 = vld [vmem:[%s2511 + $0x54] sm:$0xf]
  %v2534 = vld [vmem:[%s2511 + $0x58] sm:$0xf]
  %v2535 = vld [vmem:[%s2511 + $0x5c] sm:$0xf]
  %v2536 = vld [vmem:[%s2511 + $0x60] sm:$0xf]
  %v2537 = vld [vmem:[%s2511 + $0x64] sm:$0xf]
  %v2538 = vld [vmem:[%s2511 + $0x68] sm:$0xf]
  %v2539 = vld [vmem:[%s2511 + $0x6c] sm:$0xf]
  %v2540 = vld [vmem:[%s2511 + $0x70] sm:$0xf]
  %v2541 = vld [vmem:[%s2511 + $0x74] sm:$0xf]
  %v2542 = vld [vmem:[%s2511 + $0x78] sm:$0xf]
  %v2543 = vld [vmem:[%s2511 + $0x7c] sm:$0xf]
  %v2576 = vunpack.c.l.b16 %v2512
  %v2577 = vunpack.c.l.b16 %v2513
  %v2578 = vunpack.c.l.b16 %v2514
  %v2579 = vunpack.c.l.b16 %v2515
  %v2580 = vunpack.c.l.b16 %v2516
  %v2581 = vunpack.c.l.b16 %v2517
  %v2582 = vunpack.c.l.b16 %v2518
  %v2583 = vunpack.c.l.b16 %v2519
  %v2584 = vunpack.c.l.b16 %v2520
  %v2585 = vunpack.c.l.b16 %v2521
  %v2586 = vunpack.c.l.b16 %v2522
  %v2587 = vunpack.c.l.b16 %v2523
  %v2588 = vunpack.c.l.b16 %v2524
  %v2589 = vunpack.c.l.b16 %v2525
  %v2590 = vunpack.c.l.b16 %v2526
  %v2591 = vunpack.c.l.b16 %v2527
  %v2592 = vunpack.c.l.b16 %v2528
  %v2593 = vunpack.c.l.b16 %v2529
  %v2594 = vunpack.c.l.b16 %v2530
  %v2595 = vunpack.c.l.b16 %v2531
  %v2596 = vunpack.c.l.b16 %v2532
  %v2597 = vunpack.c.l.b16 %v2533
  %v2598 = vunpack.c.l.b16 %v2534
  %v2599 = vunpack.c.l.b16 %v2535
  %v2600 = vunpack.c.l.b16 %v2536
  %v2601 = vunpack.c.l.b16 %v2537
  %v2602 = vunpack.c.l.b16 %v2538
  %v2603 = vunpack.c.l.b16 %v2539
  %v2604 = vunpack.c.l.b16 %v2540
  %v2605 = vunpack.c.l.b16 %v2541
  %v2606 = vunpack.c.l.b16 %v2542
  %v2607 = vunpack.c.l.b16 %v2543
  %v2608 = vpack.c.b16 %v2577, %v2576
  %v2609 = vpack.c.b16 %v2579, %v2578
  %v2610 = vpack.c.b16 %v2581, %v2580
  %v2611 = vpack.c.b16 %v2583, %v2582
  %v2612 = vpack.c.b16 %v2585, %v2584
  %v2613 = vpack.c.b16 %v2587, %v2586
  %v2614 = vpack.c.b16 %v2589, %v2588
  %v2615 = vpack.c.b16 %v2591, %v2590
  %v2616 = vpack.c.b16 %v2593, %v2592
  %v2617 = vpack.c.b16 %v2595, %v2594
  %v2618 = vpack.c.b16 %v2597, %v2596
  %v2619 = vpack.c.b16 %v2599, %v2598
  %v2620 = vpack.c.b16 %v2601, %v2600
  %v2621 = vpack.c.b16 %v2603, %v2602
  %v2622 = vpack.c.b16 %v2605, %v2604
  %v2623 = vpack.c.b16 %v2607, %v2606
  %2640 = vmatpush.bf16.msra.mxu0 %v2615
  %2641 = vmatpush.bf16.msra.mxu0 %v2614
  %2642 = vmatpush.bf16.msra.mxu0 %v2613
  %2643 = vmatpush.bf16.msra.mxu0 %v2612
  %2644 = vmatpush.bf16.msra.mxu0 %v2611
  %2645 = vmatpush.bf16.msra.mxu0 %v2610
  %2646 = vmatpush.bf16.msra.mxu0 %v2609
  %2647 = vmatpush.bf16.msra.mxu0 %v2608
  %2648 = vmatmul.bf16.gmra.mxu0 %v2509
  %v2649 = vpop.f32.mrf.mxu0
  %v2650 = vadd.f32 0.0, %v2649
  %v2651 = vpop.f32.mrf.mxu0
  %2652 = vdwg.mxu0
  %2653 = vmatpush.bf16.msra.mxu0 %v2623
  %2654 = vmatpush.bf16.msra.mxu0 %v2622
  %2655 = vmatpush.bf16.msra.mxu0 %v2621
  %2656 = vmatpush.bf16.msra.mxu0 %v2620
  %2657 = vmatpush.bf16.msra.mxu0 %v2619
  %2658 = vmatpush.bf16.msra.mxu0 %v2618
  %2659 = vmatpush.bf16.msra.mxu0 %v2617
  %2660 = vmatpush.bf16.msra.mxu0 %v2616
  %2661 = vmatmul.bf16.gmra.mxu0 %v2510
  %v2662 = vpop.f32.mrf.mxu0
  %v2663 = vadd.f32 %v2650, %v2662
  %v2664 = vpop.f32.mrf.mxu0
  %2665 = vdwg.mxu0
  %v2666 = vadd.f32 %v2341, %v2663
  %s2667 = scalar_lea.vmem %s2, 64
  %v2668 = vld [vmem:[%s2667] sm:$0xff]
  %v2669 = vld [vmem:[%s2667 + $0x58] sm:$0xff]
  %v2670 = vld [vmem:[%s2667 + $0xb0] sm:$0xff]
  %v2671 = vld [vmem:[%s2667 + $0x108] sm:$0xff]
  %v2672 = vld [vmem:[%s2667 + $0x160] sm:$0xff]
  %v2673 = vld [vmem:[%s2667 + $0x1b8] sm:$0xff]
  %v2674 = vld [vmem:[%s2667 + $0x210] sm:$0xff]
  %v2675 = vld [vmem:[%s2667 + $0x268] sm:$0xff]
  %v2676 = vld [vmem:[%s2667 + $0x2c0] sm:$0xff]
  %v2677 = vld [vmem:[%s2667 + $0x318] sm:$0xff]
  %v2678 = vld [vmem:[%s2667 + $0x370] sm:$0xff]
  %v2679 = vld [vmem:[%s2667 + $0x3c8] sm:$0xff]
  %v2680 = vld [vmem:[%s2667 + $0x420] sm:$0xff]
  %v2681 = vld [vmem:[%s2667 + $0x478] sm:$0xff]
  %v2682 = vld [vmem:[%s2667 + $0x4d0] sm:$0xff]
  %v2683 = vld [vmem:[%s2667 + $0x528] sm:$0xff]
  %v2684 = vld [vmem:[%s2667 + $0x580] sm:$0xff]
  %v2685 = vld [vmem:[%s2667 + $0x5d8] sm:$0x11]
  %v2704 = vunpack.c.l.b16 %v2668
  %v2705 = vunpack.c.h.b16 %v2668
  %v2706 = vunpack.c.l.b16 %v2669
  %v2707 = vunpack.c.h.b16 %v2669
  %v2708 = vunpack.c.l.b16 %v2670
  %v2709 = vunpack.c.h.b16 %v2670
  %v2710 = vunpack.c.l.b16 %v2671
  %v2711 = vunpack.c.h.b16 %v2671
  %v2712 = vunpack.c.l.b16 %v2672
  %v2713 = vunpack.c.h.b16 %v2672
  %v2714 = vunpack.c.l.b16 %v2673
  %v2715 = vunpack.c.h.b16 %v2673
  %v2716 = vunpack.c.l.b16 %v2674
  %v2717 = vunpack.c.h.b16 %v2674
  %v2718 = vunpack.c.l.b16 %v2675
  %v2719 = vunpack.c.h.b16 %v2675
  %v2720 = vunpack.c.l.b16 %v2676
  %v2721 = vunpack.c.h.b16 %v2676
  %v2722 = vunpack.c.l.b16 %v2677
  %v2723 = vunpack.c.h.b16 %v2677
  %v2724 = vunpack.c.l.b16 %v2678
  %v2725 = vunpack.c.h.b16 %v2678
  %v2726 = vunpack.c.l.b16 %v2679
  %v2727 = vunpack.c.h.b16 %v2679
  %v2728 = vunpack.c.l.b16 %v2680
  %v2729 = vunpack.c.h.b16 %v2680
  %v2730 = vunpack.c.l.b16 %v2681
  %v2731 = vunpack.c.h.b16 %v2681
  %v2732 = vunpack.c.l.b16 %v2682
  %v2733 = vunpack.c.h.b16 %v2682
  %v2734 = vunpack.c.l.b16 %v2683
  %v2735 = vunpack.c.h.b16 %v2683
  %v2736 = vunpack.c.l.b16 %v2684
  %v2737 = vunpack.c.h.b16 %v2684
  %v2738 = vunpack.c.l.b16 %v2685
  %v2739 = vunpack.c.h.b16 %v2685
  %v2740 = vpack.c.b16 %v2706, %v2704
  %v2741 = vpack.c.b16 %v2707, %v2705
  %v2742 = vpack.c.b16 %v2710, %v2708
  %v2743 = vpack.c.b16 %v2711, %v2709
  %v2744 = vpack.c.b16 %v2714, %v2712
  %v2745 = vpack.c.b16 %v2715, %v2713
  %v2746 = vpack.c.b16 %v2718, %v2716
  %v2747 = vpack.c.b16 %v2719, %v2717
  %v2748 = vpack.c.b16 %v2722, %v2720
  %v2749 = vpack.c.b16 %v2723, %v2721
  %v2750 = vpack.c.b16 %v2726, %v2724
  %v2751 = vpack.c.b16 %v2727, %v2725
  %v2752 = vpack.c.b16 %v2730, %v2728
  %v2753 = vpack.c.b16 %v2731, %v2729
  %v2754 = vpack.c.b16 %v2734, %v2732
  %v2755 = vpack.c.b16 %v2735, %v2733
  %v2756 = vpack.c.b16 %v2738, %v2736
  %v2757 = vpack.c.b16 %v2739, %v2737
  %v2775 = vand.u32 %v2756, %v174
  %v2778 = vand.u32 %v2757, %v174
  %2780 = vmatpush.bf16.msra.mxu0 %v2754
  %2781 = vmatpush.bf16.msra.mxu0 %v2752
  %2782 = vmatpush.bf16.msra.mxu0 %v2750
  %2783 = vmatpush.bf16.msra.mxu0 %v2748
  %2784 = vmatpush.bf16.msra.mxu0 %v2746
  %2785 = vmatpush.bf16.msra.mxu0 %v2744
  %2786 = vmatpush.bf16.msra.mxu0 %v2742
  %2787 = vmatpush.bf16.msra.mxu0 %v2740
  %2788 = vmatmul.bf16.gmra.mxu0 %v76
  %v2789 = vpop.f32.mrf.mxu0
  %v2790 = vadd.f32 0.0, %v2789
  %v2791 = vpop.f32.mrf.mxu0
  %2792 = vdwg.mxu0
  %2793 = vmatpush.bf16.msra.mxu0 0
  %2794 = vmatpush.bf16.msra.mxu0 0
  %2795 = vmatpush.bf16.msra.mxu0 0
  %2796 = vmatpush.bf16.msra.mxu0 0
  %2797 = vmatpush.bf16.msra.mxu0 0
  %2798 = vmatpush.bf16.msra.mxu0 0
  %2799 = vmatpush.bf16.msra.mxu0 0
  %2800 = vmatpush.bf16.msra.mxu0 %v2775
  %2801 = vmatmul.bf16.gmra.mxu0 %v169
  %v2802 = vpop.f32.mrf.mxu0
  %v2803 = vadd.f32 %v2790, %v2802
  %v2804 = vpop.f32.mrf.mxu0
  %2805 = vdwg.mxu0
  %2806 = vmatpush.bf16.msra.mxu0 %v2755
  %2807 = vmatpush.bf16.msra.mxu0 %v2753
  %2808 = vmatpush.bf16.msra.mxu0 %v2751
  %2809 = vmatpush.bf16.msra.mxu0 %v2749
  %2810 = vmatpush.bf16.msra.mxu0 %v2747
  %2811 = vmatpush.bf16.msra.mxu0 %v2745
  %2812 = vmatpush.bf16.msra.mxu0 %v2743
  %2813 = vmatpush.bf16.msra.mxu0 %v2741
  %2814 = vmatmul.bf16.gmra.mxu0 %v76
  %v2815 = vpop.f32.mrf.mxu0
  %v2816 = vadd.f32 0.0, %v2815
  %v2817 = vpop.f32.mrf.mxu0
  %2818 = vdwg.mxu0
  %2819 = vmatpush.bf16.msra.mxu0 0
  %2820 = vmatpush.bf16.msra.mxu0 0
  %2821 = vmatpush.bf16.msra.mxu0 0
  %2822 = vmatpush.bf16.msra.mxu0 0
  %2823 = vmatpush.bf16.msra.mxu0 0
  %2824 = vmatpush.bf16.msra.mxu0 0
  %2825 = vmatpush.bf16.msra.mxu0 0
  %2826 = vmatpush.bf16.msra.mxu0 %v2778
  %2827 = vmatmul.bf16.gmra.mxu0 %v169
  %v2828 = vpop.f32.mrf.mxu0
  %v2829 = vadd.f32 %v2816, %v2828
  %v2830 = vpop.f32.mrf.mxu0
  %2831 = vdwg.mxu0
  %v2832 = vmax.f32 %v2803, 0.0
  %v2833 = vmax.f32 %v2829, 0.0
  %v2834 = vpack.c.bf16 %v2832, %v2832
  %v2835 = vpack.c.bf16 %v2833, %v2833
  %s2836 = scalar_lea.vmem %s3, 1024
  %v2837 = vld [vmem:[%s2836] sm:$0xf]
  %v2838 = vld [vmem:[%s2836 + $0x4] sm:$0xf]
  %v2839 = vld [vmem:[%s2836 + $0x8] sm:$0xf]
  %v2840 = vld [vmem:[%s2836 + $0xc] sm:$0xf]
  %v2841 = vld [vmem:[%s2836 + $0x10] sm:$0xf]
  %v2842 = vld [vmem:[%s2836 + $0x14] sm:$0xf]
  %v2843 = vld [vmem:[%s2836 + $0x18] sm:$0xf]
  %v2844 = vld [vmem:[%s2836 + $0x1c] sm:$0xf]
  %v2845 = vld [vmem:[%s2836 + $0x20] sm:$0xf]
  %v2846 = vld [vmem:[%s2836 + $0x24] sm:$0xf]
  %v2847 = vld [vmem:[%s2836 + $0x28] sm:$0xf]
  %v2848 = vld [vmem:[%s2836 + $0x2c] sm:$0xf]
  %v2849 = vld [vmem:[%s2836 + $0x30] sm:$0xf]
  %v2850 = vld [vmem:[%s2836 + $0x34] sm:$0xf]
  %v2851 = vld [vmem:[%s2836 + $0x38] sm:$0xf]
  %v2852 = vld [vmem:[%s2836 + $0x3c] sm:$0xf]
  %v2853 = vld [vmem:[%s2836 + $0x40] sm:$0xf]
  %v2854 = vld [vmem:[%s2836 + $0x44] sm:$0xf]
  %v2855 = vld [vmem:[%s2836 + $0x48] sm:$0xf]
  %v2856 = vld [vmem:[%s2836 + $0x4c] sm:$0xf]
  %v2857 = vld [vmem:[%s2836 + $0x50] sm:$0xf]
  %v2858 = vld [vmem:[%s2836 + $0x54] sm:$0xf]
  %v2859 = vld [vmem:[%s2836 + $0x58] sm:$0xf]
  %v2860 = vld [vmem:[%s2836 + $0x5c] sm:$0xf]
  %v2861 = vld [vmem:[%s2836 + $0x60] sm:$0xf]
  %v2862 = vld [vmem:[%s2836 + $0x64] sm:$0xf]
  %v2863 = vld [vmem:[%s2836 + $0x68] sm:$0xf]
  %v2864 = vld [vmem:[%s2836 + $0x6c] sm:$0xf]
  %v2865 = vld [vmem:[%s2836 + $0x70] sm:$0xf]
  %v2866 = vld [vmem:[%s2836 + $0x74] sm:$0xf]
  %v2867 = vld [vmem:[%s2836 + $0x78] sm:$0xf]
  %v2868 = vld [vmem:[%s2836 + $0x7c] sm:$0xf]
  %v2901 = vunpack.c.l.b16 %v2837
  %v2902 = vunpack.c.l.b16 %v2838
  %v2903 = vunpack.c.l.b16 %v2839
  %v2904 = vunpack.c.l.b16 %v2840
  %v2905 = vunpack.c.l.b16 %v2841
  %v2906 = vunpack.c.l.b16 %v2842
  %v2907 = vunpack.c.l.b16 %v2843
  %v2908 = vunpack.c.l.b16 %v2844
  %v2909 = vunpack.c.l.b16 %v2845
  %v2910 = vunpack.c.l.b16 %v2846
  %v2911 = vunpack.c.l.b16 %v2847
  %v2912 = vunpack.c.l.b16 %v2848
  %v2913 = vunpack.c.l.b16 %v2849
  %v2914 = vunpack.c.l.b16 %v2850
  %v2915 = vunpack.c.l.b16 %v2851
  %v2916 = vunpack.c.l.b16 %v2852
  %v2917 = vunpack.c.l.b16 %v2853
  %v2918 = vunpack.c.l.b16 %v2854
  %v2919 = vunpack.c.l.b16 %v2855
  %v2920 = vunpack.c.l.b16 %v2856
  %v2921 = vunpack.c.l.b16 %v2857
  %v2922 = vunpack.c.l.b16 %v2858
  %v2923 = vunpack.c.l.b16 %v2859
  %v2924 = vunpack.c.l.b16 %v2860
  %v2925 = vunpack.c.l.b16 %v2861
  %v2926 = vunpack.c.l.b16 %v2862
  %v2927 = vunpack.c.l.b16 %v2863
  %v2928 = vunpack.c.l.b16 %v2864
  %v2929 = vunpack.c.l.b16 %v2865
  %v2930 = vunpack.c.l.b16 %v2866
  %v2931 = vunpack.c.l.b16 %v2867
  %v2932 = vunpack.c.l.b16 %v2868
  %v2933 = vpack.c.b16 %v2902, %v2901
  %v2934 = vpack.c.b16 %v2904, %v2903
  %v2935 = vpack.c.b16 %v2906, %v2905
  %v2936 = vpack.c.b16 %v2908, %v2907
  %v2937 = vpack.c.b16 %v2910, %v2909
  %v2938 = vpack.c.b16 %v2912, %v2911
  %v2939 = vpack.c.b16 %v2914, %v2913
  %v2940 = vpack.c.b16 %v2916, %v2915
  %v2941 = vpack.c.b16 %v2918, %v2917
  %v2942 = vpack.c.b16 %v2920, %v2919
  %v2943 = vpack.c.b16 %v2922, %v2921
  %v2944 = vpack.c.b16 %v2924, %v2923
  %v2945 = vpack.c.b16 %v2926, %v2925
  %v2946 = vpack.c.b16 %v2928, %v2927
  %v2947 = vpack.c.b16 %v2930, %v2929
  %v2948 = vpack.c.b16 %v2932, %v2931
  %2965 = vmatpush.bf16.msra.mxu0 %v2940
  %2966 = vmatpush.bf16.msra.mxu0 %v2939
  %2967 = vmatpush.bf16.msra.mxu0 %v2938
  %2968 = vmatpush.bf16.msra.mxu0 %v2937
  %2969 = vmatpush.bf16.msra.mxu0 %v2936
  %2970 = vmatpush.bf16.msra.mxu0 %v2935
  %2971 = vmatpush.bf16.msra.mxu0 %v2934
  %2972 = vmatpush.bf16.msra.mxu0 %v2933
  %2973 = vmatmul.bf16.gmra.mxu0 %v2834
  %v2974 = vpop.f32.mrf.mxu0
  %v2975 = vadd.f32 0.0, %v2974
  %v2976 = vpop.f32.mrf.mxu0
  %2977 = vdwg.mxu0
  %2978 = vmatpush.bf16.msra.mxu0 %v2948
  %2979 = vmatpush.bf16.msra.mxu0 %v2947
  %2980 = vmatpush.bf16.msra.mxu0 %v2946
  %2981 = vmatpush.bf16.msra.mxu0 %v2945
  %2982 = vmatpush.bf16.msra.mxu0 %v2944
  %2983 = vmatpush.bf16.msra.mxu0 %v2943
  %2984 = vmatpush.bf16.msra.mxu0 %v2942
  %2985 = vmatpush.bf16.msra.mxu0 %v2941
  %2986 = vmatmul.bf16.gmra.mxu0 %v2835
  %v2987 = vpop.f32.mrf.mxu0
  %v2988 = vadd.f32 %v2975, %v2987
  %v2989 = vpop.f32.mrf.mxu0
  %2990 = vdwg.mxu0
  %v2991 = vadd.f32 %v2666, %v2988
  %s2992 = scalar_lea.vmem %s2, 72
  %v2993 = vld [vmem:[%s2992] sm:$0xff]
  %v2994 = vld [vmem:[%s2992 + $0x58] sm:$0xff]
  %v2995 = vld [vmem:[%s2992 + $0xb0] sm:$0xff]
  %v2996 = vld [vmem:[%s2992 + $0x108] sm:$0xff]
  %v2997 = vld [vmem:[%s2992 + $0x160] sm:$0xff]
  %v2998 = vld [vmem:[%s2992 + $0x1b8] sm:$0xff]
  %v2999 = vld [vmem:[%s2992 + $0x210] sm:$0xff]
  %v3000 = vld [vmem:[%s2992 + $0x268] sm:$0xff]
  %v3001 = vld [vmem:[%s2992 + $0x2c0] sm:$0xff]
  %v3002 = vld [vmem:[%s2992 + $0x318] sm:$0xff]
  %v3003 = vld [vmem:[%s2992 + $0x370] sm:$0xff]
  %v3004 = vld [vmem:[%s2992 + $0x3c8] sm:$0xff]
  %v3005 = vld [vmem:[%s2992 + $0x420] sm:$0xff]
  %v3006 = vld [vmem:[%s2992 + $0x478] sm:$0xff]
  %v3007 = vld [vmem:[%s2992 + $0x4d0] sm:$0xff]
  %v3008 = vld [vmem:[%s2992 + $0x528] sm:$0xff]
  %v3009 = vld [vmem:[%s2992 + $0x580] sm:$0xff]
  %v3010 = vld [vmem:[%s2992 + $0x5d8] sm:$0x11]
  %v3029 = vunpack.c.l.b16 %v2993
  %v3030 = vunpack.c.h.b16 %v2993
  %v3031 = vunpack.c.l.b16 %v2994
  %v3032 = vunpack.c.h.b16 %v2994
  %v3033 = vunpack.c.l.b16 %v2995
  %v3034 = vunpack.c.h.b16 %v2995
  %v3035 = vunpack.c.l.b16 %v2996
  %v3036 = vunpack.c.h.b16 %v2996
  %v3037 = vunpack.c.l.b16 %v2997
  %v3038 = vunpack.c.h.b16 %v2997
  %v3039 = vunpack.c.l.b16 %v2998
  %v3040 = vunpack.c.h.b16 %v2998
  %v3041 = vunpack.c.l.b16 %v2999
  %v3042 = vunpack.c.h.b16 %v2999
  %v3043 = vunpack.c.l.b16 %v3000
  %v3044 = vunpack.c.h.b16 %v3000
  %v3045 = vunpack.c.l.b16 %v3001
  %v3046 = vunpack.c.h.b16 %v3001
  %v3047 = vunpack.c.l.b16 %v3002
  %v3048 = vunpack.c.h.b16 %v3002
  %v3049 = vunpack.c.l.b16 %v3003
  %v3050 = vunpack.c.h.b16 %v3003
  %v3051 = vunpack.c.l.b16 %v3004
  %v3052 = vunpack.c.h.b16 %v3004
  %v3053 = vunpack.c.l.b16 %v3005
  %v3054 = vunpack.c.h.b16 %v3005
  %v3055 = vunpack.c.l.b16 %v3006
  %v3056 = vunpack.c.h.b16 %v3006
  %v3057 = vunpack.c.l.b16 %v3007
  %v3058 = vunpack.c.h.b16 %v3007
  %v3059 = vunpack.c.l.b16 %v3008
  %v3060 = vunpack.c.h.b16 %v3008
  %v3061 = vunpack.c.l.b16 %v3009
  %v3062 = vunpack.c.h.b16 %v3009
  %v3063 = vunpack.c.l.b16 %v3010
  %v3064 = vunpack.c.h.b16 %v3010
  %v3065 = vpack.c.b16 %v3031, %v3029
  %v3066 = vpack.c.b16 %v3032, %v3030
  %v3067 = vpack.c.b16 %v3035, %v3033
  %v3068 = vpack.c.b16 %v3036, %v3034
  %v3069 = vpack.c.b16 %v3039, %v3037
  %v3070 = vpack.c.b16 %v3040, %v3038
  %v3071 = vpack.c.b16 %v3043, %v3041
  %v3072 = vpack.c.b16 %v3044, %v3042
  %v3073 = vpack.c.b16 %v3047, %v3045
  %v3074 = vpack.c.b16 %v3048, %v3046
  %v3075 = vpack.c.b16 %v3051, %v3049
  %v3076 = vpack.c.b16 %v3052, %v3050
  %v3077 = vpack.c.b16 %v3055, %v3053
  %v3078 = vpack.c.b16 %v3056, %v3054
  %v3079 = vpack.c.b16 %v3059, %v3057
  %v3080 = vpack.c.b16 %v3060, %v3058
  %v3081 = vpack.c.b16 %v3063, %v3061
  %v3082 = vpack.c.b16 %v3064, %v3062
  %v3100 = vand.u32 %v3081, %v174
  %v3103 = vand.u32 %v3082, %v174
  %3105 = vmatpush.bf16.msra.mxu0 %v3079
  %3106 = vmatpush.bf16.msra.mxu0 %v3077
  %3107 = vmatpush.bf16.msra.mxu0 %v3075
  %3108 = vmatpush.bf16.msra.mxu0 %v3073
  %3109 = vmatpush.bf16.msra.mxu0 %v3071
  %3110 = vmatpush.bf16.msra.mxu0 %v3069
  %3111 = vmatpush.bf16.msra.mxu0 %v3067
  %3112 = vmatpush.bf16.msra.mxu0 %v3065
  %3113 = vmatmul.bf16.gmra.mxu0 %v76
  %v3114 = vpop.f32.mrf.mxu0
  %v3115 = vadd.f32 0.0, %v3114
  %v3116 = vpop.f32.mrf.mxu0
  %3117 = vdwg.mxu0
  %3118 = vmatpush.bf16.msra.mxu0 0
  %3119 = vmatpush.bf16.msra.mxu0 0
  %3120 = vmatpush.bf16.msra.mxu0 0
  %3121 = vmatpush.bf16.msra.mxu0 0
  %3122 = vmatpush.bf16.msra.mxu0 0
  %3123 = vmatpush.bf16.msra.mxu0 0
  %3124 = vmatpush.bf16.msra.mxu0 0
  %3125 = vmatpush.bf16.msra.mxu0 %v3100
  %3126 = vmatmul.bf16.gmra.mxu0 %v169
  %v3127 = vpop.f32.mrf.mxu0
  %v3128 = vadd.f32 %v3115, %v3127
  %v3129 = vpop.f32.mrf.mxu0
  %3130 = vdwg.mxu0
  %3131 = vmatpush.bf16.msra.mxu0 %v3080
  %3132 = vmatpush.bf16.msra.mxu0 %v3078
  %3133 = vmatpush.bf16.msra.mxu0 %v3076
  %3134 = vmatpush.bf16.msra.mxu0 %v3074
  %3135 = vmatpush.bf16.msra.mxu0 %v3072
  %3136 = vmatpush.bf16.msra.mxu0 %v3070
  %3137 = vmatpush.bf16.msra.mxu0 %v3068
  %3138 = vmatpush.bf16.msra.mxu0 %v3066
  %3139 = vmatmul.bf16.gmra.mxu0 %v76
  %v3140 = vpop.f32.mrf.mxu0
  %v3141 = vadd.f32 0.0, %v3140
  %v3142 = vpop.f32.mrf.mxu0
  %3143 = vdwg.mxu0
  %3144 = vmatpush.bf16.msra.mxu0 0
  %3145 = vmatpush.bf16.msra.mxu0 0
  %3146 = vmatpush.bf16.msra.mxu0 0
  %3147 = vmatpush.bf16.msra.mxu0 0
  %3148 = vmatpush.bf16.msra.mxu0 0
  %3149 = vmatpush.bf16.msra.mxu0 0
  %3150 = vmatpush.bf16.msra.mxu0 0
  %3151 = vmatpush.bf16.msra.mxu0 %v3103
  %3152 = vmatmul.bf16.gmra.mxu0 %v169
  %v3153 = vpop.f32.mrf.mxu0
  %v3154 = vadd.f32 %v3141, %v3153
  %v3155 = vpop.f32.mrf.mxu0
  %3156 = vdwg.mxu0
  %v3157 = vmax.f32 %v3128, 0.0
  %v3158 = vmax.f32 %v3154, 0.0
  %v3159 = vpack.c.bf16 %v3157, %v3157
  %v3160 = vpack.c.bf16 %v3158, %v3158
  %s3161 = scalar_lea.vmem %s3, 1152
  %v3162 = vld [vmem:[%s3161] sm:$0xf]
  %v3163 = vld [vmem:[%s3161 + $0x4] sm:$0xf]
  %v3164 = vld [vmem:[%s3161 + $0x8] sm:$0xf]
  %v3165 = vld [vmem:[%s3161 + $0xc] sm:$0xf]
  %v3166 = vld [vmem:[%s3161 + $0x10] sm:$0xf]
  %v3167 = vld [vmem:[%s3161 + $0x14] sm:$0xf]
  %v3168 = vld [vmem:[%s3161 + $0x18] sm:$0xf]
  %v3169 = vld [vmem:[%s3161 + $0x1c] sm:$0xf]
  %v3170 = vld [vmem:[%s3161 + $0x20] sm:$0xf]
  %v3171 = vld [vmem:[%s3161 + $0x24] sm:$0xf]
  %v3172 = vld [vmem:[%s3161 + $0x28] sm:$0xf]
  %v3173 = vld [vmem:[%s3161 + $0x2c] sm:$0xf]
  %v3174 = vld [vmem:[%s3161 + $0x30] sm:$0xf]
  %v3175 = vld [vmem:[%s3161 + $0x34] sm:$0xf]
  %v3176 = vld [vmem:[%s3161 + $0x38] sm:$0xf]
  %v3177 = vld [vmem:[%s3161 + $0x3c] sm:$0xf]
  %v3178 = vld [vmem:[%s3161 + $0x40] sm:$0xf]
  %v3179 = vld [vmem:[%s3161 + $0x44] sm:$0xf]
  %v3180 = vld [vmem:[%s3161 + $0x48] sm:$0xf]
  %v3181 = vld [vmem:[%s3161 + $0x4c] sm:$0xf]
  %v3182 = vld [vmem:[%s3161 + $0x50] sm:$0xf]
  %v3183 = vld [vmem:[%s3161 + $0x54] sm:$0xf]
  %v3184 = vld [vmem:[%s3161 + $0x58] sm:$0xf]
  %v3185 = vld [vmem:[%s3161 + $0x5c] sm:$0xf]
  %v3186 = vld [vmem:[%s3161 + $0x60] sm:$0xf]
  %v3187 = vld [vmem:[%s3161 + $0x64] sm:$0xf]
  %v3188 = vld [vmem:[%s3161 + $0x68] sm:$0xf]
  %v3189 = vld [vmem:[%s3161 + $0x6c] sm:$0xf]
  %v3190 = vld [vmem:[%s3161 + $0x70] sm:$0xf]
  %v3191 = vld [vmem:[%s3161 + $0x74] sm:$0xf]
  %v3192 = vld [vmem:[%s3161 + $0x78] sm:$0xf]
  %v3193 = vld [vmem:[%s3161 + $0x7c] sm:$0xf]
  %v3226 = vunpack.c.l.b16 %v3162
  %v3227 = vunpack.c.l.b16 %v3163
  %v3228 = vunpack.c.l.b16 %v3164
  %v3229 = vunpack.c.l.b16 %v3165
  %v3230 = vunpack.c.l.b16 %v3166
  %v3231 = vunpack.c.l.b16 %v3167
  %v3232 = vunpack.c.l.b16 %v3168
  %v3233 = vunpack.c.l.b16 %v3169
  %v3234 = vunpack.c.l.b16 %v3170
  %v3235 = vunpack.c.l.b16 %v3171
  %v3236 = vunpack.c.l.b16 %v3172
  %v3237 = vunpack.c.l.b16 %v3173
  %v3238 = vunpack.c.l.b16 %v3174
  %v3239 = vunpack.c.l.b16 %v3175
  %v3240 = vunpack.c.l.b16 %v3176
  %v3241 = vunpack.c.l.b16 %v3177
  %v3242 = vunpack.c.l.b16 %v3178
  %v3243 = vunpack.c.l.b16 %v3179
  %v3244 = vunpack.c.l.b16 %v3180
  %v3245 = vunpack.c.l.b16 %v3181
  %v3246 = vunpack.c.l.b16 %v3182
  %v3247 = vunpack.c.l.b16 %v3183
  %v3248 = vunpack.c.l.b16 %v3184
  %v3249 = vunpack.c.l.b16 %v3185
  %v3250 = vunpack.c.l.b16 %v3186
  %v3251 = vunpack.c.l.b16 %v3187
  %v3252 = vunpack.c.l.b16 %v3188
  %v3253 = vunpack.c.l.b16 %v3189
  %v3254 = vunpack.c.l.b16 %v3190
  %v3255 = vunpack.c.l.b16 %v3191
  %v3256 = vunpack.c.l.b16 %v3192
  %v3257 = vunpack.c.l.b16 %v3193
  %v3258 = vpack.c.b16 %v3227, %v3226
  %v3259 = vpack.c.b16 %v3229, %v3228
  %v3260 = vpack.c.b16 %v3231, %v3230
  %v3261 = vpack.c.b16 %v3233, %v3232
  %v3262 = vpack.c.b16 %v3235, %v3234
  %v3263 = vpack.c.b16 %v3237, %v3236
  %v3264 = vpack.c.b16 %v3239, %v3238
  %v3265 = vpack.c.b16 %v3241, %v3240
  %v3266 = vpack.c.b16 %v3243, %v3242
  %v3267 = vpack.c.b16 %v3245, %v3244
  %v3268 = vpack.c.b16 %v3247, %v3246
  %v3269 = vpack.c.b16 %v3249, %v3248
  %v3270 = vpack.c.b16 %v3251, %v3250
  %v3271 = vpack.c.b16 %v3253, %v3252
  %v3272 = vpack.c.b16 %v3255, %v3254
  %v3273 = vpack.c.b16 %v3257, %v3256
  %3290 = vmatpush.bf16.msra.mxu0 %v3265
  %3291 = vmatpush.bf16.msra.mxu0 %v3264
  %3292 = vmatpush.bf16.msra.mxu0 %v3263
  %3293 = vmatpush.bf16.msra.mxu0 %v3262
  %3294 = vmatpush.bf16.msra.mxu0 %v3261
  %3295 = vmatpush.bf16.msra.mxu0 %v3260
  %3296 = vmatpush.bf16.msra.mxu0 %v3259
  %3297 = vmatpush.bf16.msra.mxu0 %v3258
  %3298 = vmatmul.bf16.gmra.mxu0 %v3159
  %v3299 = vpop.f32.mrf.mxu0
  %v3300 = vadd.f32 0.0, %v3299
  %v3301 = vpop.f32.mrf.mxu0
  %3302 = vdwg.mxu0
  %3303 = vmatpush.bf16.msra.mxu0 %v3273
  %3304 = vmatpush.bf16.msra.mxu0 %v3272
  %3305 = vmatpush.bf16.msra.mxu0 %v3271
  %3306 = vmatpush.bf16.msra.mxu0 %v3270
  %3307 = vmatpush.bf16.msra.mxu0 %v3269
  %3308 = vmatpush.bf16.msra.mxu0 %v3268
  %3309 = vmatpush.bf16.msra.mxu0 %v3267
  %3310 = vmatpush.bf16.msra.mxu0 %v3266
  %3311 = vmatmul.bf16.gmra.mxu0 %v3160
  %v3312 = vpop.f32.mrf.mxu0
  %v3313 = vadd.f32 %v3300, %v3312
  %v3314 = vpop.f32.mrf.mxu0
  %3315 = vdwg.mxu0
  %v3316 = vadd.f32 %v2991, %v3313
  %s3317 = scalar_lea.vmem %s2, 80
  %v3318 = vld [vmem:[%s3317] sm:$0xff]
  %v3319 = vld [vmem:[%s3317 + $0x58] sm:$0xff]
  %v3320 = vld [vmem:[%s3317 + $0xb0] sm:$0xff]
  %v3321 = vld [vmem:[%s3317 + $0x108] sm:$0xff]
  %v3322 = vld [vmem:[%s3317 + $0x160] sm:$0xff]
  %v3323 = vld [vmem:[%s3317 + $0x1b8] sm:$0xff]
  %v3324 = vld [vmem:[%s3317 + $0x210] sm:$0xff]
  %v3325 = vld [vmem:[%s3317 + $0x268] sm:$0xff]
  %v3326 = vld [vmem:[%s3317 + $0x2c0] sm:$0xff]
  %v3327 = vld [vmem:[%s3317 + $0x318] sm:$0xff]
  %v3328 = vld [vmem:[%s3317 + $0x370] sm:$0xff]
  %v3329 = vld [vmem:[%s3317 + $0x3c8] sm:$0xff]
  %v3330 = vld [vmem:[%s3317 + $0x420] sm:$0xff]
  %v3331 = vld [vmem:[%s3317 + $0x478] sm:$0xff]
  %v3332 = vld [vmem:[%s3317 + $0x4d0] sm:$0xff]
  %v3333 = vld [vmem:[%s3317 + $0x528] sm:$0xff]
  %v3334 = vld [vmem:[%s3317 + $0x580] sm:$0xff]
  %v3335 = vld [vmem:[%s3317 + $0x5d8] sm:$0x11]
  %v3354 = vunpack.c.l.b16 %v3318
  %v3355 = vunpack.c.h.b16 %v3318
  %v3356 = vunpack.c.l.b16 %v3319
  %v3357 = vunpack.c.h.b16 %v3319
  %v3358 = vunpack.c.l.b16 %v3320
  %v3359 = vunpack.c.h.b16 %v3320
  %v3360 = vunpack.c.l.b16 %v3321
  %v3361 = vunpack.c.h.b16 %v3321
  %v3362 = vunpack.c.l.b16 %v3322
  %v3363 = vunpack.c.h.b16 %v3322
  %v3364 = vunpack.c.l.b16 %v3323
  %v3365 = vunpack.c.h.b16 %v3323
  %v3366 = vunpack.c.l.b16 %v3324
  %v3367 = vunpack.c.h.b16 %v3324
  %v3368 = vunpack.c.l.b16 %v3325
  %v3369 = vunpack.c.h.b16 %v3325
  %v3370 = vunpack.c.l.b16 %v3326
  %v3371 = vunpack.c.h.b16 %v3326
  %v3372 = vunpack.c.l.b16 %v3327
  %v3373 = vunpack.c.h.b16 %v3327
  %v3374 = vunpack.c.l.b16 %v3328
  %v3375 = vunpack.c.h.b16 %v3328
  %v3376 = vunpack.c.l.b16 %v3329
  %v3377 = vunpack.c.h.b16 %v3329
  %v3378 = vunpack.c.l.b16 %v3330
  %v3379 = vunpack.c.h.b16 %v3330
  %v3380 = vunpack.c.l.b16 %v3331
  %v3381 = vunpack.c.h.b16 %v3331
  %v3382 = vunpack.c.l.b16 %v3332
  %v3383 = vunpack.c.h.b16 %v3332
  %v3384 = vunpack.c.l.b16 %v3333
  %v3385 = vunpack.c.h.b16 %v3333
  %v3386 = vunpack.c.l.b16 %v3334
  %v3387 = vunpack.c.h.b16 %v3334
  %v3388 = vunpack.c.l.b16 %v3335
  %v3389 = vunpack.c.h.b16 %v3335
  %v3390 = vpack.c.b16 %v3356, %v3354
  %v3391 = vpack.c.b16 %v3357, %v3355
  %v3392 = vpack.c.b16 %v3360, %v3358
  %v3393 = vpack.c.b16 %v3361, %v3359
  %v3394 = vpack.c.b16 %v3364, %v3362
  %v3395 = vpack.c.b16 %v3365, %v3363
  %v3396 = vpack.c.b16 %v3368, %v3366
  %v3397 = vpack.c.b16 %v3369, %v3367
  %v3398 = vpack.c.b16 %v3372, %v3370
  %v3399 = vpack.c.b16 %v3373, %v3371
  %v3400 = vpack.c.b16 %v3376, %v3374
  %v3401 = vpack.c.b16 %v3377, %v3375
  %v3402 = vpack.c.b16 %v3380, %v3378
  %v3403 = vpack.c.b16 %v3381, %v3379
  %v3404 = vpack.c.b16 %v3384, %v3382
  %v3405 = vpack.c.b16 %v3385, %v3383
  %v3406 = vpack.c.b16 %v3388, %v3386
  %v3407 = vpack.c.b16 %v3389, %v3387
  %v3425 = vand.u32 %v3406, %v174
  %v3428 = vand.u32 %v3407, %v174
  %3430 = vmatpush.bf16.msra.mxu0 %v3404
  %3431 = vmatpush.bf16.msra.mxu0 %v3402
  %3432 = vmatpush.bf16.msra.mxu0 %v3400
  %3433 = vmatpush.bf16.msra.mxu0 %v3398
  %3434 = vmatpush.bf16.msra.mxu0 %v3396
  %3435 = vmatpush.bf16.msra.mxu0 %v3394
  %3436 = vmatpush.bf16.msra.mxu0 %v3392
  %3437 = vmatpush.bf16.msra.mxu0 %v3390
  %3438 = vmatmul.bf16.gmra.mxu0 %v76
  %v3439 = vpop.f32.mrf.mxu0
  %v3440 = vadd.f32 0.0, %v3439
  %v3441 = vpop.f32.mrf.mxu0
  %3442 = vdwg.mxu0
  %3443 = vmatpush.bf16.msra.mxu0 0
  %3444 = vmatpush.bf16.msra.mxu0 0
  %3445 = vmatpush.bf16.msra.mxu0 0
  %3446 = vmatpush.bf16.msra.mxu0 0
  %3447 = vmatpush.bf16.msra.mxu0 0
  %3448 = vmatpush.bf16.msra.mxu0 0
  %3449 = vmatpush.bf16.msra.mxu0 0
  %3450 = vmatpush.bf16.msra.mxu0 %v3425
  %3451 = vmatmul.bf16.gmra.mxu0 %v169
  %v3452 = vpop.f32.mrf.mxu0
  %v3453 = vadd.f32 %v3440, %v3452
  %v3454 = vpop.f32.mrf.mxu0
  %3455 = vdwg.mxu0
  %3456 = vmatpush.bf16.msra.mxu0 %v3405
  %3457 = vmatpush.bf16.msra.mxu0 %v3403
  %3458 = vmatpush.bf16.msra.mxu0 %v3401
  %3459 = vmatpush.bf16.msra.mxu0 %v3399
  %3460 = vmatpush.bf16.msra.mxu0 %v3397
  %3461 = vmatpush.bf16.msra.mxu0 %v3395
  %3462 = vmatpush.bf16.msra.mxu0 %v3393
  %3463 = vmatpush.bf16.msra.mxu0 %v3391
  %3464 = vmatmul.bf16.gmra.mxu0 %v76
  %v3465 = vpop.f32.mrf.mxu0
  %v3466 = vadd.f32 0.0, %v3465
  %v3467 = vpop.f32.mrf.mxu0
  %3468 = vdwg.mxu0
  %3469 = vmatpush.bf16.msra.mxu0 0
  %3470 = vmatpush.bf16.msra.mxu0 0
  %3471 = vmatpush.bf16.msra.mxu0 0
  %3472 = vmatpush.bf16.msra.mxu0 0
  %3473 = vmatpush.bf16.msra.mxu0 0
  %3474 = vmatpush.bf16.msra.mxu0 0
  %3475 = vmatpush.bf16.msra.mxu0 0
  %3476 = vmatpush.bf16.msra.mxu0 %v3428
  %3477 = vmatmul.bf16.gmra.mxu0 %v169
  %v3478 = vpop.f32.mrf.mxu0
  %v3479 = vadd.f32 %v3466, %v3478
  %v3480 = vpop.f32.mrf.mxu0
  %3481 = vdwg.mxu0
  %v3482 = vmax.f32 %v3453, 0.0
  %v3483 = vmax.f32 %v3479, 0.0
  %v3484 = vpack.c.bf16 %v3482, %v3482
  %v3485 = vpack.c.bf16 %v3483, %v3483
  %s3486 = scalar_lea.vmem %s3, 1280
  %v3487 = vld [vmem:[%s3486] sm:$0xf]
  %v3488 = vld [vmem:[%s3486 + $0x4] sm:$0xf]
  %v3489 = vld [vmem:[%s3486 + $0x8] sm:$0xf]
  %v3490 = vld [vmem:[%s3486 + $0xc] sm:$0xf]
  %v3491 = vld [vmem:[%s3486 + $0x10] sm:$0xf]
  %v3492 = vld [vmem:[%s3486 + $0x14] sm:$0xf]
  %v3493 = vld [vmem:[%s3486 + $0x18] sm:$0xf]
  %v3494 = vld [vmem:[%s3486 + $0x1c] sm:$0xf]
  %v3495 = vld [vmem:[%s3486 + $0x20] sm:$0xf]
  %v3496 = vld [vmem:[%s3486 + $0x24] sm:$0xf]
  %v3497 = vld [vmem:[%s3486 + $0x28] sm:$0xf]
  %v3498 = vld [vmem:[%s3486 + $0x2c] sm:$0xf]
  %v3499 = vld [vmem:[%s3486 + $0x30] sm:$0xf]
  %v3500 = vld [vmem:[%s3486 + $0x34] sm:$0xf]
  %v3501 = vld [vmem:[%s3486 + $0x38] sm:$0xf]
  %v3502 = vld [vmem:[%s3486 + $0x3c] sm:$0xf]
  %v3503 = vld [vmem:[%s3486 + $0x40] sm:$0xf]
  %v3504 = vld [vmem:[%s3486 + $0x44] sm:$0xf]
  %v3505 = vld [vmem:[%s3486 + $0x48] sm:$0xf]
  %v3506 = vld [vmem:[%s3486 + $0x4c] sm:$0xf]
  %v3507 = vld [vmem:[%s3486 + $0x50] sm:$0xf]
  %v3508 = vld [vmem:[%s3486 + $0x54] sm:$0xf]
  %v3509 = vld [vmem:[%s3486 + $0x58] sm:$0xf]
  %v3510 = vld [vmem:[%s3486 + $0x5c] sm:$0xf]
  %v3511 = vld [vmem:[%s3486 + $0x60] sm:$0xf]
  %v3512 = vld [vmem:[%s3486 + $0x64] sm:$0xf]
  %v3513 = vld [vmem:[%s3486 + $0x68] sm:$0xf]
  %v3514 = vld [vmem:[%s3486 + $0x6c] sm:$0xf]
  %v3515 = vld [vmem:[%s3486 + $0x70] sm:$0xf]
  %v3516 = vld [vmem:[%s3486 + $0x74] sm:$0xf]
  %v3517 = vld [vmem:[%s3486 + $0x78] sm:$0xf]
  %v3518 = vld [vmem:[%s3486 + $0x7c] sm:$0xf]
  %v3551 = vunpack.c.l.b16 %v3487
  %v3552 = vunpack.c.l.b16 %v3488
  %v3553 = vunpack.c.l.b16 %v3489
  %v3554 = vunpack.c.l.b16 %v3490
  %v3555 = vunpack.c.l.b16 %v3491
  %v3556 = vunpack.c.l.b16 %v3492
  %v3557 = vunpack.c.l.b16 %v3493
  %v3558 = vunpack.c.l.b16 %v3494
  %v3559 = vunpack.c.l.b16 %v3495
  %v3560 = vunpack.c.l.b16 %v3496
  %v3561 = vunpack.c.l.b16 %v3497
  %v3562 = vunpack.c.l.b16 %v3498
  %v3563 = vunpack.c.l.b16 %v3499
  %v3564 = vunpack.c.l.b16 %v3500
  %v3565 = vunpack.c.l.b16 %v3501
  %v3566 = vunpack.c.l.b16 %v3502
  %v3567 = vunpack.c.l.b16 %v3503
  %v3568 = vunpack.c.l.b16 %v3504
  %v3569 = vunpack.c.l.b16 %v3505
  %v3570 = vunpack.c.l.b16 %v3506
  %v3571 = vunpack.c.l.b16 %v3507
  %v3572 = vunpack.c.l.b16 %v3508
  %v3573 = vunpack.c.l.b16 %v3509
  %v3574 = vunpack.c.l.b16 %v3510
  %v3575 = vunpack.c.l.b16 %v3511
  %v3576 = vunpack.c.l.b16 %v3512
  %v3577 = vunpack.c.l.b16 %v3513
  %v3578 = vunpack.c.l.b16 %v3514
  %v3579 = vunpack.c.l.b16 %v3515
  %v3580 = vunpack.c.l.b16 %v3516
  %v3581 = vunpack.c.l.b16 %v3517
  %v3582 = vunpack.c.l.b16 %v3518
  %v3583 = vpack.c.b16 %v3552, %v3551
  %v3584 = vpack.c.b16 %v3554, %v3553
  %v3585 = vpack.c.b16 %v3556, %v3555
  %v3586 = vpack.c.b16 %v3558, %v3557
  %v3587 = vpack.c.b16 %v3560, %v3559
  %v3588 = vpack.c.b16 %v3562, %v3561
  %v3589 = vpack.c.b16 %v3564, %v3563
  %v3590 = vpack.c.b16 %v3566, %v3565
  %v3591 = vpack.c.b16 %v3568, %v3567
  %v3592 = vpack.c.b16 %v3570, %v3569
  %v3593 = vpack.c.b16 %v3572, %v3571
  %v3594 = vpack.c.b16 %v3574, %v3573
  %v3595 = vpack.c.b16 %v3576, %v3575
  %v3596 = vpack.c.b16 %v3578, %v3577
  %v3597 = vpack.c.b16 %v3580, %v3579
  %v3598 = vpack.c.b16 %v3582, %v3581
  %3615 = vmatpush.bf16.msra.mxu0 %v3590
  %3616 = vmatpush.bf16.msra.mxu0 %v3589
  %3617 = vmatpush.bf16.msra.mxu0 %v3588
  %3618 = vmatpush.bf16.msra.mxu0 %v3587
  %3619 = vmatpush.bf16.msra.mxu0 %v3586
  %3620 = vmatpush.bf16.msra.mxu0 %v3585
  %3621 = vmatpush.bf16.msra.mxu0 %v3584
  %3622 = vmatpush.bf16.msra.mxu0 %v3583
  %3623 = vmatmul.bf16.gmra.mxu0 %v3484
  %v3624 = vpop.f32.mrf.mxu0
  %v3625 = vadd.f32 0.0, %v3624
  %v3626 = vpop.f32.mrf.mxu0
  %3627 = vdwg.mxu0
  %3628 = vmatpush.bf16.msra.mxu0 %v3598
  %3629 = vmatpush.bf16.msra.mxu0 %v3597
  %3630 = vmatpush.bf16.msra.mxu0 %v3596
  %3631 = vmatpush.bf16.msra.mxu0 %v3595
  %3632 = vmatpush.bf16.msra.mxu0 %v3594
  %3633 = vmatpush.bf16.msra.mxu0 %v3593
  %3634 = vmatpush.bf16.msra.mxu0 %v3592
  %3635 = vmatpush.bf16.msra.mxu0 %v3591
  %3636 = vmatmul.bf16.gmra.mxu0 %v3485
  %v3637 = vpop.f32.mrf.mxu0
  %v3638 = vadd.f32 %v3625, %v3637
  %v3639 = vpop.f32.mrf.mxu0
  %3640 = vdwg.mxu0
  %v3641 = vadd.f32 %v3316, %v3638
  %v3642 = vmax.f32 %v3641, 0.0
  %v3643 = vpack.c.bf16 %v3642, %v3642
  %v3644 = vld [vmem:[%s5] sm:$0xf]
  %v3645 = vld [vmem:[%s5 + $0x4] sm:$0xf]
  %v3646 = vld [vmem:[%s5 + $0x8] sm:$0xf]
  %v3647 = vld [vmem:[%s5 + $0xc] sm:$0xf]
  %v3648 = vld [vmem:[%s5 + $0x10] sm:$0xf]
  %v3649 = vld [vmem:[%s5 + $0x14] sm:$0xf]
  %v3650 = vld [vmem:[%s5 + $0x18] sm:$0xf]
  %v3651 = vld [vmem:[%s5 + $0x1c] sm:$0xf]
  %v3652 = vld [vmem:[%s5 + $0x20] sm:$0xf]
  %v3653 = vld [vmem:[%s5 + $0x24] sm:$0xf]
  %v3654 = vld [vmem:[%s6] sm:$0x1]
  %v3656 = vperm.slane %v3654, 0
  %v3668 = vunpack.c.l.b16 %v3644
  %v3669 = vunpack.c.l.b16 %v3645
  %v3670 = vunpack.c.l.b16 %v3646
  %v3671 = vunpack.c.l.b16 %v3647
  %v3672 = vunpack.c.l.b16 %v3648
  %v3673 = vunpack.c.l.b16 %v3649
  %v3674 = vunpack.c.l.b16 %v3650
  %v3675 = vunpack.c.l.b16 %v3651
  %v3676 = vunpack.c.l.b16 %v3652
  %v3677 = vunpack.c.l.b16 %v3653
  %v3678 = vpack.c.b16 %v3669, %v3668
  %v3679 = vpack.c.b16 %v3671, %v3670
  %v3680 = vpack.c.b16 %v3673, %v3672
  %v3681 = vpack.c.b16 %v3675, %v3674
  %v3682 = vpack.c.b16 %v3677, %v3676
  %vm3688 = vcmask 654336
  %v3690 = vsel %vm3688, %v3643, 0
  %3692 = vmatpush.bf16.msra.mxu0 0
  %3693 = vmatpush.bf16.msra.mxu0 0
  %3694 = vmatpush.bf16.msra.mxu0 0
  %3695 = vmatpush.bf16.msra.mxu0 %v3682
  %3696 = vmatpush.bf16.msra.mxu0 %v3681
  %3697 = vmatpush.bf16.msra.mxu0 %v3680
  %3698 = vmatpush.bf16.msra.mxu0 %v3679
  %3699 = vmatpush.bf16.msra.mxu0 %v3678
  %3700 = vmatmul.bf16.gmra.mxu0 %v3690
  %v3701 = vpop.f32.mrf.mxu0
  %v3702 = vadd.f32 %v3656, %v3701
  %v3703 = vpop.f32.mrf.mxu0
  %3704 = vdwg.mxu0
  %v3705 = vmax.f32 %v3702, 0.0
  %v3706 = vpack.c.bf16 %v3705, %v3705
  %v3707 = vld [vmem:[%s7] sm:$0xf]
  %v3708 = vld [vmem:[%s7 + $0x4] sm:$0xf]
  %v3709 = vld [vmem:[%s7 + $0x8] sm:$0xf]
  %v3710 = vld [vmem:[%s7 + $0xc] sm:$0xf]
  %v3711 = vld [vmem:[%s7 + $0x10] sm:$0xf]
  %v3712 = vld [vmem:[%s8] sm:$0x1]
  %v3714 = vperm.slane %v3712, 0
  %v3721 = vunpack.c.l.b16 %v3707
  %v3722 = vunpack.c.l.b16 %v3708
  %v3723 = vunpack.c.l.b16 %v3709
  %v3724 = vunpack.c.l.b16 %v3710
  %v3725 = vunpack.c.l.b16 %v3711
  %v3726 = vpack.c.b16 %v3722, %v3721
  %v3727 = vpack.c.b16 %v3724, %v3723
  %v3728 = vpack.c.b16 %v3725, %v3725
  %vm3731 = vcmask 326656
  %v3733 = vsel %vm3731, %v3706, 0
  %v3736 = vsel %vm171, %v3728, 0
  %3738 = vmatpush.bf16.msra.mxu0 0
  %3739 = vmatpush.bf16.msra.mxu0 0
  %3740 = vmatpush.bf16.msra.mxu0 0
  %3741 = vmatpush.bf16.msra.mxu0 0
  %3742 = vmatpush.bf16.msra.mxu0 0
  %3743 = vmatpush.bf16.msra.mxu0 %v3736
  %3744 = vmatpush.bf16.msra.mxu0 %v3727
  %3745 = vmatpush.bf16.msra.mxu0 %v3726
  %3746 = vmatmul.bf16.gmra.mxu0 %v3733
  %v3747 = vpop.f32.mrf.mxu0
  %v3748 = vadd.f32 %v3714, %v3747
  %v3749 = vpop.f32.mrf.mxu0
  %3750 = vdwg.mxu0
  %v3751 = vmax.f32 %v3748, 0.0
  %v3752 = vld [vmem:[%s1] sm:$0xff]
  %v3753 = vld [vmem:[%s9] sm:$0x1]
  %3755 = vset.pattern.permute.xlu0 0
  %3756 = vperm.xlu0 %3755, %v3752
  %v3757 = vpop.permute.xlu0 %3756
  %v3760 = vperm.slane %v3753, 0
  %v3762 = vmul.f32 %v3757, %v3760
  %v3763 = vld [vmem:[%s10] sm:$0x1]
  %v3765 = vperm.slane %v3763, 0
  %v3767 = vadd.f32 %v3762, %v3765
  %v3768 = vmax.f32 %v3767, 0.0
  %v3769 = vld [vmem:[%s11] sm:$0x1]
  %v3771 = vperm.slane %v3769, 0
  %v3773 = vmul.f32 %v3751, %v3771
  %v3774 = vsel %vm3731, %v3773, 0.0
  %3775 = vadd.xlane.f32.xlu0 %v3774
  %v3776 = vpop.xlane.xlu0 %3775
  %v3777 = vld [vmem:[%s12] sm:$0x1]
  %v3779 = vperm.slane %v3777, 0
  %v3781 = vmul.f32 %v3768, %v3779
  %v3782 = vsel %vm3731, %v3781, 0.0
  %3783 = vadd.xlane.f32.xlu0 %v3782
  %v3784 = vpop.xlane.xlu0 %3783
  %v3785 = vadd.f32 %v3776, %v3784
  %v3786 = vld [vmem:[#allocation2] sm:$0x1]
  %v3788 = vperm.slane %v3786, 0
  %v3790 = vadd.f32 %v3785, %v3788
  %v3791 = vsub.f32 0.0, %v3790
  %v3792 = vmul.f32 %v3791, 1.442695
  %v3793 = vpow.pop %v3792
  %v3794 = vadd.f32 %v3793, 1.0
  %v3795 = vrcp.pop %v3794
  %v3796 = vmul.f32 %v3794, %v3795
  %v3797 = vsub.f32 1.0, %v3796
  %v3798 = vmul.f32 %v3795, %v3797
  %v3799 = vadd.f32 %v3795, %v3798
  %vm3800 = vweird.f32 %v3794
  %vm3801 = vweird.f32 %v3795
  %vm3802 = vmor %vm3800, %vm3801
  %v3803 = vsel %vm3802, %v3795, %v3799
  %v3804 = vand.u32 2147483647, %v3794
  %vm3805 = vcmp.eq.f32.partialorder %v3804, 8.507059e+37
  %v3806 = vand.u32 %v3794, 2147483648
  %v3807 = vor.u32 1.1754944e-38, %v3806
  %v3808 = vsel %vm3805, %v3807, %v3803
  %v3809 = vmul.f32 1.0, %v3808
  %vm3810 = vcmask 7168
  %3811 = vst.msk [vmem:[%s14] sm:$0xff] %vm3810, %v3809
  // Predicated region
  $region58: #{deepcpf1_forward.1} parent=0 // pred_check
    _
  $region59: #{deepcpf1_forward.1} parent=0 // pred_check_branch
    %3813 = sbr.rel (0) target = $region61
  $region60: #{deepcpf1_forward.1} parent=0 // pred_region
    _
  $region61: #{deepcpf1_forward.1} parent=0 // pred_fallthru
    _
  // Predicated region
  $region62: #{deepcpf1_forward.1} parent=0 // pred_check
    _
  $region63: #{deepcpf1_forward.1} parent=0 // pred_check_branch
    %3815 = sbr.rel (0) target = $region65
  $region64: #{deepcpf1_forward.1} parent=0 // pred_region
    _
  $region65: #{deepcpf1_forward.1} parent=0 // pred_fallthru
    _

</llo_original>
